<compile_context>
chip_gen: v6e
topology: v6e:2x2x1
jax: 0.10.0
libtpu: 0.0.40
codegen_flags: <defaults>
</compile_context>

<pallas_src>
import functools

import jax
import jax.numpy as jnp
from jax.experimental import pallas as pl
from jax.experimental.pallas import tpu as pltpu

D_MODEL = 512
D_HIDDEN = 2048
N_LAYERS = 6


def many_ff_kernel(x_ref, w1_ref, b1_ref, w2_ref, b2_ref, o_ref, act_ref):
    """All 6 FF blocks fused. Grid = (row_tiles, layers); layer axis iterates fastest.

    Per layer l:  act = relu(act @ W1[l] + b1[l]) @ W2[l] + b2[l]
    (Dropout with p=0.0 is the identity.)  The activation stays resident in the VMEM
    scratch across the layer axis; the output tile is written only on the last layer.
    """
    l = pl.program_id(1)
    is_last = l == pl.num_programs(1) - 1

    @pl.when(l == 0)
    def _():
        act_ref[...] = x_ref[...].astype(jnp.float32)

    act = act_ref[...]
    h = jnp.dot(act, w1_ref[...], preferred_element_type=jnp.float32) + b1_ref[...]
    h = jnp.maximum(h, 0.0)  # ReLU
    new_act = jnp.dot(h, w2_ref[...], preferred_element_type=jnp.float32) + b2_ref[...]

    @pl.when(jnp.logical_not(is_last))
    def _():
        act_ref[...] = new_act

    @pl.when(is_last)
    def _():
        o_ref[...] = new_act.astype(o_ref.dtype)


@functools.partial(jax.jit, static_argnames=("block_rows",))
def many_ff_forward(x, w1t_s, b1_s, w2t_s, b2_s, block_rows=8):
    """Fused ManyFF forward.

    x:      (B, 512) float32
    w1t_s:  (6, 512, 2048)   -- W1 pre-transposed to (in, out), stacked over layers
    b1_s:   (6, 1, 2048)
    w2t_s:  (6, 2048, 512)   -- W2 pre-transposed to (in, out), stacked over layers
    b2_s:   (6, 1, 512)
    """
    B, D = x.shape
    assert D == D_MODEL and B % block_rows == 0

    grid = (B // block_rows, N_LAYERS)

    # Two (B,512)x(512,2048)-class matmuls per layer.
    flops = 4 * B * D_MODEL * D_HIDDEN * N_LAYERS
    bytes_accessed = (
        (B // block_rows)
        * N_LAYERS
        * (D_MODEL * D_HIDDEN + D_HIDDEN * D_MODEL + D_HIDDEN + D_MODEL)
        * 4
        + 2 * B * D_MODEL * 4
    )

    return pl.pallas_call(
        many_ff_kernel,
        out_shape=jax.ShapeDtypeStruct((B, D_MODEL), x.dtype),
        grid_spec=pltpu.PrefetchScalarGridSpec(
            num_scalar_prefetch=0,
            grid=grid,
            in_specs=[
                # x tile: same block across the layer axis -> DMA'd once per row tile.
                pl.BlockSpec((block_rows, D_MODEL), lambda i, l: (i, 0)),
                # Per-layer weights/biases streamed (double-buffered) along the layer axis.
                pl.BlockSpec((None, D_MODEL, D_HIDDEN), lambda i, l: (l, 0, 0)),  # W1^T[l]
                pl.BlockSpec((None, 1, D_HIDDEN), lambda i, l: (l, 0, 0)),        # b1[l]
                pl.BlockSpec((None, D_HIDDEN, D_MODEL), lambda i, l: (l, 0, 0)),  # W2^T[l]
                pl.BlockSpec((None, 1, D_MODEL), lambda i, l: (l, 0, 0)),         # b2[l]
            ],
            # Output block constant across the layer axis -> written once per row tile.
            out_specs=pl.BlockSpec((block_rows, D_MODEL), lambda i, l: (i, 0)),
            scratch_shapes=[pltpu.VMEM((block_rows, D_MODEL), jnp.float32)],
        ),
        compiler_params=pltpu.CompilerParams(
            dimension_semantics=("parallel", "arbitrary"),
            vmem_limit_bytes=48 * 1024 * 1024,  # ~20 MiB used; fits v7x's 64 MiB VMEM
        ),
        cost_estimate=pl.CostEstimate(
            flops=flops, transcendentals=0, bytes_accessed=bytes_accessed
        ),
    )(x, w1t_s, b1_s, w2t_s, b2_s)


def init_ff_params(key, dtype=jnp.float32):
    """Deterministic FF params in torch layout: W is (out_features, in_features)."""
    k1, k2, k3, k4 = jax.random.split(key, 4)
    lim1 = 1.0 / (D_MODEL ** 0.5)
    lim2 = 1.0 / (D_HIDDEN ** 0.5)
    w1 = jax.random.uniform(k1, (D_HIDDEN, D_MODEL), dtype, -lim1, lim1)
    b1 = jax.random.uniform(k2, (D_HIDDEN,), dtype, -lim1, lim1)
    w2 = jax.random.uniform(k3, (D_MODEL, D_HIDDEN), dtype, -lim2, lim2)
    b2 = jax.random.uniform(k4, (D_MODEL,), dtype, -lim2, lim2)
    return w1, b1, w2, b2


def prepare_params(params_list):
    """One-time prep (hoisted out of the forward pass): transpose to (in, out) and stack."""
    w1t_s = jnp.stack([jnp.transpose(w1) for (w1, _, _, _) in params_list])       # (6, 512, 2048)
    b1_s = jnp.stack([b1.reshape(1, D_HIDDEN) for (_, b1, _, _) in params_list])  # (6, 1, 2048)
    w2t_s = jnp.stack([jnp.transpose(w2) for (_, _, w2, _) in params_list])       # (6, 2048, 512)
    b2_s = jnp.stack([b2.reshape(1, D_MODEL) for (_, _, _, b2) in params_list])   # (6, 1, 512)
    return w1t_s, b1_s, w2t_s, b2_s


def pick_block_rows(B):
    """Largest MXU-friendly row tile that divides B (up to 512)."""
    for cand in (512, 256, 128, 64, 32, 16, 8):
        if B % cand == 0:
            return cand
    return B


def many_ff_reference(src, params_list):
    out = src
    for (w1, b1, w2, b2) in params_list:
        h = jnp.maximum(out @ w1.T + b1, 0.0)
        out = h @ w2.T + b2
    return out


if __name__ == "__main__":
    key = jax.random.PRNGKey(0)
    keys = jax.random.split(key, 7)

    # Small input consistent with FF(512 -> 2048 -> 512): 8 rows of 512 features.
    src = jax.random.normal(keys[0], (8, D_MODEL), dtype=jnp.float32)

    params_list = [init_ff_params(keys[i + 1]) for i in range(N_LAYERS)]

    # One-time parameter prep (not part of the per-forward cost).
    w1t_s, b1_s, w2t_s, b2_s = prepare_params(params_list)
    w1t_s, b1_s, w2t_s, b2_s = jax.block_until_ready((w1t_s, b1_s, w2t_s, b2_s))

    block_rows = pick_block_rows(src.shape[0])
    out = many_ff_forward(src, w1t_s, b1_s, w2t_s, b2_s, block_rows=block_rows)
    out = jax.block_until_ready(out)

    # Sanity check against plain-JAX reference (f32; module's f64 is not representable on MXU).
    ref = many_ff_reference(src, params_list)
    assert out.shape == (8, D_MODEL)
    assert jnp.allclose(out, ref, rtol=1e-4, atol=1e-4), "mismatch vs reference"

    print("KERNEL_OK")
</pallas_src>

<mosaic_0001>
module attributes {stable_mosaic.version = 11 : i64} {
  func.func @many_ff_kernel(%arg0: i32, %arg1: i32, %arg2: memref<8x512xf32, #tpu.memory_space<vmem>>, %arg3: memref<1x512x2048xf32, #tpu.memory_space<vmem>>, %arg4: memref<1x1x2048xf32, #tpu.memory_space<vmem>>, %arg5: memref<1x2048x512xf32, #tpu.memory_space<vmem>>, %arg6: memref<1x1x512xf32, #tpu.memory_space<vmem>>, %arg7: memref<8x512xf32, #tpu.memory_space<vmem>>, %arg8: memref<8x512xf32, #tpu.memory_space<vmem>>) attributes {dimension_semantics = [#tpu.dimension_semantics<parallel>, #tpu.dimension_semantics<arbitrary>], iteration_bounds = array<i64: 1, 6>, scalar_prefetch = 0 : i64, scratch_operands = 1 : i64, tpu.core_type = #tpu.core_type<tc>, window_params = [{transform_indices = @transform_0, window_bounds = array<i64: 8, 512>}, {transform_indices = @transform_1, window_bounds = array<i64: 1, 512, 2048>}, {transform_indices = @transform_2, window_bounds = array<i64: 1, 1, 2048>}, {transform_indices = @transform_3, window_bounds = array<i64: 1, 2048, 512>}, {transform_indices = @transform_4, window_bounds = array<i64: 1, 1, 512>}, {transform_indices = @transform_5, window_bounds = array<i64: 8, 512>}]} {
    %c5_i32 = arith.constant 5 : i32
    %0 = arith.cmpi eq, %arg1, %c5_i32 : i32
    %c0_i32 = arith.constant 0 : i32
    %1 = arith.cmpi eq, %arg1, %c0_i32 : i32
    %2 = arith.extui %1 : i1 to i32
    %c0_i32_0 = arith.constant 0 : i32
    %3 = arith.cmpi ne, %2, %c0_i32_0 : i32
    scf.if %3 {
      %c0_18 = arith.constant 0 : index
      %c0_19 = arith.constant 0 : index
      %26 = vector.load %arg2[%c0_18, %c0_19] : memref<8x512xf32, #tpu.memory_space<vmem>>, vector<8x512xf32>
      %c0_20 = arith.constant 0 : index
      %c0_21 = arith.constant 0 : index
      %27 = vector.load %arg8[%c0_20, %c0_21] : memref<8x512xf32, #tpu.memory_space<vmem>>, vector<8x512xf32>
      tpu.vector_store %arg8[%c0_20, %c0_21], %26 {strides = array<i32>} : memref<8x512xf32, #tpu.memory_space<vmem>>, vector<8x512xf32>,
    } else {
    }
    %c0 = arith.constant 0 : index
    %c0_1 = arith.constant 0 : index
    %4 = vector.load %arg8[%c0, %c0_1] : memref<8x512xf32, #tpu.memory_space<vmem>>, vector<8x512xf32>
    %c0_2 = arith.constant 0 : index
    %c0_3 = arith.constant 0 : index
    %c0_4 = arith.constant 0 : index
    %5 = vector.load %arg3[%c0_2, %c0_3, %c0_4] : memref<1x512x2048xf32, #tpu.memory_space<vmem>>, vector<1x512x2048xf32>
    %6 = vector.shape_cast %5 : vector<1x512x2048xf32> to vector<512x2048xf32>
    %cst = arith.constant dense<0.000000e+00> : vector<8x2048xf32>
    %7 = tpu.matmul %4, %6, %cst {dimension_numbers = #tpu.dot_dimension_numbers<[1], [0], [0], [1], [0, 0, 1, 1], [], []>} : vector<8x512xf32>, vector<512x2048xf32>, vector<8x2048xf32> -> vector<8x2048xf32>
    %c0_5 = arith.constant 0 : index
    %c0_6 = arith.constant 0 : index
    %c0_7 = arith.constant 0 : index
    %8 = vector.load %arg4[%c0_5, %c0_6, %c0_7] : memref<1x1x2048xf32, #tpu.memory_space<vmem>>, vector<1x1x2048xf32>
    %9 = vector.shape_cast %8 : vector<1x1x2048xf32> to vector<1x2048xf32>
    %10 = vector.broadcast %9 : vector<1x2048xf32> to vector<8x2048xf32>
    %11 = arith.addf %7, %10 : vector<8x2048xf32>
    %cst_8 = arith.constant 0.000000e+00 : f32
    %12 = vector.broadcast %cst_8 : f32 to vector<8x2048xf32>
    %13 = arith.maximumf %11, %12 : vector<8x2048xf32>
    %c0_9 = arith.constant 0 : index
    %c0_10 = arith.constant 0 : index
    %c0_11 = arith.constant 0 : index
    %14 = vector.load %arg5[%c0_9, %c0_10, %c0_11] : memref<1x2048x512xf32, #tpu.memory_space<vmem>>, vector<1x2048x512xf32>
    %15 = vector.shape_cast %14 : vector<1x2048x512xf32> to vector<2048x512xf32>
    %cst_12 = arith.constant dense<0.000000e+00> : vector<8x512xf32>
    %16 = tpu.matmul %13, %15, %cst_12 {dimension_numbers = #tpu.dot_dimension_numbers<[1], [0], [0], [1], [0, 0, 1, 1], [], []>} : vector<8x2048xf32>, vector<2048x512xf32>, vector<8x512xf32> -> vector<8x512xf32>
    %c0_13 = arith.constant 0 : index
    %c0_14 = arith.constant 0 : index
    %c0_15 = arith.constant 0 : index
    %17 = vector.load %arg6[%c0_13, %c0_14, %c0_15] : memref<1x1x512xf32, #tpu.memory_space<vmem>>, vector<1x1x512xf32>
    %18 = vector.shape_cast %17 : vector<1x1x512xf32> to vector<1x512xf32>
    %19 = vector.broadcast %18 : vector<1x512xf32> to vector<8x512xf32>
    %20 = arith.addf %16, %19 : vector<8x512xf32>
    %true = arith.constant true
    %21 = arith.xori %0, %true : i1
    %22 = arith.extui %21 : i1 to i32
    %c0_i32_16 = arith.constant 0 : i32
    %23 = arith.cmpi ne, %22, %c0_i32_16 : i32
    scf.if %23 {
      %c0_18 = arith.constant 0 : index
      %c0_19 = arith.constant 0 : index
      %26 = vector.load %arg8[%c0_18, %c0_19] : memref<8x512xf32, #tpu.memory_space<vmem>>, vector<8x512xf32>
      tpu.vector_store %arg8[%c0_18, %c0_19], %20 {strides = array<i32>} : memref<8x512xf32, #tpu.memory_space<vmem>>, vector<8x512xf32>,
    } else {
    }
    %24 = arith.extui %0 : i1 to i32
    %c0_i32_17 = arith.constant 0 : i32
    %25 = arith.cmpi ne, %24, %c0_i32_17 : i32
    scf.if %25 {
      %c0_18 = arith.constant 0 : index
      %c0_19 = arith.constant 0 : index
      %26 = vector.load %arg7[%c0_18, %c0_19] : memref<8x512xf32, #tpu.memory_space<vmem>>, vector<8x512xf32>
      tpu.vector_store %arg7[%c0_18, %c0_19], %20 {strides = array<i32>} : memref<8x512xf32, #tpu.memory_space<vmem>>, vector<8x512xf32>,
    } else {
    }
    return
  }
  func.func @transform_0(%arg0: i32, %arg1: i32) -> (i32, i32) {
    %c0_i32 = arith.constant 0 : i32
    %c0_i32_0 = arith.constant 0 : i32
    return %arg0, %c0_i32 : i32, i32
  }
  func.func @transform_1(%arg0: i32, %arg1: i32) -> (i32, i32, i32) {
    %c0_i32 = arith.constant 0 : i32
    %c0_i32_0 = arith.constant 0 : i32
    %c0_i32_1 = arith.constant 0 : i32
    return %arg1, %c0_i32, %c0_i32_0 : i32, i32, i32
  }
  func.func @transform_2(%arg0: i32, %arg1: i32) -> (i32, i32, i32) {
    %c0_i32 = arith.constant 0 : i32
    %c0_i32_0 = arith.constant 0 : i32
    %c0_i32_1 = arith.constant 0 : i32
    return %arg1, %c0_i32, %c0_i32_0 : i32, i32, i32
  }
  func.func @transform_3(%arg0: i32, %arg1: i32) -> (i32, i32, i32) {
    %c0_i32 = arith.constant 0 : i32
    %c0_i32_0 = arith.constant 0 : i32
    %c0_i32_1 = arith.constant 0 : i32
    return %arg1, %c0_i32, %c0_i32_0 : i32, i32, i32
  }
  func.func @transform_4(%arg0: i32, %arg1: i32) -> (i32, i32, i32) {
    %c0_i32 = arith.constant 0 : i32
    %c0_i32_0 = arith.constant 0 : i32
    %c0_i32_1 = arith.constant 0 : i32
    return %arg1, %c0_i32, %c0_i32_0 : i32, i32, i32
  }
  func.func @transform_5(%arg0: i32, %arg1: i32) -> (i32, i32) {
    %c0_i32 = arith.constant 0 : i32
    %c0_i32_0 = arith.constant 0 : i32
    return %arg0, %c0_i32 : i32, i32
  }
}

</mosaic_0001>

<llo_original>
// kernel: many_ff_forward.1
$region0: #{many_ff_forward.1}
  #allocation0 [shape = 'u32[]', space=smem, size = 0x4, offset = 0x4, fixed_abs, tag = 'smem constant byte address 0x4 - core index']
  #allocation1 [shape = 'u32[144,128]{1,0:T(1,128)}', space=vmem, size = 0x12000, scoped, tag = 'internal scratch']
  #allocation2 [shape = 'f32[8,512]{1,0:T(8,128)}', space=vmem, size = 0x4000, scoped, tag = 'scratch operand']
  %s0 = inlined_call_operand.hbm [shape: f32[8,512], index: 0, kind: input, shape index: {}]
  %s1 = inlined_call_operand.hbm [shape: f32[6,512,2048], index: 1, kind: input, shape index: {}]
  %s2 = inlined_call_operand.hbm [shape: f32[6,1,2048], index: 2, kind: input, shape index: {}]
  %s3 = inlined_call_operand.hbm [shape: f32[6,2048,512], index: 3, kind: input, shape index: {}]
  %s4 = inlined_call_operand.hbm [shape: f32[6,1,512], index: 4, kind: input, shape index: {}]
  %s5 = inlined_call_operand.hbm [shape: f32[8,512], index: 5, kind: output, shape index: {}]
  %s6 = sld [smem:[#allocation0]]
  $region85: #{many_ff_forward.1} parent=0
    _
  %s8 = ssub.s32 1, %s6
  %s9 = scalar_select 0, %s8, %s6
  $region1: #{many_ff_forward.1} parent=0
    #allocation3 [shape = 'u8[16384]{0}', space=vmem, size = 0x4000, scoped, tag = 'input window, operand 0, single buffered']
    #allocation4 [shape = 's32[2]{0}', space=sflag, size = 0x8, scoped, tag = 'scoped memory for many_ff_forward.1']
    #allocation5 [shape = 's32[2]{0}', space=sflag, size = 0x8, scoped, tag = 'scoped memory for many_ff_forward.1']
    #allocation6 [shape = 'u8[8388608]{0}', space=vmem, size = 0x800000, scoped, tag = 'input window, operand 1']
    #allocation7 [shape = 's32[2]{0}', space=sflag, size = 0x8, scoped, tag = 'scoped memory for many_ff_forward.1']
    #allocation8 [shape = 'u8[16384]{0}', space=vmem, size = 0x4000, scoped, tag = 'input window, operand 2']
    #allocation9 [shape = 'u8[8388608]{0}', space=vmem, size = 0x800000, scoped, tag = 'input window, operand 3']
    #allocation10 [shape = 's32[2]{0}', space=sflag, size = 0x8, scoped, tag = 'scoped memory for many_ff_forward.1']
    #allocation11 [shape = 'u8[4096]{0}', space=vmem, size = 0x1000, scoped, tag = 'input window, operand 4']
    #allocation12 [shape = 'u8[16384]{0}', space=vmem, size = 0x4000, scoped, tag = 'output window, operand 0, single buffered']
    %10 = vsyncpa [#allocation4], 0
    %11 = vsyncpa [#allocation7], 0
    %s12 = scalar_lea.sflag [#allocation7], 1
    %13 = vsyncpa %s12, 0
    %14 = vsyncpa [#allocation10], 0
    %s15 = scalar_lea.sflag [#allocation10], 1
    %16 = vsyncpa %s15, 0
    %17 = vsyncpa [#allocation5], 0
    loop: start=0, step=1, limit=8
    $region2: #{many_ff_forward.1} parent=1 // loop_pre_header
      _
    $region3: #{many_ff_forward.1} parent=1 // loop_header
      %s19 = sphi 0, %s23
      %p20 = scmp.ge.s32.totalorder %s19, 8
      %s26 = sphi 0, %s38
      %s27 = sphi 0, %s34
      %s28 = sphi 0, %s26
      %s29 = sphi 0, %s27
      %s30 = sphi 0, %s28
      %s31 = sphi 0, %s29
      %s41 = sphi 0, %s43
      %s44 = sphi 0, %s41
      %s45 = sphi 0, %s44
      %s61 = sphi 0, %s45
      %s67 = sphi 0, %s69
      %s70 = sphi 0, %s67
      %s71 = sphi 0, %s70
      %s87 = sphi 0, %s71
      %s93 = sphi 0, %s95
      %s96 = sphi 0, %s93
      %s97 = sphi 0, %s96
      %s113 = sphi 0, %s97
      %s119 = sphi 0, %s121
      %s122 = sphi 0, %s119
      %s123 = sphi 0, %s122
      %s139 = sphi 0, %s123
      %s145 = sphi 0, %s147
      %s148 = sphi 0, %s145
      %s149 = sphi 0, %s148
      %s165 = sphi 0, %s149
      %s171 = sphi 0, %s173
      %s174 = sphi 0, %s171
      %s175 = sphi 0, %s174
      %s191 = sphi 0, %s175
    $region4: #{many_ff_forward.1} parent=1 // loop_header_branch
      %22 = sbr.rel (%p20) target = $region8
    $region5: #{many_ff_forward.1} parent=1 // loop_body
      %s24 = ssub.s32 %s19, 1
      %s25 = ssub.s32 %s19, 2
      %s32 = sadd.s32 1, %s27
      %p33 = scmp.ge.s32.totalorder %s32, 6
      %s34 = scalar_select %p33, 0, %s32
      %s35 = sadd.s32 1, %s26
      %s36 = scalar_select %p33, %s35, %s26
      %p37 = scmp.ge.s32.totalorder %s36, 1
      %s38 = scalar_select %p37, 0, %s36
      %s39 = ssub.s32 %s26, %s38
      %p40 = scmp.eq.s32.totalorder %s39, 0
      %s42 = sadd.s32 %s41, 1
      %s43 = scalar_select %p40, %s41, %s42
      %p46 = pneg %p40
      %p47 = scmp.eq.s32.totalorder %s19, 5
      %p48 = por %p46, %p47
      %p49 = scmp.ne.s32.totalorder %s41, %s44
      %p50 = scmp.eq.s32.totalorder %s19, 0
      %p51 = por %p49, %p50
      %p52 = scmp.ne.s32.totalorder %s41, %s44
      %p53 = scmp.eq.s32.totalorder %s24, 5
      %p54 = por %p52, %p53
      %p55 = scmp.ne.s32.totalorder %s44, %s45
      %p56 = scmp.eq.s32.totalorder %s24, 0
      %p57 = por %p55, %p56
      %p58 = scmp.ne.s32.totalorder %s44, %s45
      %p59 = scmp.eq.s32.totalorder %s25, 5
      %p60 = por %p58, %p59
      %p62 = scmp.ne.s32.totalorder %s45, %s61
      %p63 = scmp.eq.s32.totalorder %s25, 0
      %p64 = por %p62, %p63
      %s65 = ssub.s32 %s27, %s34
      %p66 = scmp.eq.s32.totalorder %s65, 0
      %s68 = sadd.s32 %s67, 1
      %s69 = scalar_select %p66, %s67, %s68
      %p72 = pneg %p66
      %p73 = scmp.eq.s32.totalorder %s19, 5
      %p74 = por %p72, %p73
      %p75 = scmp.ne.s32.totalorder %s67, %s70
      %p76 = scmp.eq.s32.totalorder %s19, 0
      %p77 = por %p75, %p76
      %p78 = scmp.ne.s32.totalorder %s67, %s70
      %p79 = scmp.eq.s32.totalorder %s24, 5
      %p80 = por %p78, %p79
      %p81 = scmp.ne.s32.totalorder %s70, %s71
      %p82 = scmp.eq.s32.totalorder %s24, 0
      %p83 = por %p81, %p82
      %p84 = scmp.ne.s32.totalorder %s70, %s71
      %p85 = scmp.eq.s32.totalorder %s25, 5
      %p86 = por %p84, %p85
      %p88 = scmp.ne.s32.totalorder %s71, %s87
      %p89 = scmp.eq.s32.totalorder %s25, 0
      %p90 = por %p88, %p89
      %s91 = ssub.s32 %s27, %s34
      %p92 = scmp.eq.s32.totalorder %s91, 0
      %s94 = sadd.s32 %s93, 1
      %s95 = scalar_select %p92, %s93, %s94
      %p98 = pneg %p92
      %p99 = scmp.eq.s32.totalorder %s19, 5
      %p100 = por %p98, %p99
      %p101 = scmp.ne.s32.totalorder %s93, %s96
      %p102 = scmp.eq.s32.totalorder %s19, 0
      %p103 = por %p101, %p102
      %p104 = scmp.ne.s32.totalorder %s93, %s96
      %p105 = scmp.eq.s32.totalorder %s24, 5
      %p106 = por %p104, %p105
      %p107 = scmp.ne.s32.totalorder %s96, %s97
      %p108 = scmp.eq.s32.totalorder %s24, 0
      %p109 = por %p107, %p108
      %p110 = scmp.ne.s32.totalorder %s96, %s97
      %p111 = scmp.eq.s32.totalorder %s25, 5
      %p112 = por %p110, %p111
      %p114 = scmp.ne.s32.totalorder %s97, %s113
      %p115 = scmp.eq.s32.totalorder %s25, 0
      %p116 = por %p114, %p115
      %s117 = ssub.s32 %s27, %s34
      %p118 = scmp.eq.s32.totalorder %s117, 0
      %s120 = sadd.s32 %s119, 1
      %s121 = scalar_select %p118, %s119, %s120
      %p124 = pneg %p118
      %p125 = scmp.eq.s32.totalorder %s19, 5
      %p126 = por %p124, %p125
      %p127 = scmp.ne.s32.totalorder %s119, %s122
      %p128 = scmp.eq.s32.totalorder %s19, 0
      %p129 = por %p127, %p128
      %p130 = scmp.ne.s32.totalorder %s119, %s122
      %p131 = scmp.eq.s32.totalorder %s24, 5
      %p132 = por %p130, %p131
      %p133 = scmp.ne.s32.totalorder %s122, %s123
      %p134 = scmp.eq.s32.totalorder %s24, 0
      %p135 = por %p133, %p134
      %p136 = scmp.ne.s32.totalorder %s122, %s123
      %p137 = scmp.eq.s32.totalorder %s25, 5
      %p138 = por %p136, %p137
      %p140 = scmp.ne.s32.totalorder %s123, %s139
      %p141 = scmp.eq.s32.totalorder %s25, 0
      %p142 = por %p140, %p141
      %s143 = ssub.s32 %s27, %s34
      %p144 = scmp.eq.s32.totalorder %s143, 0
      %s146 = sadd.s32 %s145, 1
      %s147 = scalar_select %p144, %s145, %s146
      %p150 = pneg %p144
      %p151 = scmp.eq.s32.totalorder %s19, 5
      %p152 = por %p150, %p151
      %p153 = scmp.ne.s32.totalorder %s145, %s148
      %p154 = scmp.eq.s32.totalorder %s19, 0
      %p155 = por %p153, %p154
      %p156 = scmp.ne.s32.totalorder %s145, %s148
      %p157 = scmp.eq.s32.totalorder %s24, 5
      %p158 = por %p156, %p157
      %p159 = scmp.ne.s32.totalorder %s148, %s149
      %p160 = scmp.eq.s32.totalorder %s24, 0
      %p161 = por %p159, %p160
      %p162 = scmp.ne.s32.totalorder %s148, %s149
      %p163 = scmp.eq.s32.totalorder %s25, 5
      %p164 = por %p162, %p163
      %p166 = scmp.ne.s32.totalorder %s149, %s165
      %p167 = scmp.eq.s32.totalorder %s25, 0
      %p168 = por %p166, %p167
      %s169 = ssub.s32 %s26, %s38
      %p170 = scmp.eq.s32.totalorder %s169, 0
      %s172 = sadd.s32 %s171, 1
      %s173 = scalar_select %p170, %s171, %s172
      %p176 = pneg %p170
      %p177 = scmp.eq.s32.totalorder %s19, 5
      %p178 = por %p176, %p177
      %p179 = scmp.ne.s32.totalorder %s171, %s174
      %p180 = scmp.eq.s32.totalorder %s19, 0
      %p181 = por %p179, %p180
      %p182 = scmp.ne.s32.totalorder %s171, %s174
      %p183 = scmp.eq.s32.totalorder %s24, 5
      %p184 = por %p182, %p183
      %p185 = scmp.ne.s32.totalorder %s174, %s175
      %p186 = scmp.eq.s32.totalorder %s24, 0
      %p187 = por %p185, %p186
      %p188 = scmp.ne.s32.totalorder %s174, %s175
      %p189 = scmp.eq.s32.totalorder %s25, 5
      %p190 = por %p188, %p189
      %p192 = scmp.ne.s32.totalorder %s175, %s191
      %p193 = scmp.eq.s32.totalorder %s25, 0
      %p194 = por %p192, %p193
      %p195 = scmp.le.s32.totalorder 1, %s19
      %p196 = scmp.lt.s32.totalorder %s19, 7
      %p197 = pnand %p195, %p196
      %p198 = pneg %p197
      // Predicated region
      $region9: #{many_ff_forward.1} parent=5 // pred_check
        _
      $region10: #{many_ff_forward.1} parent=5 // pred_check_branch
        %200 = sbr.rel (%p197) target = $region12
      $region11: #{many_ff_forward.1} parent=5 // pred_region
        %s201 = ssub.s32 %s19, 1
        // Predicated region
        $region13: #{many_ff_forward.1} parent=11 // pred_check
          %p202 = pneg %p57
        $region14: #{many_ff_forward.1} parent=11 // pred_check_branch
          %204 = sbr.rel (%p202) target = $region16
        $region15: #{many_ff_forward.1} parent=11 // pred_region
          %s206 = ssub.s32 512, 512
          %207 = vsyncadd [#allocation4], %s206
          %s208 = smul.addr %s28, 4
          %s209 = smul.addr %s208, 128
          %s210 = scalar_lea.hbm %s0, %s209
          %s212 = sshll.u32 [#allocation3], 4
          %s213 = int_to_ptr.vmem [resolvable:$true] %s212
          %215 = dma.hbm_to_vmem [thread:$0]  %s210, 512, %s213, [#allocation4]
        $region16: #{many_ff_forward.1} parent=11 // pred_fallthru
          _
      $region12: #{many_ff_forward.1} parent=5 // pred_fallthru
        _
      %p216 = scmp.lt.s32.totalorder %s19, 6
      // Predicated region
      $region17: #{many_ff_forward.1} parent=5 // pred_check
        %p217 = pneg %p216
      $region18: #{many_ff_forward.1} parent=5 // pred_check_branch
        %219 = sbr.rel (%p217) target = $region20
      $region19: #{many_ff_forward.1} parent=5 // pred_region
        // Predicated region
        $region21: #{many_ff_forward.1} parent=19 // pred_check
          %p220 = pneg %p77
        $region22: #{many_ff_forward.1} parent=19 // pred_check_branch
          %222 = sbr.rel (%p220) target = $region24
        $region23: #{many_ff_forward.1} parent=19 // pred_region
          %s223 = sand.u32 %s19, 1
          %s224 = scalar_lea.sflag [#allocation7], %s223
          %s225 = sand.u32 %s67, 1
          %s226 = smul.addr %s225, 8192
          %s227 = scalar_lea.vmem [#allocation6], %s226
          %s229 = ssub.s32 131072, 131072
          %230 = vsyncadd %s224, %s229
          %s231 = smul.addr %s27, 1024
          %s232 = smul.addr %s231, 128
          %s233 = scalar_lea.hbm %s1, %s232
          %s234 = sshll.u32 %s227, 4
          %s235 = int_to_ptr.vmem [resolvable:$true] %s234
          %240 = dma.hbm_to_vmem [thread:$0]  %s233, 131072, %s235, %s224, 2048, 2048, 128
        $region24: #{many_ff_forward.1} parent=19 // pred_fallthru
          _
        // Predicated region
        $region25: #{many_ff_forward.1} parent=19 // pred_check
          %p241 = pneg %p103
        $region26: #{many_ff_forward.1} parent=19 // pred_check_branch
          %243 = sbr.rel (%p241) target = $region28
        $region27: #{many_ff_forward.1} parent=19 // pred_region
          %s244 = sand.u32 %s19, 1
          %s245 = scalar_lea.sflag [#allocation7], %s244
          %s246 = sand.u32 %s93, 1
          %s247 = smul.addr %s246, 16
          %s248 = scalar_lea.vmem [#allocation8], %s247
          %s250 = ssub.s32 256, 256
          %251 = vsyncadd %s245, %s250
          %s252 = smul.addr %s27, 16
          %s253 = smul.addr %s252, 16
          %s254 = scalar_lea.hbm %s2, %s253
          %s256 = sshll.u32 %s248, 4
          %s257 = int_to_ptr.vmem [resolvable:$true] %s256
          %259 = dma.hbm_to_vmem [thread:$0]  %s254, 256, %s257, %s245
        $region28: #{many_ff_forward.1} parent=19 // pred_fallthru
          _
        // Predicated region
        $region29: #{many_ff_forward.1} parent=19 // pred_check
          %p260 = pneg %p129
        $region30: #{many_ff_forward.1} parent=19 // pred_check_branch
          %262 = sbr.rel (%p260) target = $region32
        $region31: #{many_ff_forward.1} parent=19 // pred_region
          %s263 = sand.u32 %s19, 1
          %s264 = scalar_lea.sflag [#allocation10], %s263
          %s265 = sand.u32 %s119, 1
          %s266 = smul.addr %s265, 8192
          %s267 = scalar_lea.vmem [#allocation9], %s266
          %s269 = ssub.s32 131072, 131072
          %270 = vsyncadd %s264, %s269
          %s271 = smul.addr %s27, 1024
          %s272 = smul.addr %s271, 128
          %s273 = scalar_lea.hbm %s3, %s272
          %s274 = sshll.u32 %s267, 4
          %s275 = int_to_ptr.vmem [resolvable:$true] %s274
          %280 = dma.hbm_to_vmem [thread:$0]  %s273, 131072, %s275, %s264, 512, 512, 32
        $region32: #{many_ff_forward.1} parent=19 // pred_fallthru
          _
        // Predicated region
        $region33: #{many_ff_forward.1} parent=19 // pred_check
          %p281 = pneg %p155
        $region34: #{many_ff_forward.1} parent=19 // pred_check_branch
          %283 = sbr.rel (%p281) target = $region36
        $region35: #{many_ff_forward.1} parent=19 // pred_region
          %s284 = sand.u32 %s19, 1
          %s285 = scalar_lea.sflag [#allocation10], %s284
          %s286 = sand.u32 %s145, 1
          %s287 = smul.addr %s286, 4
          %s288 = scalar_lea.vmem [#allocation11], %s287
          %s290 = ssub.s32 64, 64
          %291 = vsyncadd %s285, %s290
          %s292 = smul.addr %s27, 4
          %s293 = smul.addr %s292, 16
          %s294 = scalar_lea.hbm %s4, %s293
          %s296 = sshll.u32 %s288, 4
          %s297 = int_to_ptr.vmem [resolvable:$true] %s296
          %299 = dma.hbm_to_vmem [thread:$0]  %s294, 64, %s297, %s285
        $region36: #{many_ff_forward.1} parent=19 // pred_fallthru
          _
      $region20: #{many_ff_forward.1} parent=5 // pred_fallthru
        _
      %p300 = scmp.le.s32.totalorder 1, %s19
      %p301 = scmp.lt.s32.totalorder %s19, 7
      %p302 = pnand %p300, %p301
      %p303 = pneg %p302
      // Predicated region
      $region37: #{many_ff_forward.1} parent=5 // pred_check
        _
      $region38: #{many_ff_forward.1} parent=5 // pred_check_branch
        %305 = sbr.rel (%p302) target = $region40
      $region39: #{many_ff_forward.1} parent=5 // pred_region
        %s306 = ssub.s32 %s19, 1
        // Predicated region
        $region41: #{many_ff_forward.1} parent=39 // pred_check
          %p307 = pneg %p57
        $region42: #{many_ff_forward.1} parent=39 // pred_check_branch
          %309 = sbr.rel (%p307) target = $region44
        $region43: #{many_ff_forward.1} parent=39 // pred_region
          %310 = dma.done [#allocation4], 512
        $region44: #{many_ff_forward.1} parent=39 // pred_fallthru
          _
        %s311 = sand.u32 %s24, 1
        %s312 = scalar_lea.sflag [#allocation7], %s311
        %s313 = sand.u32 %s70, 1
        %s314 = smul.addr %s313, 8192
        %s315 = scalar_lea.vmem [#allocation6], %s314
        // Predicated region
        $region45: #{many_ff_forward.1} parent=39 // pred_check
          %p316 = pneg %p83
        $region46: #{many_ff_forward.1} parent=39 // pred_check_branch
          %318 = sbr.rel (%p316) target = $region48
        $region47: #{many_ff_forward.1} parent=39 // pred_region
          %319 = dma.done %s312, 131072
        $region48: #{many_ff_forward.1} parent=39 // pred_fallthru
          _
        %s320 = sand.u32 %s24, 1
        %s321 = scalar_lea.sflag [#allocation7], %s320
        %s322 = sand.u32 %s96, 1
        %s323 = smul.addr %s322, 16
        %s324 = scalar_lea.vmem [#allocation8], %s323
        // Predicated region
        $region49: #{many_ff_forward.1} parent=39 // pred_check
          %p325 = pneg %p109
        $region50: #{many_ff_forward.1} parent=39 // pred_check_branch
          %327 = sbr.rel (%p325) target = $region52
        $region51: #{many_ff_forward.1} parent=39 // pred_region
          %328 = dma.done %s321, 256
        $region52: #{many_ff_forward.1} parent=39 // pred_fallthru
          _
        %s329 = sand.u32 %s24, 1
        %s330 = scalar_lea.sflag [#allocation10], %s329
        %s331 = sand.u32 %s122, 1
        %s332 = smul.addr %s331, 8192
        %s333 = scalar_lea.vmem [#allocation9], %s332
        // Predicated region
        $region53: #{many_ff_forward.1} parent=39 // pred_check
          %p334 = pneg %p135
        $region54: #{many_ff_forward.1} parent=39 // pred_check_branch
          %336 = sbr.rel (%p334) target = $region56
        $region55: #{many_ff_forward.1} parent=39 // pred_region
          %337 = dma.done %s330, 131072
        $region56: #{many_ff_forward.1} parent=39 // pred_fallthru
          _
        %s338 = sand.u32 %s24, 1
        %s339 = scalar_lea.sflag [#allocation10], %s338
        %s340 = sand.u32 %s148, 1
        %s341 = smul.addr %s340, 4
        %s342 = scalar_lea.vmem [#allocation11], %s341
        // Predicated region
        $region57: #{many_ff_forward.1} parent=39 // pred_check
          %p343 = pneg %p161
        $region58: #{many_ff_forward.1} parent=39 // pred_check_branch
          %345 = sbr.rel (%p343) target = $region60
        $region59: #{many_ff_forward.1} parent=39 // pred_region
          %346 = dma.done %s339, 64
        $region60: #{many_ff_forward.1} parent=39 // pred_fallthru
          _
        %p347 = pneg %p57
        %p348 = pneg %p54
        %s349 = sand.u32 %s24, 1
        %s350 = scalar_lea.sflag [#allocation7], %s349
        %s351 = sand.u32 %s70, 1
        %s352 = smul.addr %s351, 8192
        %s353 = scalar_lea.vmem [#allocation6], %s352
        %p354 = pneg %p83
        %p355 = pneg %p80
        %s356 = sand.u32 %s24, 1
        %s357 = scalar_lea.sflag [#allocation7], %s356
        %s358 = sand.u32 %s96, 1
        %s359 = smul.addr %s358, 16
        %s360 = scalar_lea.vmem [#allocation8], %s359
        %p361 = pneg %p109
        %p362 = pneg %p106
        %s363 = sand.u32 %s24, 1
        %s364 = scalar_lea.sflag [#allocation10], %s363
        %s365 = sand.u32 %s122, 1
        %s366 = smul.addr %s365, 8192
        %s367 = scalar_lea.vmem [#allocation9], %s366
        %p368 = pneg %p135
        %p369 = pneg %p132
        %s370 = sand.u32 %s24, 1
        %s371 = scalar_lea.sflag [#allocation10], %s370
        %s372 = sand.u32 %s148, 1
        %s373 = smul.addr %s372, 4
        %s374 = scalar_lea.vmem [#allocation11], %s373
        %p375 = pneg %p161
        %p376 = pneg %p158
        %p377 = pneg %p187
        %p378 = pneg %p184
        %p379 = scmp.eq.s32.totalorder %s29, 5
        %p380 = scmp.eq.s32.totalorder %s29, 0
        // Predicated region
        $region61: #{many_ff_forward.1} parent=39 // pred_check
          %p381 = pneg %p380
        $region62: #{many_ff_forward.1} parent=39 // pred_check_branch
          %383 = sbr.rel (%p381) target = $region64
        $region63: #{many_ff_forward.1} parent=39 // pred_region
          %v384 = vld [vmem:[#allocation3] sm:$0xff]
          %v385 = vld [vmem:[#allocation3 + $0x8] sm:$0xff]
          %v386 = vld [vmem:[#allocation3 + $0x10] sm:$0xff]
          %v387 = vld [vmem:[#allocation3 + $0x18] sm:$0xff]
          %388 = vst [vmem:[#allocation2] sm:$0xff] %v384
          %389 = vst [vmem:[#allocation2 + $0x8] sm:$0xff] %v385
          %390 = vst [vmem:[#allocation2 + $0x10] sm:$0xff] %v386
          %391 = vst [vmem:[#allocation2 + $0x18] sm:$0xff] %v387
        $region64: #{many_ff_forward.1} parent=39 // pred_fallthru
          _
        %v392 = vld [vmem:[#allocation2] sm:$0xff]
        %v393 = vld [vmem:[#allocation2 + $0x8] sm:$0xff]
        %v394 = vld [vmem:[#allocation2 + $0x10] sm:$0xff]
        %v395 = vld [vmem:[#allocation2 + $0x18] sm:$0xff]
        %v396 = vld [vmem:[%s315] sm:$0xff]
        %v397 = vld [vmem:[%s315 + $0x8] sm:$0xff]
        %v398 = vld [vmem:[%s315 + $0x10] sm:$0xff]
        %v399 = vld [vmem:[%s315 + $0x18] sm:$0xff]
        %v400 = vld [vmem:[%s315 + $0x20] sm:$0xff]
        %v401 = vld [vmem:[%s315 + $0x28] sm:$0xff]
        %v402 = vld [vmem:[%s315 + $0x30] sm:$0xff]
        %v403 = vld [vmem:[%s315 + $0x38] sm:$0xff]
        %v404 = vld [vmem:[%s315 + $0x40] sm:$0xff]
        %v405 = vld [vmem:[%s315 + $0x48] sm:$0xff]
        %v406 = vld [vmem:[%s315 + $0x50] sm:$0xff]
        %v407 = vld [vmem:[%s315 + $0x58] sm:$0xff]
        %v408 = vld [vmem:[%s315 + $0x60] sm:$0xff]
        %v409 = vld [vmem:[%s315 + $0x68] sm:$0xff]
        %v410 = vld [vmem:[%s315 + $0x70] sm:$0xff]
        %v411 = vld [vmem:[%s315 + $0x78] sm:$0xff]
        %v412 = vld [vmem:[%s315 + $0x80] sm:$0xff]
        %v413 = vld [vmem:[%s315 + $0x88] sm:$0xff]
        %v414 = vld [vmem:[%s315 + $0x90] sm:$0xff]
        %v415 = vld [vmem:[%s315 + $0x98] sm:$0xff]
        %v416 = vld [vmem:[%s315 + $0xa0] sm:$0xff]
        %v417 = vld [vmem:[%s315 + $0xa8] sm:$0xff]
        %v418 = vld [vmem:[%s315 + $0xb0] sm:$0xff]
        %v419 = vld [vmem:[%s315 + $0xb8] sm:$0xff]
        %v420 = vld [vmem:[%s315 + $0xc0] sm:$0xff]
        %v421 = vld [vmem:[%s315 + $0xc8] sm:$0xff]
        %v422 = vld [vmem:[%s315 + $0xd0] sm:$0xff]
        %v423 = vld [vmem:[%s315 + $0xd8] sm:$0xff]
        %v424 = vld [vmem:[%s315 + $0xe0] sm:$0xff]
        %v425 = vld [vmem:[%s315 + $0xe8] sm:$0xff]
        %v426 = vld [vmem:[%s315 + $0xf0] sm:$0xff]
        %v427 = vld [vmem:[%s315 + $0xf8] sm:$0xff]
        %v428 = vld [vmem:[%s315 + $0x100] sm:$0xff]
        %v429 = vld [vmem:[%s315 + $0x108] sm:$0xff]
        %v430 = vld [vmem:[%s315 + $0x110] sm:$0xff]
        %v431 = vld [vmem:[%s315 + $0x118] sm:$0xff]
        %v432 = vld [vmem:[%s315 + $0x120] sm:$0xff]
        %v433 = vld [vmem:[%s315 + $0x128] sm:$0xff]
        %v434 = vld [vmem:[%s315 + $0x130] sm:$0xff]
        %v435 = vld [vmem:[%s315 + $0x138] sm:$0xff]
        %v436 = vld [vmem:[%s315 + $0x140] sm:$0xff]
        %v437 = vld [vmem:[%s315 + $0x148] sm:$0xff]
        %v438 = vld [vmem:[%s315 + $0x150] sm:$0xff]
        %v439 = vld [vmem:[%s315 + $0x158] sm:$0xff]
        %v440 = vld [vmem:[%s315 + $0x160] sm:$0xff]
        %v441 = vld [vmem:[%s315 + $0x168] sm:$0xff]
        %v442 = vld [vmem:[%s315 + $0x170] sm:$0xff]
        %v443 = vld [vmem:[%s315 + $0x178] sm:$0xff]
        %v444 = vld [vmem:[%s315 + $0x180] sm:$0xff]
        %v445 = vld [vmem:[%s315 + $0x188] sm:$0xff]
        %v446 = vld [vmem:[%s315 + $0x190] sm:$0xff]
        %v447 = vld [vmem:[%s315 + $0x198] sm:$0xff]
        %v448 = vld [vmem:[%s315 + $0x1a0] sm:$0xff]
        %v449 = vld [vmem:[%s315 + $0x1a8] sm:$0xff]
        %v450 = vld [vmem:[%s315 + $0x1b0] sm:$0xff]
        %v451 = vld [vmem:[%s315 + $0x1b8] sm:$0xff]
        %v452 = vld [vmem:[%s315 + $0x1c0] sm:$0xff]
        %v453 = vld [vmem:[%s315 + $0x1c8] sm:$0xff]
        %v454 = vld [vmem:[%s315 + $0x1d0] sm:$0xff]
        %v455 = vld [vmem:[%s315 + $0x1d8] sm:$0xff]
        %v456 = vld [vmem:[%s315 + $0x1e0] sm:$0xff]
        %v457 = vld [vmem:[%s315 + $0x1e8] sm:$0xff]
        %v458 = vld [vmem:[%s315 + $0x1f0] sm:$0xff]
        %v459 = vld [vmem:[%s315 + $0x1f8] sm:$0xff]
        %v460 = vld [vmem:[%s315 + $0x200] sm:$0xff]
        %v461 = vld [vmem:[%s315 + $0x208] sm:$0xff]
        %v462 = vld [vmem:[%s315 + $0x210] sm:$0xff]
        %v463 = vld [vmem:[%s315 + $0x218] sm:$0xff]
        %v464 = vld [vmem:[%s315 + $0x220] sm:$0xff]
        %v465 = vld [vmem:[%s315 + $0x228] sm:$0xff]
        %v466 = vld [vmem:[%s315 + $0x230] sm:$0xff]
        %v467 = vld [vmem:[%s315 + $0x238] sm:$0xff]
        %v468 = vld [vmem:[%s315 + $0x240] sm:$0xff]
        %v469 = vld [vmem:[%s315 + $0x248] sm:$0xff]
        %v470 = vld [vmem:[%s315 + $0x250] sm:$0xff]
        %v471 = vld [vmem:[%s315 + $0x258] sm:$0xff]
        %v472 = vld [vmem:[%s315 + $0x260] sm:$0xff]
        %v473 = vld [vmem:[%s315 + $0x268] sm:$0xff]
        %v474 = vld [vmem:[%s315 + $0x270] sm:$0xff]
        %v475 = vld [vmem:[%s315 + $0x278] sm:$0xff]
        %v476 = vld [vmem:[%s315 + $0x280] sm:$0xff]
        %v477 = vld [vmem:[%s315 + $0x288] sm:$0xff]
        %v478 = vld [vmem:[%s315 + $0x290] sm:$0xff]
        %v479 = vld [vmem:[%s315 + $0x298] sm:$0xff]
        %v480 = vld [vmem:[%s315 + $0x2a0] sm:$0xff]
        %v481 = vld [vmem:[%s315 + $0x2a8] sm:$0xff]
        %v482 = vld [vmem:[%s315 + $0x2b0] sm:$0xff]
        %v483 = vld [vmem:[%s315 + $0x2b8] sm:$0xff]
        %v484 = vld [vmem:[%s315 + $0x2c0] sm:$0xff]
        %v485 = vld [vmem:[%s315 + $0x2c8] sm:$0xff]
        %v486 = vld [vmem:[%s315 + $0x2d0] sm:$0xff]
        %v487 = vld [vmem:[%s315 + $0x2d8] sm:$0xff]
        %v488 = vld [vmem:[%s315 + $0x2e0] sm:$0xff]
        %v489 = vld [vmem:[%s315 + $0x2e8] sm:$0xff]
        %v490 = vld [vmem:[%s315 + $0x2f0] sm:$0xff]
        %v491 = vld [vmem:[%s315 + $0x2f8] sm:$0xff]
        %v492 = vld [vmem:[%s315 + $0x300] sm:$0xff]
        %v493 = vld [vmem:[%s315 + $0x308] sm:$0xff]
        %v494 = vld [vmem:[%s315 + $0x310] sm:$0xff]
        %v495 = vld [vmem:[%s315 + $0x318] sm:$0xff]
        %v496 = vld [vmem:[%s315 + $0x320] sm:$0xff]
        %v497 = vld [vmem:[%s315 + $0x328] sm:$0xff]
        %v498 = vld [vmem:[%s315 + $0x330] sm:$0xff]
        %v499 = vld [vmem:[%s315 + $0x338] sm:$0xff]
        %v500 = vld [vmem:[%s315 + $0x340] sm:$0xff]
        %v501 = vld [vmem:[%s315 + $0x348] sm:$0xff]
        %v502 = vld [vmem:[%s315 + $0x350] sm:$0xff]
        %v503 = vld [vmem:[%s315 + $0x358] sm:$0xff]
        %v504 = vld [vmem:[%s315 + $0x360] sm:$0xff]
        %v505 = vld [vmem:[%s315 + $0x368] sm:$0xff]
        %v506 = vld [vmem:[%s315 + $0x370] sm:$0xff]
        %v507 = vld [vmem:[%s315 + $0x378] sm:$0xff]
        %v508 = vld [vmem:[%s315 + $0x380] sm:$0xff]
        %v509 = vld [vmem:[%s315 + $0x388] sm:$0xff]
        %v510 = vld [vmem:[%s315 + $0x390] sm:$0xff]
        %v511 = vld [vmem:[%s315 + $0x398] sm:$0xff]
        %v512 = vld [vmem:[%s315 + $0x3a0] sm:$0xff]
        %v513 = vld [vmem:[%s315 + $0x3a8] sm:$0xff]
        %v514 = vld [vmem:[%s315 + $0x3b0] sm:$0xff]
        %v515 = vld [vmem:[%s315 + $0x3b8] sm:$0xff]
        %v516 = vld [vmem:[%s315 + $0x3c0] sm:$0xff]
        %v517 = vld [vmem:[%s315 + $0x3c8] sm:$0xff]
        %v518 = vld [vmem:[%s315 + $0x3d0] sm:$0xff]
        %v519 = vld [vmem:[%s315 + $0x3d8] sm:$0xff]
        %v520 = vld [vmem:[%s315 + $0x3e0] sm:$0xff]
        %v521 = vld [vmem:[%s315 + $0x3e8] sm:$0xff]
        %v522 = vld [vmem:[%s315 + $0x3f0] sm:$0xff]
        %v523 = vld [vmem:[%s315 + $0x3f8] sm:$0xff]
        %v524 = vld [vmem:[%s315 + $0x400] sm:$0xff]
        %v525 = vld [vmem:[%s315 + $0x408] sm:$0xff]
        %v526 = vld [vmem:[%s315 + $0x410] sm:$0xff]
        %v527 = vld [vmem:[%s315 + $0x418] sm:$0xff]
        %v528 = vld [vmem:[%s315 + $0x420] sm:$0xff]
        %v529 = vld [vmem:[%s315 + $0x428] sm:$0xff]
        %v530 = vld [vmem:[%s315 + $0x430] sm:$0xff]
        %v531 = vld [vmem:[%s315 + $0x438] sm:$0xff]
        %v532 = vld [vmem:[%s315 + $0x440] sm:$0xff]
        %v533 = vld [vmem:[%s315 + $0x448] sm:$0xff]
        %v534 = vld [vmem:[%s315 + $0x450] sm:$0xff]
        %v535 = vld [vmem:[%s315 + $0x458] sm:$0xff]
        %v536 = vld [vmem:[%s315 + $0x460] sm:$0xff]
        %v537 = vld [vmem:[%s315 + $0x468] sm:$0xff]
        %v538 = vld [vmem:[%s315 + $0x470] sm:$0xff]
        %v539 = vld [vmem:[%s315 + $0x478] sm:$0xff]
        %v540 = vld [vmem:[%s315 + $0x480] sm:$0xff]
        %v541 = vld [vmem:[%s315 + $0x488] sm:$0xff]
        %v542 = vld [vmem:[%s315 + $0x490] sm:$0xff]
        %v543 = vld [vmem:[%s315 + $0x498] sm:$0xff]
        %v544 = vld [vmem:[%s315 + $0x4a0] sm:$0xff]
        %v545 = vld [vmem:[%s315 + $0x4a8] sm:$0xff]
        %v546 = vld [vmem:[%s315 + $0x4b0] sm:$0xff]
        %v547 = vld [vmem:[%s315 + $0x4b8] sm:$0xff]
        %v548 = vld [vmem:[%s315 + $0x4c0] sm:$0xff]
        %v549 = vld [vmem:[%s315 + $0x4c8] sm:$0xff]
        %v550 = vld [vmem:[%s315 + $0x4d0] sm:$0xff]
        %v551 = vld [vmem:[%s315 + $0x4d8] sm:$0xff]
        %v552 = vld [vmem:[%s315 + $0x4e0] sm:$0xff]
        %v553 = vld [vmem:[%s315 + $0x4e8] sm:$0xff]
        %v554 = vld [vmem:[%s315 + $0x4f0] sm:$0xff]
        %v555 = vld [vmem:[%s315 + $0x4f8] sm:$0xff]
        %v556 = vld [vmem:[%s315 + $0x500] sm:$0xff]
        %v557 = vld [vmem:[%s315 + $0x508] sm:$0xff]
        %v558 = vld [vmem:[%s315 + $0x510] sm:$0xff]
        %v559 = vld [vmem:[%s315 + $0x518] sm:$0xff]
        %v560 = vld [vmem:[%s315 + $0x520] sm:$0xff]
        %v561 = vld [vmem:[%s315 + $0x528] sm:$0xff]
        %v562 = vld [vmem:[%s315 + $0x530] sm:$0xff]
        %v563 = vld [vmem:[%s315 + $0x538] sm:$0xff]
        %v564 = vld [vmem:[%s315 + $0x540] sm:$0xff]
        %v565 = vld [vmem:[%s315 + $0x548] sm:$0xff]
        %v566 = vld [vmem:[%s315 + $0x550] sm:$0xff]
        %v567 = vld [vmem:[%s315 + $0x558] sm:$0xff]
        %v568 = vld [vmem:[%s315 + $0x560] sm:$0xff]
        %v569 = vld [vmem:[%s315 + $0x568] sm:$0xff]
        %v570 = vld [vmem:[%s315 + $0x570] sm:$0xff]
        %v571 = vld [vmem:[%s315 + $0x578] sm:$0xff]
        %v572 = vld [vmem:[%s315 + $0x580] sm:$0xff]
        %v573 = vld [vmem:[%s315 + $0x588] sm:$0xff]
        %v574 = vld [vmem:[%s315 + $0x590] sm:$0xff]
        %v575 = vld [vmem:[%s315 + $0x598] sm:$0xff]
        %v576 = vld [vmem:[%s315 + $0x5a0] sm:$0xff]
        %v577 = vld [vmem:[%s315 + $0x5a8] sm:$0xff]
        %v578 = vld [vmem:[%s315 + $0x5b0] sm:$0xff]
        %v579 = vld [vmem:[%s315 + $0x5b8] sm:$0xff]
        %v580 = vld [vmem:[%s315 + $0x5c0] sm:$0xff]
        %v581 = vld [vmem:[%s315 + $0x5c8] sm:$0xff]
        %v582 = vld [vmem:[%s315 + $0x5d0] sm:$0xff]
        %v583 = vld [vmem:[%s315 + $0x5d8] sm:$0xff]
        %v584 = vld [vmem:[%s315 + $0x5e0] sm:$0xff]
        %v585 = vld [vmem:[%s315 + $0x5e8] sm:$0xff]
        %v586 = vld [vmem:[%s315 + $0x5f0] sm:$0xff]
        %v587 = vld [vmem:[%s315 + $0x5f8] sm:$0xff]
        %v588 = vld [vmem:[%s315 + $0x600] sm:$0xff]
        %v589 = vld [vmem:[%s315 + $0x608] sm:$0xff]
        %v590 = vld [vmem:[%s315 + $0x610] sm:$0xff]
        %v591 = vld [vmem:[%s315 + $0x618] sm:$0xff]
        %v592 = vld [vmem:[%s315 + $0x620] sm:$0xff]
        %v593 = vld [vmem:[%s315 + $0x628] sm:$0xff]
        %v594 = vld [vmem:[%s315 + $0x630] sm:$0xff]
        %v595 = vld [vmem:[%s315 + $0x638] sm:$0xff]
        %v596 = vld [vmem:[%s315 + $0x640] sm:$0xff]
        %v597 = vld [vmem:[%s315 + $0x648] sm:$0xff]
        %v598 = vld [vmem:[%s315 + $0x650] sm:$0xff]
        %v599 = vld [vmem:[%s315 + $0x658] sm:$0xff]
        %v600 = vld [vmem:[%s315 + $0x660] sm:$0xff]
        %v601 = vld [vmem:[%s315 + $0x668] sm:$0xff]
        %v602 = vld [vmem:[%s315 + $0x670] sm:$0xff]
        %v603 = vld [vmem:[%s315 + $0x678] sm:$0xff]
        %v604 = vld [vmem:[%s315 + $0x680] sm:$0xff]
        %v605 = vld [vmem:[%s315 + $0x688] sm:$0xff]
        %v606 = vld [vmem:[%s315 + $0x690] sm:$0xff]
        %v607 = vld [vmem:[%s315 + $0x698] sm:$0xff]
        %v608 = vld [vmem:[%s315 + $0x6a0] sm:$0xff]
        %v609 = vld [vmem:[%s315 + $0x6a8] sm:$0xff]
        %v610 = vld [vmem:[%s315 + $0x6b0] sm:$0xff]
        %v611 = vld [vmem:[%s315 + $0x6b8] sm:$0xff]
        %v612 = vld [vmem:[%s315 + $0x6c0] sm:$0xff]
        %v613 = vld [vmem:[%s315 + $0x6c8] sm:$0xff]
        %v614 = vld [vmem:[%s315 + $0x6d0] sm:$0xff]
        %v615 = vld [vmem:[%s315 + $0x6d8] sm:$0xff]
        %v616 = vld [vmem:[%s315 + $0x6e0] sm:$0xff]
        %v617 = vld [vmem:[%s315 + $0x6e8] sm:$0xff]
        %v618 = vld [vmem:[%s315 + $0x6f0] sm:$0xff]
        %v619 = vld [vmem:[%s315 + $0x6f8] sm:$0xff]
        %v620 = vld [vmem:[%s315 + $0x700] sm:$0xff]
        %v621 = vld [vmem:[%s315 + $0x708] sm:$0xff]
        %v622 = vld [vmem:[%s315 + $0x710] sm:$0xff]
        %v623 = vld [vmem:[%s315 + $0x718] sm:$0xff]
        %v624 = vld [vmem:[%s315 + $0x720] sm:$0xff]
        %v625 = vld [vmem:[%s315 + $0x728] sm:$0xff]
        %v626 = vld [vmem:[%s315 + $0x730] sm:$0xff]
        %v627 = vld [vmem:[%s315 + $0x738] sm:$0xff]
        %v628 = vld [vmem:[%s315 + $0x740] sm:$0xff]
        %v629 = vld [vmem:[%s315 + $0x748] sm:$0xff]
        %v630 = vld [vmem:[%s315 + $0x750] sm:$0xff]
        %v631 = vld [vmem:[%s315 + $0x758] sm:$0xff]
        %v632 = vld [vmem:[%s315 + $0x760] sm:$0xff]
        %v633 = vld [vmem:[%s315 + $0x768] sm:$0xff]
        %v634 = vld [vmem:[%s315 + $0x770] sm:$0xff]
        %v635 = vld [vmem:[%s315 + $0x778] sm:$0xff]
        %v636 = vld [vmem:[%s315 + $0x780] sm:$0xff]
        %v637 = vld [vmem:[%s315 + $0x788] sm:$0xff]
        %v638 = vld [vmem:[%s315 + $0x790] sm:$0xff]
        %v639 = vld [vmem:[%s315 + $0x798] sm:$0xff]
        %v640 = vld [vmem:[%s315 + $0x7a0] sm:$0xff]
        %v641 = vld [vmem:[%s315 + $0x7a8] sm:$0xff]
        %v642 = vld [vmem:[%s315 + $0x7b0] sm:$0xff]
        %v643 = vld [vmem:[%s315 + $0x7b8] sm:$0xff]
        %v644 = vld [vmem:[%s315 + $0x7c0] sm:$0xff]
        %v645 = vld [vmem:[%s315 + $0x7c8] sm:$0xff]
        %v646 = vld [vmem:[%s315 + $0x7d0] sm:$0xff]
        %v647 = vld [vmem:[%s315 + $0x7d8] sm:$0xff]
        %v648 = vld [vmem:[%s315 + $0x7e0] sm:$0xff]
        %v649 = vld [vmem:[%s315 + $0x7e8] sm:$0xff]
        %v650 = vld [vmem:[%s315 + $0x7f0] sm:$0xff]
        %v651 = vld [vmem:[%s315 + $0x7f8] sm:$0xff]
        %v652 = vld [vmem:[%s315 + $0x800] sm:$0xff]
        %v653 = vld [vmem:[%s315 + $0x808] sm:$0xff]
        %v654 = vld [vmem:[%s315 + $0x810] sm:$0xff]
        %v655 = vld [vmem:[%s315 + $0x818] sm:$0xff]
        %v656 = vld [vmem:[%s315 + $0x820] sm:$0xff]
        %v657 = vld [vmem:[%s315 + $0x828] sm:$0xff]
        %v658 = vld [vmem:[%s315 + $0x830] sm:$0xff]
        %v659 = vld [vmem:[%s315 + $0x838] sm:$0xff]
        %v660 = vld [vmem:[%s315 + $0x840] sm:$0xff]
        %v661 = vld [vmem:[%s315 + $0x848] sm:$0xff]
        %v662 = vld [vmem:[%s315 + $0x850] sm:$0xff]
        %v663 = vld [vmem:[%s315 + $0x858] sm:$0xff]
        %v664 = vld [vmem:[%s315 + $0x860] sm:$0xff]
        %v665 = vld [vmem:[%s315 + $0x868] sm:$0xff]
        %v666 = vld [vmem:[%s315 + $0x870] sm:$0xff]
        %v667 = vld [vmem:[%s315 + $0x878] sm:$0xff]
        %v668 = vld [vmem:[%s315 + $0x880] sm:$0xff]
        %v669 = vld [vmem:[%s315 + $0x888] sm:$0xff]
        %v670 = vld [vmem:[%s315 + $0x890] sm:$0xff]
        %v671 = vld [vmem:[%s315 + $0x898] sm:$0xff]
        %v672 = vld [vmem:[%s315 + $0x8a0] sm:$0xff]
        %v673 = vld [vmem:[%s315 + $0x8a8] sm:$0xff]
        %v674 = vld [vmem:[%s315 + $0x8b0] sm:$0xff]
        %v675 = vld [vmem:[%s315 + $0x8b8] sm:$0xff]
        %v676 = vld [vmem:[%s315 + $0x8c0] sm:$0xff]
        %v677 = vld [vmem:[%s315 + $0x8c8] sm:$0xff]
        %v678 = vld [vmem:[%s315 + $0x8d0] sm:$0xff]
        %v679 = vld [vmem:[%s315 + $0x8d8] sm:$0xff]
        %v680 = vld [vmem:[%s315 + $0x8e0] sm:$0xff]
        %v681 = vld [vmem:[%s315 + $0x8e8] sm:$0xff]
        %v682 = vld [vmem:[%s315 + $0x8f0] sm:$0xff]
        %v683 = vld [vmem:[%s315 + $0x8f8] sm:$0xff]
        %v684 = vld [vmem:[%s315 + $0x900] sm:$0xff]
        %v685 = vld [vmem:[%s315 + $0x908] sm:$0xff]
        %v686 = vld [vmem:[%s315 + $0x910] sm:$0xff]
        %v687 = vld [vmem:[%s315 + $0x918] sm:$0xff]
        %v688 = vld [vmem:[%s315 + $0x920] sm:$0xff]
        %v689 = vld [vmem:[%s315 + $0x928] sm:$0xff]
        %v690 = vld [vmem:[%s315 + $0x930] sm:$0xff]
        %v691 = vld [vmem:[%s315 + $0x938] sm:$0xff]
        %v692 = vld [vmem:[%s315 + $0x940] sm:$0xff]
        %v693 = vld [vmem:[%s315 + $0x948] sm:$0xff]
        %v694 = vld [vmem:[%s315 + $0x950] sm:$0xff]
        %v695 = vld [vmem:[%s315 + $0x958] sm:$0xff]
        %v696 = vld [vmem:[%s315 + $0x960] sm:$0xff]
        %v697 = vld [vmem:[%s315 + $0x968] sm:$0xff]
        %v698 = vld [vmem:[%s315 + $0x970] sm:$0xff]
        %v699 = vld [vmem:[%s315 + $0x978] sm:$0xff]
        %v700 = vld [vmem:[%s315 + $0x980] sm:$0xff]
        %v701 = vld [vmem:[%s315 + $0x988] sm:$0xff]
        %v702 = vld [vmem:[%s315 + $0x990] sm:$0xff]
        %v703 = vld [vmem:[%s315 + $0x998] sm:$0xff]
        %v704 = vld [vmem:[%s315 + $0x9a0] sm:$0xff]
        %v705 = vld [vmem:[%s315 + $0x9a8] sm:$0xff]
        %v706 = vld [vmem:[%s315 + $0x9b0] sm:$0xff]
        %v707 = vld [vmem:[%s315 + $0x9b8] sm:$0xff]
        %v708 = vld [vmem:[%s315 + $0x9c0] sm:$0xff]
        %v709 = vld [vmem:[%s315 + $0x9c8] sm:$0xff]
        %v710 = vld [vmem:[%s315 + $0x9d0] sm:$0xff]
        %v711 = vld [vmem:[%s315 + $0x9d8] sm:$0xff]
        %v712 = vld [vmem:[%s315 + $0x9e0] sm:$0xff]
        %v713 = vld [vmem:[%s315 + $0x9e8] sm:$0xff]
        %v714 = vld [vmem:[%s315 + $0x9f0] sm:$0xff]
        %v715 = vld [vmem:[%s315 + $0x9f8] sm:$0xff]
        %v716 = vld [vmem:[%s315 + $0xa00] sm:$0xff]
        %v717 = vld [vmem:[%s315 + $0xa08] sm:$0xff]
        %v718 = vld [vmem:[%s315 + $0xa10] sm:$0xff]
        %v719 = vld [vmem:[%s315 + $0xa18] sm:$0xff]
        %v720 = vld [vmem:[%s315 + $0xa20] sm:$0xff]
        %v721 = vld [vmem:[%s315 + $0xa28] sm:$0xff]
        %v722 = vld [vmem:[%s315 + $0xa30] sm:$0xff]
        %v723 = vld [vmem:[%s315 + $0xa38] sm:$0xff]
        %v724 = vld [vmem:[%s315 + $0xa40] sm:$0xff]
        %v725 = vld [vmem:[%s315 + $0xa48] sm:$0xff]
        %v726 = vld [vmem:[%s315 + $0xa50] sm:$0xff]
        %v727 = vld [vmem:[%s315 + $0xa58] sm:$0xff]
        %v728 = vld [vmem:[%s315 + $0xa60] sm:$0xff]
        %v729 = vld [vmem:[%s315 + $0xa68] sm:$0xff]
        %v730 = vld [vmem:[%s315 + $0xa70] sm:$0xff]
        %v731 = vld [vmem:[%s315 + $0xa78] sm:$0xff]
        %v732 = vld [vmem:[%s315 + $0xa80] sm:$0xff]
        %v733 = vld [vmem:[%s315 + $0xa88] sm:$0xff]
        %v734 = vld [vmem:[%s315 + $0xa90] sm:$0xff]
        %v735 = vld [vmem:[%s315 + $0xa98] sm:$0xff]
        %v736 = vld [vmem:[%s315 + $0xaa0] sm:$0xff]
        %v737 = vld [vmem:[%s315 + $0xaa8] sm:$0xff]
        %v738 = vld [vmem:[%s315 + $0xab0] sm:$0xff]
        %v739 = vld [vmem:[%s315 + $0xab8] sm:$0xff]
        %v740 = vld [vmem:[%s315 + $0xac0] sm:$0xff]
        %v741 = vld [vmem:[%s315 + $0xac8] sm:$0xff]
        %v742 = vld [vmem:[%s315 + $0xad0] sm:$0xff]
        %v743 = vld [vmem:[%s315 + $0xad8] sm:$0xff]
        %v744 = vld [vmem:[%s315 + $0xae0] sm:$0xff]
        %v745 = vld [vmem:[%s315 + $0xae8] sm:$0xff]
        %v746 = vld [vmem:[%s315 + $0xaf0] sm:$0xff]
        %v747 = vld [vmem:[%s315 + $0xaf8] sm:$0xff]
        %v748 = vld [vmem:[%s315 + $0xb00] sm:$0xff]
        %v749 = vld [vmem:[%s315 + $0xb08] sm:$0xff]
        %v750 = vld [vmem:[%s315 + $0xb10] sm:$0xff]
        %v751 = vld [vmem:[%s315 + $0xb18] sm:$0xff]
        %v752 = vld [vmem:[%s315 + $0xb20] sm:$0xff]
        %v753 = vld [vmem:[%s315 + $0xb28] sm:$0xff]
        %v754 = vld [vmem:[%s315 + $0xb30] sm:$0xff]
        %v755 = vld [vmem:[%s315 + $0xb38] sm:$0xff]
        %v756 = vld [vmem:[%s315 + $0xb40] sm:$0xff]
        %v757 = vld [vmem:[%s315 + $0xb48] sm:$0xff]
        %v758 = vld [vmem:[%s315 + $0xb50] sm:$0xff]
        %v759 = vld [vmem:[%s315 + $0xb58] sm:$0xff]
        %v760 = vld [vmem:[%s315 + $0xb60] sm:$0xff]
        %v761 = vld [vmem:[%s315 + $0xb68] sm:$0xff]
        %v762 = vld [vmem:[%s315 + $0xb70] sm:$0xff]
        %v763 = vld [vmem:[%s315 + $0xb78] sm:$0xff]
        %v764 = vld [vmem:[%s315 + $0xb80] sm:$0xff]
        %v765 = vld [vmem:[%s315 + $0xb88] sm:$0xff]
        %v766 = vld [vmem:[%s315 + $0xb90] sm:$0xff]
        %v767 = vld [vmem:[%s315 + $0xb98] sm:$0xff]
        %v768 = vld [vmem:[%s315 + $0xba0] sm:$0xff]
        %v769 = vld [vmem:[%s315 + $0xba8] sm:$0xff]
        %v770 = vld [vmem:[%s315 + $0xbb0] sm:$0xff]
        %v771 = vld [vmem:[%s315 + $0xbb8] sm:$0xff]
        %v772 = vld [vmem:[%s315 + $0xbc0] sm:$0xff]
        %v773 = vld [vmem:[%s315 + $0xbc8] sm:$0xff]
        %v774 = vld [vmem:[%s315 + $0xbd0] sm:$0xff]
        %v775 = vld [vmem:[%s315 + $0xbd8] sm:$0xff]
        %v776 = vld [vmem:[%s315 + $0xbe0] sm:$0xff]
        %v777 = vld [vmem:[%s315 + $0xbe8] sm:$0xff]
        %v778 = vld [vmem:[%s315 + $0xbf0] sm:$0xff]
        %v779 = vld [vmem:[%s315 + $0xbf8] sm:$0xff]
        %v780 = vld [vmem:[%s315 + $0xc00] sm:$0xff]
        %v781 = vld [vmem:[%s315 + $0xc08] sm:$0xff]
        %v782 = vld [vmem:[%s315 + $0xc10] sm:$0xff]
        %v783 = vld [vmem:[%s315 + $0xc18] sm:$0xff]
        %v784 = vld [vmem:[%s315 + $0xc20] sm:$0xff]
        %v785 = vld [vmem:[%s315 + $0xc28] sm:$0xff]
        %v786 = vld [vmem:[%s315 + $0xc30] sm:$0xff]
        %v787 = vld [vmem:[%s315 + $0xc38] sm:$0xff]
        %v788 = vld [vmem:[%s315 + $0xc40] sm:$0xff]
        %v789 = vld [vmem:[%s315 + $0xc48] sm:$0xff]
        %v790 = vld [vmem:[%s315 + $0xc50] sm:$0xff]
        %v791 = vld [vmem:[%s315 + $0xc58] sm:$0xff]
        %v792 = vld [vmem:[%s315 + $0xc60] sm:$0xff]
        %v793 = vld [vmem:[%s315 + $0xc68] sm:$0xff]
        %v794 = vld [vmem:[%s315 + $0xc70] sm:$0xff]
        %v795 = vld [vmem:[%s315 + $0xc78] sm:$0xff]
        %v796 = vld [vmem:[%s315 + $0xc80] sm:$0xff]
        %v797 = vld [vmem:[%s315 + $0xc88] sm:$0xff]
        %v798 = vld [vmem:[%s315 + $0xc90] sm:$0xff]
        %v799 = vld [vmem:[%s315 + $0xc98] sm:$0xff]
        %v800 = vld [vmem:[%s315 + $0xca0] sm:$0xff]
        %v801 = vld [vmem:[%s315 + $0xca8] sm:$0xff]
        %v802 = vld [vmem:[%s315 + $0xcb0] sm:$0xff]
        %v803 = vld [vmem:[%s315 + $0xcb8] sm:$0xff]
        %v804 = vld [vmem:[%s315 + $0xcc0] sm:$0xff]
        %v805 = vld [vmem:[%s315 + $0xcc8] sm:$0xff]
        %v806 = vld [vmem:[%s315 + $0xcd0] sm:$0xff]
        %v807 = vld [vmem:[%s315 + $0xcd8] sm:$0xff]
        %v808 = vld [vmem:[%s315 + $0xce0] sm:$0xff]
        %v809 = vld [vmem:[%s315 + $0xce8] sm:$0xff]
        %v810 = vld [vmem:[%s315 + $0xcf0] sm:$0xff]
        %v811 = vld [vmem:[%s315 + $0xcf8] sm:$0xff]
        %v812 = vld [vmem:[%s315 + $0xd00] sm:$0xff]
        %v813 = vld [vmem:[%s315 + $0xd08] sm:$0xff]
        %v814 = vld [vmem:[%s315 + $0xd10] sm:$0xff]
        %v815 = vld [vmem:[%s315 + $0xd18] sm:$0xff]
        %v816 = vld [vmem:[%s315 + $0xd20] sm:$0xff]
        %v817 = vld [vmem:[%s315 + $0xd28] sm:$0xff]
        %v818 = vld [vmem:[%s315 + $0xd30] sm:$0xff]
        %v819 = vld [vmem:[%s315 + $0xd38] sm:$0xff]
        %v820 = vld [vmem:[%s315 + $0xd40] sm:$0xff]
        %v821 = vld [vmem:[%s315 + $0xd48] sm:$0xff]
        %v822 = vld [vmem:[%s315 + $0xd50] sm:$0xff]
        %v823 = vld [vmem:[%s315 + $0xd58] sm:$0xff]
        %v824 = vld [vmem:[%s315 + $0xd60] sm:$0xff]
        %v825 = vld [vmem:[%s315 + $0xd68] sm:$0xff]
        %v826 = vld [vmem:[%s315 + $0xd70] sm:$0xff]
        %v827 = vld [vmem:[%s315 + $0xd78] sm:$0xff]
        %v828 = vld [vmem:[%s315 + $0xd80] sm:$0xff]
        %v829 = vld [vmem:[%s315 + $0xd88] sm:$0xff]
        %v830 = vld [vmem:[%s315 + $0xd90] sm:$0xff]
        %v831 = vld [vmem:[%s315 + $0xd98] sm:$0xff]
        %v832 = vld [vmem:[%s315 + $0xda0] sm:$0xff]
        %v833 = vld [vmem:[%s315 + $0xda8] sm:$0xff]
        %v834 = vld [vmem:[%s315 + $0xdb0] sm:$0xff]
        %v835 = vld [vmem:[%s315 + $0xdb8] sm:$0xff]
        %v836 = vld [vmem:[%s315 + $0xdc0] sm:$0xff]
        %v837 = vld [vmem:[%s315 + $0xdc8] sm:$0xff]
        %v838 = vld [vmem:[%s315 + $0xdd0] sm:$0xff]
        %v839 = vld [vmem:[%s315 + $0xdd8] sm:$0xff]
        %v840 = vld [vmem:[%s315 + $0xde0] sm:$0xff]
        %v841 = vld [vmem:[%s315 + $0xde8] sm:$0xff]
        %v842 = vld [vmem:[%s315 + $0xdf0] sm:$0xff]
        %v843 = vld [vmem:[%s315 + $0xdf8] sm:$0xff]
        %v844 = vld [vmem:[%s315 + $0xe00] sm:$0xff]
        %v845 = vld [vmem:[%s315 + $0xe08] sm:$0xff]
        %v846 = vld [vmem:[%s315 + $0xe10] sm:$0xff]
        %v847 = vld [vmem:[%s315 + $0xe18] sm:$0xff]
        %v848 = vld [vmem:[%s315 + $0xe20] sm:$0xff]
        %v849 = vld [vmem:[%s315 + $0xe28] sm:$0xff]
        %v850 = vld [vmem:[%s315 + $0xe30] sm:$0xff]
        %v851 = vld [vmem:[%s315 + $0xe38] sm:$0xff]
        %v852 = vld [vmem:[%s315 + $0xe40] sm:$0xff]
        %v853 = vld [vmem:[%s315 + $0xe48] sm:$0xff]
        %v854 = vld [vmem:[%s315 + $0xe50] sm:$0xff]
        %v855 = vld [vmem:[%s315 + $0xe58] sm:$0xff]
        %v856 = vld [vmem:[%s315 + $0xe60] sm:$0xff]
        %v857 = vld [vmem:[%s315 + $0xe68] sm:$0xff]
        %v858 = vld [vmem:[%s315 + $0xe70] sm:$0xff]
        %v859 = vld [vmem:[%s315 + $0xe78] sm:$0xff]
        %v860 = vld [vmem:[%s315 + $0xe80] sm:$0xff]
        %v861 = vld [vmem:[%s315 + $0xe88] sm:$0xff]
        %v862 = vld [vmem:[%s315 + $0xe90] sm:$0xff]
        %v863 = vld [vmem:[%s315 + $0xe98] sm:$0xff]
        %v864 = vld [vmem:[%s315 + $0xea0] sm:$0xff]
        %v865 = vld [vmem:[%s315 + $0xea8] sm:$0xff]
        %v866 = vld [vmem:[%s315 + $0xeb0] sm:$0xff]
        %v867 = vld [vmem:[%s315 + $0xeb8] sm:$0xff]
        %v868 = vld [vmem:[%s315 + $0xec0] sm:$0xff]
        %v869 = vld [vmem:[%s315 + $0xec8] sm:$0xff]
        %v870 = vld [vmem:[%s315 + $0xed0] sm:$0xff]
        %v871 = vld [vmem:[%s315 + $0xed8] sm:$0xff]
        %v872 = vld [vmem:[%s315 + $0xee0] sm:$0xff]
        %v873 = vld [vmem:[%s315 + $0xee8] sm:$0xff]
        %v874 = vld [vmem:[%s315 + $0xef0] sm:$0xff]
        %v875 = vld [vmem:[%s315 + $0xef8] sm:$0xff]
        %v876 = vld [vmem:[%s315 + $0xf00] sm:$0xff]
        %v877 = vld [vmem:[%s315 + $0xf08] sm:$0xff]
        %v878 = vld [vmem:[%s315 + $0xf10] sm:$0xff]
        %v879 = vld [vmem:[%s315 + $0xf18] sm:$0xff]
        %v880 = vld [vmem:[%s315 + $0xf20] sm:$0xff]
        %v881 = vld [vmem:[%s315 + $0xf28] sm:$0xff]
        %v882 = vld [vmem:[%s315 + $0xf30] sm:$0xff]
        %v883 = vld [vmem:[%s315 + $0xf38] sm:$0xff]
        %v884 = vld [vmem:[%s315 + $0xf40] sm:$0xff]
        %v885 = vld [vmem:[%s315 + $0xf48] sm:$0xff]
        %v886 = vld [vmem:[%s315 + $0xf50] sm:$0xff]
        %v887 = vld [vmem:[%s315 + $0xf58] sm:$0xff]
        %v888 = vld [vmem:[%s315 + $0xf60] sm:$0xff]
        %v889 = vld [vmem:[%s315 + $0xf68] sm:$0xff]
        %v890 = vld [vmem:[%s315 + $0xf70] sm:$0xff]
        %v891 = vld [vmem:[%s315 + $0xf78] sm:$0xff]
        %v892 = vld [vmem:[%s315 + $0xf80] sm:$0xff]
        %v893 = vld [vmem:[%s315 + $0xf88] sm:$0xff]
        %v894 = vld [vmem:[%s315 + $0xf90] sm:$0xff]
        %v895 = vld [vmem:[%s315 + $0xf98] sm:$0xff]
        %v896 = vld [vmem:[%s315 + $0xfa0] sm:$0xff]
        %v897 = vld [vmem:[%s315 + $0xfa8] sm:$0xff]
        %v898 = vld [vmem:[%s315 + $0xfb0] sm:$0xff]
        %v899 = vld [vmem:[%s315 + $0xfb8] sm:$0xff]
        %v900 = vld [vmem:[%s315 + $0xfc0] sm:$0xff]
        %v901 = vld [vmem:[%s315 + $0xfc8] sm:$0xff]
        %v902 = vld [vmem:[%s315 + $0xfd0] sm:$0xff]
        %v903 = vld [vmem:[%s315 + $0xfd8] sm:$0xff]
        %v904 = vld [vmem:[%s315 + $0xfe0] sm:$0xff]
        %v905 = vld [vmem:[%s315 + $0xfe8] sm:$0xff]
        %v906 = vld [vmem:[%s315 + $0xff0] sm:$0xff]
        %v907 = vld [vmem:[%s315 + $0xff8] sm:$0xff]
        %v908 = vld [vmem:[%s315 + $0x1000] sm:$0xff]
        %v909 = vld [vmem:[%s315 + $0x1008] sm:$0xff]
        %v910 = vld [vmem:[%s315 + $0x1010] sm:$0xff]
        %v911 = vld [vmem:[%s315 + $0x1018] sm:$0xff]
        %v912 = vld [vmem:[%s315 + $0x1020] sm:$0xff]
        %v913 = vld [vmem:[%s315 + $0x1028] sm:$0xff]
        %v914 = vld [vmem:[%s315 + $0x1030] sm:$0xff]
        %v915 = vld [vmem:[%s315 + $0x1038] sm:$0xff]
        %v916 = vld [vmem:[%s315 + $0x1040] sm:$0xff]
        %v917 = vld [vmem:[%s315 + $0x1048] sm:$0xff]
        %v918 = vld [vmem:[%s315 + $0x1050] sm:$0xff]
        %v919 = vld [vmem:[%s315 + $0x1058] sm:$0xff]
        %v920 = vld [vmem:[%s315 + $0x1060] sm:$0xff]
        %v921 = vld [vmem:[%s315 + $0x1068] sm:$0xff]
        %v922 = vld [vmem:[%s315 + $0x1070] sm:$0xff]
        %v923 = vld [vmem:[%s315 + $0x1078] sm:$0xff]
        %v924 = vld [vmem:[%s315 + $0x1080] sm:$0xff]
        %v925 = vld [vmem:[%s315 + $0x1088] sm:$0xff]
        %v926 = vld [vmem:[%s315 + $0x1090] sm:$0xff]
        %v927 = vld [vmem:[%s315 + $0x1098] sm:$0xff]
        %v928 = vld [vmem:[%s315 + $0x10a0] sm:$0xff]
        %v929 = vld [vmem:[%s315 + $0x10a8] sm:$0xff]
        %v930 = vld [vmem:[%s315 + $0x10b0] sm:$0xff]
        %v931 = vld [vmem:[%s315 + $0x10b8] sm:$0xff]
        %v932 = vld [vmem:[%s315 + $0x10c0] sm:$0xff]
        %v933 = vld [vmem:[%s315 + $0x10c8] sm:$0xff]
        %v934 = vld [vmem:[%s315 + $0x10d0] sm:$0xff]
        %v935 = vld [vmem:[%s315 + $0x10d8] sm:$0xff]
        %v936 = vld [vmem:[%s315 + $0x10e0] sm:$0xff]
        %v937 = vld [vmem:[%s315 + $0x10e8] sm:$0xff]
        %v938 = vld [vmem:[%s315 + $0x10f0] sm:$0xff]
        %v939 = vld [vmem:[%s315 + $0x10f8] sm:$0xff]
        %v940 = vld [vmem:[%s315 + $0x1100] sm:$0xff]
        %v941 = vld [vmem:[%s315 + $0x1108] sm:$0xff]
        %v942 = vld [vmem:[%s315 + $0x1110] sm:$0xff]
        %v943 = vld [vmem:[%s315 + $0x1118] sm:$0xff]
        %v944 = vld [vmem:[%s315 + $0x1120] sm:$0xff]
        %v945 = vld [vmem:[%s315 + $0x1128] sm:$0xff]
        %v946 = vld [vmem:[%s315 + $0x1130] sm:$0xff]
        %v947 = vld [vmem:[%s315 + $0x1138] sm:$0xff]
        %v948 = vld [vmem:[%s315 + $0x1140] sm:$0xff]
        %v949 = vld [vmem:[%s315 + $0x1148] sm:$0xff]
        %v950 = vld [vmem:[%s315 + $0x1150] sm:$0xff]
        %v951 = vld [vmem:[%s315 + $0x1158] sm:$0xff]
        %v952 = vld [vmem:[%s315 + $0x1160] sm:$0xff]
        %v953 = vld [vmem:[%s315 + $0x1168] sm:$0xff]
        %v954 = vld [vmem:[%s315 + $0x1170] sm:$0xff]
        %v955 = vld [vmem:[%s315 + $0x1178] sm:$0xff]
        %v956 = vld [vmem:[%s315 + $0x1180] sm:$0xff]
        %v957 = vld [vmem:[%s315 + $0x1188] sm:$0xff]
        %v958 = vld [vmem:[%s315 + $0x1190] sm:$0xff]
        %v959 = vld [vmem:[%s315 + $0x1198] sm:$0xff]
        %v960 = vld [vmem:[%s315 + $0x11a0] sm:$0xff]
        %v961 = vld [vmem:[%s315 + $0x11a8] sm:$0xff]
        %v962 = vld [vmem:[%s315 + $0x11b0] sm:$0xff]
        %v963 = vld [vmem:[%s315 + $0x11b8] sm:$0xff]
        %v964 = vld [vmem:[%s315 + $0x11c0] sm:$0xff]
        %v965 = vld [vmem:[%s315 + $0x11c8] sm:$0xff]
        %v966 = vld [vmem:[%s315 + $0x11d0] sm:$0xff]
        %v967 = vld [vmem:[%s315 + $0x11d8] sm:$0xff]
        %v968 = vld [vmem:[%s315 + $0x11e0] sm:$0xff]
        %v969 = vld [vmem:[%s315 + $0x11e8] sm:$0xff]
        %v970 = vld [vmem:[%s315 + $0x11f0] sm:$0xff]
        %v971 = vld [vmem:[%s315 + $0x11f8] sm:$0xff]
        %v972 = vld [vmem:[%s315 + $0x1200] sm:$0xff]
        %v973 = vld [vmem:[%s315 + $0x1208] sm:$0xff]
        %v974 = vld [vmem:[%s315 + $0x1210] sm:$0xff]
        %v975 = vld [vmem:[%s315 + $0x1218] sm:$0xff]
        %v976 = vld [vmem:[%s315 + $0x1220] sm:$0xff]
        %v977 = vld [vmem:[%s315 + $0x1228] sm:$0xff]
        %v978 = vld [vmem:[%s315 + $0x1230] sm:$0xff]
        %v979 = vld [vmem:[%s315 + $0x1238] sm:$0xff]
        %v980 = vld [vmem:[%s315 + $0x1240] sm:$0xff]
        %v981 = vld [vmem:[%s315 + $0x1248] sm:$0xff]
        %v982 = vld [vmem:[%s315 + $0x1250] sm:$0xff]
        %v983 = vld [vmem:[%s315 + $0x1258] sm:$0xff]
        %v984 = vld [vmem:[%s315 + $0x1260] sm:$0xff]
        %v985 = vld [vmem:[%s315 + $0x1268] sm:$0xff]
        %v986 = vld [vmem:[%s315 + $0x1270] sm:$0xff]
        %v987 = vld [vmem:[%s315 + $0x1278] sm:$0xff]
        %v988 = vld [vmem:[%s315 + $0x1280] sm:$0xff]
        %v989 = vld [vmem:[%s315 + $0x1288] sm:$0xff]
        %v990 = vld [vmem:[%s315 + $0x1290] sm:$0xff]
        %v991 = vld [vmem:[%s315 + $0x1298] sm:$0xff]
        %v992 = vld [vmem:[%s315 + $0x12a0] sm:$0xff]
        %v993 = vld [vmem:[%s315 + $0x12a8] sm:$0xff]
        %v994 = vld [vmem:[%s315 + $0x12b0] sm:$0xff]
        %v995 = vld [vmem:[%s315 + $0x12b8] sm:$0xff]
        %v996 = vld [vmem:[%s315 + $0x12c0] sm:$0xff]
        %v997 = vld [vmem:[%s315 + $0x12c8] sm:$0xff]
        %v998 = vld [vmem:[%s315 + $0x12d0] sm:$0xff]
        %v999 = vld [vmem:[%s315 + $0x12d8] sm:$0xff]
        %v1000 = vld [vmem:[%s315 + $0x12e0] sm:$0xff]
        %v1001 = vld [vmem:[%s315 + $0x12e8] sm:$0xff]
        %v1002 = vld [vmem:[%s315 + $0x12f0] sm:$0xff]
        %v1003 = vld [vmem:[%s315 + $0x12f8] sm:$0xff]
        %v1004 = vld [vmem:[%s315 + $0x1300] sm:$0xff]
        %v1005 = vld [vmem:[%s315 + $0x1308] sm:$0xff]
        %v1006 = vld [vmem:[%s315 + $0x1310] sm:$0xff]
        %v1007 = vld [vmem:[%s315 + $0x1318] sm:$0xff]
        %v1008 = vld [vmem:[%s315 + $0x1320] sm:$0xff]
        %v1009 = vld [vmem:[%s315 + $0x1328] sm:$0xff]
        %v1010 = vld [vmem:[%s315 + $0x1330] sm:$0xff]
        %v1011 = vld [vmem:[%s315 + $0x1338] sm:$0xff]
        %v1012 = vld [vmem:[%s315 + $0x1340] sm:$0xff]
        %v1013 = vld [vmem:[%s315 + $0x1348] sm:$0xff]
        %v1014 = vld [vmem:[%s315 + $0x1350] sm:$0xff]
        %v1015 = vld [vmem:[%s315 + $0x1358] sm:$0xff]
        %v1016 = vld [vmem:[%s315 + $0x1360] sm:$0xff]
        %v1017 = vld [vmem:[%s315 + $0x1368] sm:$0xff]
        %v1018 = vld [vmem:[%s315 + $0x1370] sm:$0xff]
        %v1019 = vld [vmem:[%s315 + $0x1378] sm:$0xff]
        %v1020 = vld [vmem:[%s315 + $0x1380] sm:$0xff]
        %v1021 = vld [vmem:[%s315 + $0x1388] sm:$0xff]
        %v1022 = vld [vmem:[%s315 + $0x1390] sm:$0xff]
        %v1023 = vld [vmem:[%s315 + $0x1398] sm:$0xff]
        %v1024 = vld [vmem:[%s315 + $0x13a0] sm:$0xff]
        %v1025 = vld [vmem:[%s315 + $0x13a8] sm:$0xff]
        %v1026 = vld [vmem:[%s315 + $0x13b0] sm:$0xff]
        %v1027 = vld [vmem:[%s315 + $0x13b8] sm:$0xff]
        %v1028 = vld [vmem:[%s315 + $0x13c0] sm:$0xff]
        %v1029 = vld [vmem:[%s315 + $0x13c8] sm:$0xff]
        %v1030 = vld [vmem:[%s315 + $0x13d0] sm:$0xff]
        %v1031 = vld [vmem:[%s315 + $0x13d8] sm:$0xff]
        %v1032 = vld [vmem:[%s315 + $0x13e0] sm:$0xff]
        %v1033 = vld [vmem:[%s315 + $0x13e8] sm:$0xff]
        %v1034 = vld [vmem:[%s315 + $0x13f0] sm:$0xff]
        %v1035 = vld [vmem:[%s315 + $0x13f8] sm:$0xff]
        %v1036 = vld [vmem:[%s315 + $0x1400] sm:$0xff]
        %v1037 = vld [vmem:[%s315 + $0x1408] sm:$0xff]
        %v1038 = vld [vmem:[%s315 + $0x1410] sm:$0xff]
        %v1039 = vld [vmem:[%s315 + $0x1418] sm:$0xff]
        %v1040 = vld [vmem:[%s315 + $0x1420] sm:$0xff]
        %v1041 = vld [vmem:[%s315 + $0x1428] sm:$0xff]
        %v1042 = vld [vmem:[%s315 + $0x1430] sm:$0xff]
        %v1043 = vld [vmem:[%s315 + $0x1438] sm:$0xff]
        %v1044 = vld [vmem:[%s315 + $0x1440] sm:$0xff]
        %v1045 = vld [vmem:[%s315 + $0x1448] sm:$0xff]
        %v1046 = vld [vmem:[%s315 + $0x1450] sm:$0xff]
        %v1047 = vld [vmem:[%s315 + $0x1458] sm:$0xff]
        %v1048 = vld [vmem:[%s315 + $0x1460] sm:$0xff]
        %v1049 = vld [vmem:[%s315 + $0x1468] sm:$0xff]
        %v1050 = vld [vmem:[%s315 + $0x1470] sm:$0xff]
        %v1051 = vld [vmem:[%s315 + $0x1478] sm:$0xff]
        %v1052 = vld [vmem:[%s315 + $0x1480] sm:$0xff]
        %v1053 = vld [vmem:[%s315 + $0x1488] sm:$0xff]
        %v1054 = vld [vmem:[%s315 + $0x1490] sm:$0xff]
        %v1055 = vld [vmem:[%s315 + $0x1498] sm:$0xff]
        %v1056 = vld [vmem:[%s315 + $0x14a0] sm:$0xff]
        %v1057 = vld [vmem:[%s315 + $0x14a8] sm:$0xff]
        %v1058 = vld [vmem:[%s315 + $0x14b0] sm:$0xff]
        %v1059 = vld [vmem:[%s315 + $0x14b8] sm:$0xff]
        %v1060 = vld [vmem:[%s315 + $0x14c0] sm:$0xff]
        %v1061 = vld [vmem:[%s315 + $0x14c8] sm:$0xff]
        %v1062 = vld [vmem:[%s315 + $0x14d0] sm:$0xff]
        %v1063 = vld [vmem:[%s315 + $0x14d8] sm:$0xff]
        %v1064 = vld [vmem:[%s315 + $0x14e0] sm:$0xff]
        %v1065 = vld [vmem:[%s315 + $0x14e8] sm:$0xff]
        %v1066 = vld [vmem:[%s315 + $0x14f0] sm:$0xff]
        %v1067 = vld [vmem:[%s315 + $0x14f8] sm:$0xff]
        %v1068 = vld [vmem:[%s315 + $0x1500] sm:$0xff]
        %v1069 = vld [vmem:[%s315 + $0x1508] sm:$0xff]
        %v1070 = vld [vmem:[%s315 + $0x1510] sm:$0xff]
        %v1071 = vld [vmem:[%s315 + $0x1518] sm:$0xff]
        %v1072 = vld [vmem:[%s315 + $0x1520] sm:$0xff]
        %v1073 = vld [vmem:[%s315 + $0x1528] sm:$0xff]
        %v1074 = vld [vmem:[%s315 + $0x1530] sm:$0xff]
        %v1075 = vld [vmem:[%s315 + $0x1538] sm:$0xff]
        %v1076 = vld [vmem:[%s315 + $0x1540] sm:$0xff]
        %v1077 = vld [vmem:[%s315 + $0x1548] sm:$0xff]
        %v1078 = vld [vmem:[%s315 + $0x1550] sm:$0xff]
        %v1079 = vld [vmem:[%s315 + $0x1558] sm:$0xff]
        %v1080 = vld [vmem:[%s315 + $0x1560] sm:$0xff]
        %v1081 = vld [vmem:[%s315 + $0x1568] sm:$0xff]
        %v1082 = vld [vmem:[%s315 + $0x1570] sm:$0xff]
        %v1083 = vld [vmem:[%s315 + $0x1578] sm:$0xff]
        %v1084 = vld [vmem:[%s315 + $0x1580] sm:$0xff]
        %v1085 = vld [vmem:[%s315 + $0x1588] sm:$0xff]
        %v1086 = vld [vmem:[%s315 + $0x1590] sm:$0xff]
        %v1087 = vld [vmem:[%s315 + $0x1598] sm:$0xff]
        %v1088 = vld [vmem:[%s315 + $0x15a0] sm:$0xff]
        %v1089 = vld [vmem:[%s315 + $0x15a8] sm:$0xff]
        %v1090 = vld [vmem:[%s315 + $0x15b0] sm:$0xff]
        %v1091 = vld [vmem:[%s315 + $0x15b8] sm:$0xff]
        %v1092 = vld [vmem:[%s315 + $0x15c0] sm:$0xff]
        %v1093 = vld [vmem:[%s315 + $0x15c8] sm:$0xff]
        %v1094 = vld [vmem:[%s315 + $0x15d0] sm:$0xff]
        %v1095 = vld [vmem:[%s315 + $0x15d8] sm:$0xff]
        %v1096 = vld [vmem:[%s315 + $0x15e0] sm:$0xff]
        %v1097 = vld [vmem:[%s315 + $0x15e8] sm:$0xff]
        %v1098 = vld [vmem:[%s315 + $0x15f0] sm:$0xff]
        %v1099 = vld [vmem:[%s315 + $0x15f8] sm:$0xff]
        %v1100 = vld [vmem:[%s315 + $0x1600] sm:$0xff]
        %v1101 = vld [vmem:[%s315 + $0x1608] sm:$0xff]
        %v1102 = vld [vmem:[%s315 + $0x1610] sm:$0xff]
        %v1103 = vld [vmem:[%s315 + $0x1618] sm:$0xff]
        %v1104 = vld [vmem:[%s315 + $0x1620] sm:$0xff]
        %v1105 = vld [vmem:[%s315 + $0x1628] sm:$0xff]
        %v1106 = vld [vmem:[%s315 + $0x1630] sm:$0xff]
        %v1107 = vld [vmem:[%s315 + $0x1638] sm:$0xff]
        %v1108 = vld [vmem:[%s315 + $0x1640] sm:$0xff]
        %v1109 = vld [vmem:[%s315 + $0x1648] sm:$0xff]
        %v1110 = vld [vmem:[%s315 + $0x1650] sm:$0xff]
        %v1111 = vld [vmem:[%s315 + $0x1658] sm:$0xff]
        %v1112 = vld [vmem:[%s315 + $0x1660] sm:$0xff]
        %v1113 = vld [vmem:[%s315 + $0x1668] sm:$0xff]
        %v1114 = vld [vmem:[%s315 + $0x1670] sm:$0xff]
        %v1115 = vld [vmem:[%s315 + $0x1678] sm:$0xff]
        %v1116 = vld [vmem:[%s315 + $0x1680] sm:$0xff]
        %v1117 = vld [vmem:[%s315 + $0x1688] sm:$0xff]
        %v1118 = vld [vmem:[%s315 + $0x1690] sm:$0xff]
        %v1119 = vld [vmem:[%s315 + $0x1698] sm:$0xff]
        %v1120 = vld [vmem:[%s315 + $0x16a0] sm:$0xff]
        %v1121 = vld [vmem:[%s315 + $0x16a8] sm:$0xff]
        %v1122 = vld [vmem:[%s315 + $0x16b0] sm:$0xff]
        %v1123 = vld [vmem:[%s315 + $0x16b8] sm:$0xff]
        %v1124 = vld [vmem:[%s315 + $0x16c0] sm:$0xff]
        %v1125 = vld [vmem:[%s315 + $0x16c8] sm:$0xff]
        %v1126 = vld [vmem:[%s315 + $0x16d0] sm:$0xff]
        %v1127 = vld [vmem:[%s315 + $0x16d8] sm:$0xff]
        %v1128 = vld [vmem:[%s315 + $0x16e0] sm:$0xff]
        %v1129 = vld [vmem:[%s315 + $0x16e8] sm:$0xff]
        %v1130 = vld [vmem:[%s315 + $0x16f0] sm:$0xff]
        %v1131 = vld [vmem:[%s315 + $0x16f8] sm:$0xff]
        %v1132 = vld [vmem:[%s315 + $0x1700] sm:$0xff]
        %v1133 = vld [vmem:[%s315 + $0x1708] sm:$0xff]
        %v1134 = vld [vmem:[%s315 + $0x1710] sm:$0xff]
        %v1135 = vld [vmem:[%s315 + $0x1718] sm:$0xff]
        %v1136 = vld [vmem:[%s315 + $0x1720] sm:$0xff]
        %v1137 = vld [vmem:[%s315 + $0x1728] sm:$0xff]
        %v1138 = vld [vmem:[%s315 + $0x1730] sm:$0xff]
        %v1139 = vld [vmem:[%s315 + $0x1738] sm:$0xff]
        %v1140 = vld [vmem:[%s315 + $0x1740] sm:$0xff]
        %v1141 = vld [vmem:[%s315 + $0x1748] sm:$0xff]
        %v1142 = vld [vmem:[%s315 + $0x1750] sm:$0xff]
        %v1143 = vld [vmem:[%s315 + $0x1758] sm:$0xff]
        %v1144 = vld [vmem:[%s315 + $0x1760] sm:$0xff]
        %v1145 = vld [vmem:[%s315 + $0x1768] sm:$0xff]
        %v1146 = vld [vmem:[%s315 + $0x1770] sm:$0xff]
        %v1147 = vld [vmem:[%s315 + $0x1778] sm:$0xff]
        %v1148 = vld [vmem:[%s315 + $0x1780] sm:$0xff]
        %v1149 = vld [vmem:[%s315 + $0x1788] sm:$0xff]
        %v1150 = vld [vmem:[%s315 + $0x1790] sm:$0xff]
        %v1151 = vld [vmem:[%s315 + $0x1798] sm:$0xff]
        %v1152 = vld [vmem:[%s315 + $0x17a0] sm:$0xff]
        %v1153 = vld [vmem:[%s315 + $0x17a8] sm:$0xff]
        %v1154 = vld [vmem:[%s315 + $0x17b0] sm:$0xff]
        %v1155 = vld [vmem:[%s315 + $0x17b8] sm:$0xff]
        %v1156 = vld [vmem:[%s315 + $0x17c0] sm:$0xff]
        %v1157 = vld [vmem:[%s315 + $0x17c8] sm:$0xff]
        %v1158 = vld [vmem:[%s315 + $0x17d0] sm:$0xff]
        %v1159 = vld [vmem:[%s315 + $0x17d8] sm:$0xff]
        %v1160 = vld [vmem:[%s315 + $0x17e0] sm:$0xff]
        %v1161 = vld [vmem:[%s315 + $0x17e8] sm:$0xff]
        %v1162 = vld [vmem:[%s315 + $0x17f0] sm:$0xff]
        %v1163 = vld [vmem:[%s315 + $0x17f8] sm:$0xff]
        %v1164 = vld [vmem:[%s315 + $0x1800] sm:$0xff]
        %v1165 = vld [vmem:[%s315 + $0x1808] sm:$0xff]
        %v1166 = vld [vmem:[%s315 + $0x1810] sm:$0xff]
        %v1167 = vld [vmem:[%s315 + $0x1818] sm:$0xff]
        %v1168 = vld [vmem:[%s315 + $0x1820] sm:$0xff]
        %v1169 = vld [vmem:[%s315 + $0x1828] sm:$0xff]
        %v1170 = vld [vmem:[%s315 + $0x1830] sm:$0xff]
        %v1171 = vld [vmem:[%s315 + $0x1838] sm:$0xff]
        %v1172 = vld [vmem:[%s315 + $0x1840] sm:$0xff]
        %v1173 = vld [vmem:[%s315 + $0x1848] sm:$0xff]
        %v1174 = vld [vmem:[%s315 + $0x1850] sm:$0xff]
        %v1175 = vld [vmem:[%s315 + $0x1858] sm:$0xff]
        %v1176 = vld [vmem:[%s315 + $0x1860] sm:$0xff]
        %v1177 = vld [vmem:[%s315 + $0x1868] sm:$0xff]
        %v1178 = vld [vmem:[%s315 + $0x1870] sm:$0xff]
        %v1179 = vld [vmem:[%s315 + $0x1878] sm:$0xff]
        %v1180 = vld [vmem:[%s315 + $0x1880] sm:$0xff]
        %v1181 = vld [vmem:[%s315 + $0x1888] sm:$0xff]
        %v1182 = vld [vmem:[%s315 + $0x1890] sm:$0xff]
        %v1183 = vld [vmem:[%s315 + $0x1898] sm:$0xff]
        %v1184 = vld [vmem:[%s315 + $0x18a0] sm:$0xff]
        %v1185 = vld [vmem:[%s315 + $0x18a8] sm:$0xff]
        %v1186 = vld [vmem:[%s315 + $0x18b0] sm:$0xff]
        %v1187 = vld [vmem:[%s315 + $0x18b8] sm:$0xff]
        %v1188 = vld [vmem:[%s315 + $0x18c0] sm:$0xff]
        %v1189 = vld [vmem:[%s315 + $0x18c8] sm:$0xff]
        %v1190 = vld [vmem:[%s315 + $0x18d0] sm:$0xff]
        %v1191 = vld [vmem:[%s315 + $0x18d8] sm:$0xff]
        %v1192 = vld [vmem:[%s315 + $0x18e0] sm:$0xff]
        %v1193 = vld [vmem:[%s315 + $0x18e8] sm:$0xff]
        %v1194 = vld [vmem:[%s315 + $0x18f0] sm:$0xff]
        %v1195 = vld [vmem:[%s315 + $0x18f8] sm:$0xff]
        %v1196 = vld [vmem:[%s315 + $0x1900] sm:$0xff]
        %v1197 = vld [vmem:[%s315 + $0x1908] sm:$0xff]
        %v1198 = vld [vmem:[%s315 + $0x1910] sm:$0xff]
        %v1199 = vld [vmem:[%s315 + $0x1918] sm:$0xff]
        %v1200 = vld [vmem:[%s315 + $0x1920] sm:$0xff]
        %v1201 = vld [vmem:[%s315 + $0x1928] sm:$0xff]
        %v1202 = vld [vmem:[%s315 + $0x1930] sm:$0xff]
        %v1203 = vld [vmem:[%s315 + $0x1938] sm:$0xff]
        %v1204 = vld [vmem:[%s315 + $0x1940] sm:$0xff]
        %v1205 = vld [vmem:[%s315 + $0x1948] sm:$0xff]
        %v1206 = vld [vmem:[%s315 + $0x1950] sm:$0xff]
        %v1207 = vld [vmem:[%s315 + $0x1958] sm:$0xff]
        %v1208 = vld [vmem:[%s315 + $0x1960] sm:$0xff]
        %v1209 = vld [vmem:[%s315 + $0x1968] sm:$0xff]
        %v1210 = vld [vmem:[%s315 + $0x1970] sm:$0xff]
        %v1211 = vld [vmem:[%s315 + $0x1978] sm:$0xff]
        %v1212 = vld [vmem:[%s315 + $0x1980] sm:$0xff]
        %v1213 = vld [vmem:[%s315 + $0x1988] sm:$0xff]
        %v1214 = vld [vmem:[%s315 + $0x1990] sm:$0xff]
        %v1215 = vld [vmem:[%s315 + $0x1998] sm:$0xff]
        %v1216 = vld [vmem:[%s315 + $0x19a0] sm:$0xff]
        %v1217 = vld [vmem:[%s315 + $0x19a8] sm:$0xff]
        %v1218 = vld [vmem:[%s315 + $0x19b0] sm:$0xff]
        %v1219 = vld [vmem:[%s315 + $0x19b8] sm:$0xff]
        %v1220 = vld [vmem:[%s315 + $0x19c0] sm:$0xff]
        %v1221 = vld [vmem:[%s315 + $0x19c8] sm:$0xff]
        %v1222 = vld [vmem:[%s315 + $0x19d0] sm:$0xff]
        %v1223 = vld [vmem:[%s315 + $0x19d8] sm:$0xff]
        %v1224 = vld [vmem:[%s315 + $0x19e0] sm:$0xff]
        %v1225 = vld [vmem:[%s315 + $0x19e8] sm:$0xff]
        %v1226 = vld [vmem:[%s315 + $0x19f0] sm:$0xff]
        %v1227 = vld [vmem:[%s315 + $0x19f8] sm:$0xff]
        %v1228 = vld [vmem:[%s315 + $0x1a00] sm:$0xff]
        %v1229 = vld [vmem:[%s315 + $0x1a08] sm:$0xff]
        %v1230 = vld [vmem:[%s315 + $0x1a10] sm:$0xff]
        %v1231 = vld [vmem:[%s315 + $0x1a18] sm:$0xff]
        %v1232 = vld [vmem:[%s315 + $0x1a20] sm:$0xff]
        %v1233 = vld [vmem:[%s315 + $0x1a28] sm:$0xff]
        %v1234 = vld [vmem:[%s315 + $0x1a30] sm:$0xff]
        %v1235 = vld [vmem:[%s315 + $0x1a38] sm:$0xff]
        %v1236 = vld [vmem:[%s315 + $0x1a40] sm:$0xff]
        %v1237 = vld [vmem:[%s315 + $0x1a48] sm:$0xff]
        %v1238 = vld [vmem:[%s315 + $0x1a50] sm:$0xff]
        %v1239 = vld [vmem:[%s315 + $0x1a58] sm:$0xff]
        %v1240 = vld [vmem:[%s315 + $0x1a60] sm:$0xff]
        %v1241 = vld [vmem:[%s315 + $0x1a68] sm:$0xff]
        %v1242 = vld [vmem:[%s315 + $0x1a70] sm:$0xff]
        %v1243 = vld [vmem:[%s315 + $0x1a78] sm:$0xff]
        %v1244 = vld [vmem:[%s315 + $0x1a80] sm:$0xff]
        %v1245 = vld [vmem:[%s315 + $0x1a88] sm:$0xff]
        %v1246 = vld [vmem:[%s315 + $0x1a90] sm:$0xff]
        %v1247 = vld [vmem:[%s315 + $0x1a98] sm:$0xff]
        %v1248 = vld [vmem:[%s315 + $0x1aa0] sm:$0xff]
        %v1249 = vld [vmem:[%s315 + $0x1aa8] sm:$0xff]
        %v1250 = vld [vmem:[%s315 + $0x1ab0] sm:$0xff]
        %v1251 = vld [vmem:[%s315 + $0x1ab8] sm:$0xff]
        %v1252 = vld [vmem:[%s315 + $0x1ac0] sm:$0xff]
        %v1253 = vld [vmem:[%s315 + $0x1ac8] sm:$0xff]
        %v1254 = vld [vmem:[%s315 + $0x1ad0] sm:$0xff]
        %v1255 = vld [vmem:[%s315 + $0x1ad8] sm:$0xff]
        %v1256 = vld [vmem:[%s315 + $0x1ae0] sm:$0xff]
        %v1257 = vld [vmem:[%s315 + $0x1ae8] sm:$0xff]
        %v1258 = vld [vmem:[%s315 + $0x1af0] sm:$0xff]
        %v1259 = vld [vmem:[%s315 + $0x1af8] sm:$0xff]
        %v1260 = vld [vmem:[%s315 + $0x1b00] sm:$0xff]
        %v1261 = vld [vmem:[%s315 + $0x1b08] sm:$0xff]
        %v1262 = vld [vmem:[%s315 + $0x1b10] sm:$0xff]
        %v1263 = vld [vmem:[%s315 + $0x1b18] sm:$0xff]
        %v1264 = vld [vmem:[%s315 + $0x1b20] sm:$0xff]
        %v1265 = vld [vmem:[%s315 + $0x1b28] sm:$0xff]
        %v1266 = vld [vmem:[%s315 + $0x1b30] sm:$0xff]
        %v1267 = vld [vmem:[%s315 + $0x1b38] sm:$0xff]
        %v1268 = vld [vmem:[%s315 + $0x1b40] sm:$0xff]
        %v1269 = vld [vmem:[%s315 + $0x1b48] sm:$0xff]
        %v1270 = vld [vmem:[%s315 + $0x1b50] sm:$0xff]
        %v1271 = vld [vmem:[%s315 + $0x1b58] sm:$0xff]
        %v1272 = vld [vmem:[%s315 + $0x1b60] sm:$0xff]
        %v1273 = vld [vmem:[%s315 + $0x1b68] sm:$0xff]
        %v1274 = vld [vmem:[%s315 + $0x1b70] sm:$0xff]
        %v1275 = vld [vmem:[%s315 + $0x1b78] sm:$0xff]
        %v1276 = vld [vmem:[%s315 + $0x1b80] sm:$0xff]
        %v1277 = vld [vmem:[%s315 + $0x1b88] sm:$0xff]
        %v1278 = vld [vmem:[%s315 + $0x1b90] sm:$0xff]
        %v1279 = vld [vmem:[%s315 + $0x1b98] sm:$0xff]
        %v1280 = vld [vmem:[%s315 + $0x1ba0] sm:$0xff]
        %v1281 = vld [vmem:[%s315 + $0x1ba8] sm:$0xff]
        %v1282 = vld [vmem:[%s315 + $0x1bb0] sm:$0xff]
        %v1283 = vld [vmem:[%s315 + $0x1bb8] sm:$0xff]
        %v1284 = vld [vmem:[%s315 + $0x1bc0] sm:$0xff]
        %v1285 = vld [vmem:[%s315 + $0x1bc8] sm:$0xff]
        %v1286 = vld [vmem:[%s315 + $0x1bd0] sm:$0xff]
        %v1287 = vld [vmem:[%s315 + $0x1bd8] sm:$0xff]
        %v1288 = vld [vmem:[%s315 + $0x1be0] sm:$0xff]
        %v1289 = vld [vmem:[%s315 + $0x1be8] sm:$0xff]
        %v1290 = vld [vmem:[%s315 + $0x1bf0] sm:$0xff]
        %v1291 = vld [vmem:[%s315 + $0x1bf8] sm:$0xff]
        %v1292 = vld [vmem:[%s315 + $0x1c00] sm:$0xff]
        %v1293 = vld [vmem:[%s315 + $0x1c08] sm:$0xff]
        %v1294 = vld [vmem:[%s315 + $0x1c10] sm:$0xff]
        %v1295 = vld [vmem:[%s315 + $0x1c18] sm:$0xff]
        %v1296 = vld [vmem:[%s315 + $0x1c20] sm:$0xff]
        %v1297 = vld [vmem:[%s315 + $0x1c28] sm:$0xff]
        %v1298 = vld [vmem:[%s315 + $0x1c30] sm:$0xff]
        %v1299 = vld [vmem:[%s315 + $0x1c38] sm:$0xff]
        %v1300 = vld [vmem:[%s315 + $0x1c40] sm:$0xff]
        %v1301 = vld [vmem:[%s315 + $0x1c48] sm:$0xff]
        %v1302 = vld [vmem:[%s315 + $0x1c50] sm:$0xff]
        %v1303 = vld [vmem:[%s315 + $0x1c58] sm:$0xff]
        %v1304 = vld [vmem:[%s315 + $0x1c60] sm:$0xff]
        %v1305 = vld [vmem:[%s315 + $0x1c68] sm:$0xff]
        %v1306 = vld [vmem:[%s315 + $0x1c70] sm:$0xff]
        %v1307 = vld [vmem:[%s315 + $0x1c78] sm:$0xff]
        %v1308 = vld [vmem:[%s315 + $0x1c80] sm:$0xff]
        %v1309 = vld [vmem:[%s315 + $0x1c88] sm:$0xff]
        %v1310 = vld [vmem:[%s315 + $0x1c90] sm:$0xff]
        %v1311 = vld [vmem:[%s315 + $0x1c98] sm:$0xff]
        %v1312 = vld [vmem:[%s315 + $0x1ca0] sm:$0xff]
        %v1313 = vld [vmem:[%s315 + $0x1ca8] sm:$0xff]
        %v1314 = vld [vmem:[%s315 + $0x1cb0] sm:$0xff]
        %v1315 = vld [vmem:[%s315 + $0x1cb8] sm:$0xff]
        %v1316 = vld [vmem:[%s315 + $0x1cc0] sm:$0xff]
        %v1317 = vld [vmem:[%s315 + $0x1cc8] sm:$0xff]
        %v1318 = vld [vmem:[%s315 + $0x1cd0] sm:$0xff]
        %v1319 = vld [vmem:[%s315 + $0x1cd8] sm:$0xff]
        %v1320 = vld [vmem:[%s315 + $0x1ce0] sm:$0xff]
        %v1321 = vld [vmem:[%s315 + $0x1ce8] sm:$0xff]
        %v1322 = vld [vmem:[%s315 + $0x1cf0] sm:$0xff]
        %v1323 = vld [vmem:[%s315 + $0x1cf8] sm:$0xff]
        %v1324 = vld [vmem:[%s315 + $0x1d00] sm:$0xff]
        %v1325 = vld [vmem:[%s315 + $0x1d08] sm:$0xff]
        %v1326 = vld [vmem:[%s315 + $0x1d10] sm:$0xff]
        %v1327 = vld [vmem:[%s315 + $0x1d18] sm:$0xff]
        %v1328 = vld [vmem:[%s315 + $0x1d20] sm:$0xff]
        %v1329 = vld [vmem:[%s315 + $0x1d28] sm:$0xff]
        %v1330 = vld [vmem:[%s315 + $0x1d30] sm:$0xff]
        %v1331 = vld [vmem:[%s315 + $0x1d38] sm:$0xff]
        %v1332 = vld [vmem:[%s315 + $0x1d40] sm:$0xff]
        %v1333 = vld [vmem:[%s315 + $0x1d48] sm:$0xff]
        %v1334 = vld [vmem:[%s315 + $0x1d50] sm:$0xff]
        %v1335 = vld [vmem:[%s315 + $0x1d58] sm:$0xff]
        %v1336 = vld [vmem:[%s315 + $0x1d60] sm:$0xff]
        %v1337 = vld [vmem:[%s315 + $0x1d68] sm:$0xff]
        %v1338 = vld [vmem:[%s315 + $0x1d70] sm:$0xff]
        %v1339 = vld [vmem:[%s315 + $0x1d78] sm:$0xff]
        %v1340 = vld [vmem:[%s315 + $0x1d80] sm:$0xff]
        %v1341 = vld [vmem:[%s315 + $0x1d88] sm:$0xff]
        %v1342 = vld [vmem:[%s315 + $0x1d90] sm:$0xff]
        %v1343 = vld [vmem:[%s315 + $0x1d98] sm:$0xff]
        %v1344 = vld [vmem:[%s315 + $0x1da0] sm:$0xff]
        %v1345 = vld [vmem:[%s315 + $0x1da8] sm:$0xff]
        %v1346 = vld [vmem:[%s315 + $0x1db0] sm:$0xff]
        %v1347 = vld [vmem:[%s315 + $0x1db8] sm:$0xff]
        %v1348 = vld [vmem:[%s315 + $0x1dc0] sm:$0xff]
        %v1349 = vld [vmem:[%s315 + $0x1dc8] sm:$0xff]
        %v1350 = vld [vmem:[%s315 + $0x1dd0] sm:$0xff]
        %v1351 = vld [vmem:[%s315 + $0x1dd8] sm:$0xff]
        %v1352 = vld [vmem:[%s315 + $0x1de0] sm:$0xff]
        %v1353 = vld [vmem:[%s315 + $0x1de8] sm:$0xff]
        %v1354 = vld [vmem:[%s315 + $0x1df0] sm:$0xff]
        %v1355 = vld [vmem:[%s315 + $0x1df8] sm:$0xff]
        %v1356 = vld [vmem:[%s315 + $0x1e00] sm:$0xff]
        %v1357 = vld [vmem:[%s315 + $0x1e08] sm:$0xff]
        %v1358 = vld [vmem:[%s315 + $0x1e10] sm:$0xff]
        %v1359 = vld [vmem:[%s315 + $0x1e18] sm:$0xff]
        %v1360 = vld [vmem:[%s315 + $0x1e20] sm:$0xff]
        %v1361 = vld [vmem:[%s315 + $0x1e28] sm:$0xff]
        %v1362 = vld [vmem:[%s315 + $0x1e30] sm:$0xff]
        %v1363 = vld [vmem:[%s315 + $0x1e38] sm:$0xff]
        %v1364 = vld [vmem:[%s315 + $0x1e40] sm:$0xff]
        %v1365 = vld [vmem:[%s315 + $0x1e48] sm:$0xff]
        %v1366 = vld [vmem:[%s315 + $0x1e50] sm:$0xff]
        %v1367 = vld [vmem:[%s315 + $0x1e58] sm:$0xff]
        %v1368 = vld [vmem:[%s315 + $0x1e60] sm:$0xff]
        %v1369 = vld [vmem:[%s315 + $0x1e68] sm:$0xff]
        %v1370 = vld [vmem:[%s315 + $0x1e70] sm:$0xff]
        %v1371 = vld [vmem:[%s315 + $0x1e78] sm:$0xff]
        %v1372 = vld [vmem:[%s315 + $0x1e80] sm:$0xff]
        %v1373 = vld [vmem:[%s315 + $0x1e88] sm:$0xff]
        %v1374 = vld [vmem:[%s315 + $0x1e90] sm:$0xff]
        %v1375 = vld [vmem:[%s315 + $0x1e98] sm:$0xff]
        %v1376 = vld [vmem:[%s315 + $0x1ea0] sm:$0xff]
        %v1377 = vld [vmem:[%s315 + $0x1ea8] sm:$0xff]
        %v1378 = vld [vmem:[%s315 + $0x1eb0] sm:$0xff]
        %v1379 = vld [vmem:[%s315 + $0x1eb8] sm:$0xff]
        %v1380 = vld [vmem:[%s315 + $0x1ec0] sm:$0xff]
        %v1381 = vld [vmem:[%s315 + $0x1ec8] sm:$0xff]
        %v1382 = vld [vmem:[%s315 + $0x1ed0] sm:$0xff]
        %v1383 = vld [vmem:[%s315 + $0x1ed8] sm:$0xff]
        %v1384 = vld [vmem:[%s315 + $0x1ee0] sm:$0xff]
        %v1385 = vld [vmem:[%s315 + $0x1ee8] sm:$0xff]
        %v1386 = vld [vmem:[%s315 + $0x1ef0] sm:$0xff]
        %v1387 = vld [vmem:[%s315 + $0x1ef8] sm:$0xff]
        %v1388 = vld [vmem:[%s315 + $0x1f00] sm:$0xff]
        %v1389 = vld [vmem:[%s315 + $0x1f08] sm:$0xff]
        %v1390 = vld [vmem:[%s315 + $0x1f10] sm:$0xff]
        %v1391 = vld [vmem:[%s315 + $0x1f18] sm:$0xff]
        %v1392 = vld [vmem:[%s315 + $0x1f20] sm:$0xff]
        %v1393 = vld [vmem:[%s315 + $0x1f28] sm:$0xff]
        %v1394 = vld [vmem:[%s315 + $0x1f30] sm:$0xff]
        %v1395 = vld [vmem:[%s315 + $0x1f38] sm:$0xff]
        %v1396 = vld [vmem:[%s315 + $0x1f40] sm:$0xff]
        %v1397 = vld [vmem:[%s315 + $0x1f48] sm:$0xff]
        %v1398 = vld [vmem:[%s315 + $0x1f50] sm:$0xff]
        %v1399 = vld [vmem:[%s315 + $0x1f58] sm:$0xff]
        %v1400 = vld [vmem:[%s315 + $0x1f60] sm:$0xff]
        %v1401 = vld [vmem:[%s315 + $0x1f68] sm:$0xff]
        %v1402 = vld [vmem:[%s315 + $0x1f70] sm:$0xff]
        %v1403 = vld [vmem:[%s315 + $0x1f78] sm:$0xff]
        %v1404 = vld [vmem:[%s315 + $0x1f80] sm:$0xff]
        %v1405 = vld [vmem:[%s315 + $0x1f88] sm:$0xff]
        %v1406 = vld [vmem:[%s315 + $0x1f90] sm:$0xff]
        %v1407 = vld [vmem:[%s315 + $0x1f98] sm:$0xff]
        %v1408 = vld [vmem:[%s315 + $0x1fa0] sm:$0xff]
        %v1409 = vld [vmem:[%s315 + $0x1fa8] sm:$0xff]
        %v1410 = vld [vmem:[%s315 + $0x1fb0] sm:$0xff]
        %v1411 = vld [vmem:[%s315 + $0x1fb8] sm:$0xff]
        %v1412 = vld [vmem:[%s315 + $0x1fc0] sm:$0xff]
        %v1413 = vld [vmem:[%s315 + $0x1fc8] sm:$0xff]
        %v1414 = vld [vmem:[%s315 + $0x1fd0] sm:$0xff]
        %v1415 = vld [vmem:[%s315 + $0x1fd8] sm:$0xff]
        %v1416 = vld [vmem:[%s315 + $0x1fe0] sm:$0xff]
        %v1417 = vld [vmem:[%s315 + $0x1fe8] sm:$0xff]
        %v1418 = vld [vmem:[%s315 + $0x1ff0] sm:$0xff]
        %v1419 = vld [vmem:[%s315 + $0x1ff8] sm:$0xff]
        %v1420 = vld [vmem:[%s324] sm:$0xff]
        %v1421 = vld [vmem:[%s324 + $0x8] sm:$0xff]
        %v1424 = vlaneseq
        %v1425 = vshrl.u32 %v1424, 7
        %v1426 = vsub.s32 0, %v1425
        %v1427 = vrot.slane %v1420, %v1426
        %v1428 = vlaneseq
        %v1429 = vshrl.u32 %v1428, 7
        %v1430 = vsub.s32 1, %v1429
        %v1431 = vrot.slane %v1420, %v1430
        %v1432 = vlaneseq
        %v1433 = vshrl.u32 %v1432, 7
        %v1434 = vsub.s32 2, %v1433
        %v1435 = vrot.slane %v1420, %v1434
        %v1436 = vlaneseq
        %v1437 = vshrl.u32 %v1436, 7
        %v1438 = vsub.s32 3, %v1437
        %v1439 = vrot.slane %v1420, %v1438
        %v1440 = vlaneseq
        %v1441 = vshrl.u32 %v1440, 7
        %v1442 = vsub.s32 4, %v1441
        %v1443 = vrot.slane %v1420, %v1442
        %v1444 = vlaneseq
        %v1445 = vshrl.u32 %v1444, 7
        %v1446 = vsub.s32 5, %v1445
        %v1447 = vrot.slane %v1420, %v1446
        %v1448 = vlaneseq
        %v1449 = vshrl.u32 %v1448, 7
        %v1450 = vsub.s32 6, %v1449
        %v1451 = vrot.slane %v1420, %v1450
        %v1452 = vlaneseq
        %v1453 = vshrl.u32 %v1452, 7
        %v1454 = vsub.s32 7, %v1453
        %v1455 = vrot.slane %v1420, %v1454
        %v1456 = vlaneseq
        %v1457 = vshrl.u32 %v1456, 7
        %v1458 = vsub.s32 0, %v1457
        %v1459 = vrot.slane %v1421, %v1458
        %v1460 = vlaneseq
        %v1461 = vshrl.u32 %v1460, 7
        %v1462 = vsub.s32 1, %v1461
        %v1463 = vrot.slane %v1421, %v1462
        %v1464 = vlaneseq
        %v1465 = vshrl.u32 %v1464, 7
        %v1466 = vsub.s32 2, %v1465
        %v1467 = vrot.slane %v1421, %v1466
        %v1468 = vlaneseq
        %v1469 = vshrl.u32 %v1468, 7
        %v1470 = vsub.s32 3, %v1469
        %v1471 = vrot.slane %v1421, %v1470
        %v1472 = vlaneseq
        %v1473 = vshrl.u32 %v1472, 7
        %v1474 = vsub.s32 4, %v1473
        %v1475 = vrot.slane %v1421, %v1474
        %v1476 = vlaneseq
        %v1477 = vshrl.u32 %v1476, 7
        %v1478 = vsub.s32 5, %v1477
        %v1479 = vrot.slane %v1421, %v1478
        %v1480 = vlaneseq
        %v1481 = vshrl.u32 %v1480, 7
        %v1482 = vsub.s32 6, %v1481
        %v1483 = vrot.slane %v1421, %v1482
        %v1484 = vlaneseq
        %v1485 = vshrl.u32 %v1484, 7
        %v1486 = vsub.s32 7, %v1485
        %v1487 = vrot.slane %v1421, %v1486
        %1504 = vmatprep.subr.mxu0 %v637
        %1505 = vmatpush1.msra.mxu0 %v636
        %1506 = vmatprep.subr.mxu0 %v621
        %1507 = vmatpush1.msra.mxu0 %v620
        %1508 = vmatprep.subr.mxu0 %v605
        %1509 = vmatpush1.msra.mxu0 %v604
        %1510 = vmatprep.subr.mxu0 %v589
        %1511 = vmatpush1.msra.mxu0 %v588
        %1512 = vmatprep.subr.mxu0 %v573
        %1513 = vmatpush1.msra.mxu0 %v572
        %1514 = vmatprep.subr.mxu0 %v557
        %1515 = vmatpush1.msra.mxu0 %v556
        %1516 = vmatprep.subr.mxu0 %v541
        %1517 = vmatpush1.msra.mxu0 %v540
        %1518 = vmatprep.subr.mxu0 %v525
        %1519 = vmatpush1.msra.mxu0 %v524
        %1520 = vmatprep.subr.mxu0 %v509
        %1521 = vmatpush1.msra.mxu0 %v508
        %1522 = vmatprep.subr.mxu0 %v493
        %1523 = vmatpush1.msra.mxu0 %v492
        %1524 = vmatprep.subr.mxu0 %v477
        %1525 = vmatpush1.msra.mxu0 %v476
        %1526 = vmatprep.subr.mxu0 %v461
        %1527 = vmatpush1.msra.mxu0 %v460
        %1528 = vmatprep.subr.mxu0 %v445
        %1529 = vmatpush1.msra.mxu0 %v444
        %1530 = vmatprep.subr.mxu0 %v429
        %1531 = vmatpush1.msra.mxu0 %v428
        %1532 = vmatprep.subr.mxu0 %v413
        %1533 = vmatpush1.msra.mxu0 %v412
        %1534 = vmatprep.subr.mxu0 %v397
        %1535 = vmatpush1.msra.mxu0 %v396
        %1536 = vmatprep.subr.mxu0 %v893
        %1537 = vmatpush2.msra.mxu0 %v892
        %1538 = vmatprep.subr.mxu0 %v877
        %1539 = vmatpush2.msra.mxu0 %v876
        %1540 = vmatprep.subr.mxu0 %v861
        %1541 = vmatpush2.msra.mxu0 %v860
        %1542 = vmatprep.subr.mxu0 %v845
        %1543 = vmatpush2.msra.mxu0 %v844
        %1544 = vmatprep.subr.mxu0 %v829
        %1545 = vmatpush2.msra.mxu0 %v828
        %1546 = vmatprep.subr.mxu0 %v813
        %1547 = vmatpush2.msra.mxu0 %v812
        %1548 = vmatprep.subr.mxu0 %v797
        %1549 = vmatpush2.msra.mxu0 %v796
        %1550 = vmatprep.subr.mxu0 %v781
        %1551 = vmatpush2.msra.mxu0 %v780
        %1552 = vmatprep.subr.mxu0 %v765
        %1553 = vmatpush2.msra.mxu0 %v764
        %1554 = vmatprep.subr.mxu0 %v749
        %1555 = vmatpush2.msra.mxu0 %v748
        %1556 = vmatprep.subr.mxu0 %v733
        %1557 = vmatpush2.msra.mxu0 %v732
        %1558 = vmatprep.subr.mxu0 %v717
        %1559 = vmatpush2.msra.mxu0 %v716
        %1560 = vmatprep.subr.mxu0 %v701
        %1561 = vmatpush2.msra.mxu0 %v700
        %1562 = vmatprep.subr.mxu0 %v685
        %1563 = vmatpush2.msra.mxu0 %v684
        %1564 = vmatprep.subr.mxu0 %v669
        %1565 = vmatpush2.msra.mxu0 %v668
        %1566 = vmatprep.subr.mxu0 %v653
        %1567 = vmatpush2.msra.mxu0 %v652
        %1568 = vmatprep.mubr.f32.mxu0 %v393
        %1569 = vmatmul.mubr.f32.gmra.mxu0 %v392
        %v1570 = vpop.f32.mrf.mxu0
        %v1571 = vadd.f32 %v1427, %v1570
        %v1572 = vpop.f32.mrf.mxu0
        %v1573 = vadd.f32 %v1431, %v1572
        %1574 = vdwg.mxu0
        %1575 = vmatprep.subr.mxu0 %v1149
        %1576 = vmatpush1.msra.mxu0 %v1148
        %1577 = vmatprep.subr.mxu0 %v1133
        %1578 = vmatpush1.msra.mxu0 %v1132
        %1579 = vmatprep.subr.mxu0 %v1117
        %1580 = vmatpush1.msra.mxu0 %v1116
        %1581 = vmatprep.subr.mxu0 %v1101
        %1582 = vmatpush1.msra.mxu0 %v1100
        %1583 = vmatprep.subr.mxu0 %v1085
        %1584 = vmatpush1.msra.mxu0 %v1084
        %1585 = vmatprep.subr.mxu0 %v1069
        %1586 = vmatpush1.msra.mxu0 %v1068
        %1587 = vmatprep.subr.mxu0 %v1053
        %1588 = vmatpush1.msra.mxu0 %v1052
        %1589 = vmatprep.subr.mxu0 %v1037
        %1590 = vmatpush1.msra.mxu0 %v1036
        %1591 = vmatprep.subr.mxu0 %v1021
        %1592 = vmatpush1.msra.mxu0 %v1020
        %1593 = vmatprep.subr.mxu0 %v1005
        %1594 = vmatpush1.msra.mxu0 %v1004
        %1595 = vmatprep.subr.mxu0 %v989
        %1596 = vmatpush1.msra.mxu0 %v988
        %1597 = vmatprep.subr.mxu0 %v973
        %1598 = vmatpush1.msra.mxu0 %v972
        %1599 = vmatprep.subr.mxu0 %v957
        %1600 = vmatpush1.msra.mxu0 %v956
        %1601 = vmatprep.subr.mxu0 %v941
        %1602 = vmatpush1.msra.mxu0 %v940
        %1603 = vmatprep.subr.mxu0 %v925
        %1604 = vmatpush1.msra.mxu0 %v924
        %1605 = vmatprep.subr.mxu0 %v909
        %1606 = vmatpush1.msra.mxu0 %v908
        %1607 = vmatprep.subr.mxu0 %v1405
        %1608 = vmatpush2.msra.mxu0 %v1404
        %1609 = vmatprep.subr.mxu0 %v1389
        %1610 = vmatpush2.msra.mxu0 %v1388
        %1611 = vmatprep.subr.mxu0 %v1373
        %1612 = vmatpush2.msra.mxu0 %v1372
        %1613 = vmatprep.subr.mxu0 %v1357
        %1614 = vmatpush2.msra.mxu0 %v1356
        %1615 = vmatprep.subr.mxu0 %v1341
        %1616 = vmatpush2.msra.mxu0 %v1340
        %1617 = vmatprep.subr.mxu0 %v1325
        %1618 = vmatpush2.msra.mxu0 %v1324
        %1619 = vmatprep.subr.mxu0 %v1309
        %1620 = vmatpush2.msra.mxu0 %v1308
        %1621 = vmatprep.subr.mxu0 %v1293
        %1622 = vmatpush2.msra.mxu0 %v1292
        %1623 = vmatprep.subr.mxu0 %v1277
        %1624 = vmatpush2.msra.mxu0 %v1276
        %1625 = vmatprep.subr.mxu0 %v1261
        %1626 = vmatpush2.msra.mxu0 %v1260
        %1627 = vmatprep.subr.mxu0 %v1245
        %1628 = vmatpush2.msra.mxu0 %v1244
        %1629 = vmatprep.subr.mxu0 %v1229
        %1630 = vmatpush2.msra.mxu0 %v1228
        %1631 = vmatprep.subr.mxu0 %v1213
        %1632 = vmatpush2.msra.mxu0 %v1212
        %1633 = vmatprep.subr.mxu0 %v1197
        %1634 = vmatpush2.msra.mxu0 %v1196
        %1635 = vmatprep.subr.mxu0 %v1181
        %1636 = vmatpush2.msra.mxu0 %v1180
        %1637 = vmatprep.subr.mxu0 %v1165
        %1638 = vmatpush2.msra.mxu0 %v1164
        %1639 = vmatprep.mubr.f32.mxu0 %v395
        %1640 = vmatmul.mubr.f32.gmra.mxu0 %v394
        %v1641 = vpop.f32.mrf.mxu0
        %v1642 = vadd.f32 %v1571, %v1641
        %v1643 = vpop.f32.mrf.mxu0
        %v1644 = vadd.f32 %v1573, %v1643
        %1645 = vdwg.mxu0
        %1646 = vmatprep.subr.mxu0 %v639
        %1647 = vmatpush1.msra.mxu0 %v638
        %1648 = vmatprep.subr.mxu0 %v623
        %1649 = vmatpush1.msra.mxu0 %v622
        %1650 = vmatprep.subr.mxu0 %v607
        %1651 = vmatpush1.msra.mxu0 %v606
        %1652 = vmatprep.subr.mxu0 %v591
        %1653 = vmatpush1.msra.mxu0 %v590
        %1654 = vmatprep.subr.mxu0 %v575
        %1655 = vmatpush1.msra.mxu0 %v574
        %1656 = vmatprep.subr.mxu0 %v559
        %1657 = vmatpush1.msra.mxu0 %v558
        %1658 = vmatprep.subr.mxu0 %v543
        %1659 = vmatpush1.msra.mxu0 %v542
        %1660 = vmatprep.subr.mxu0 %v527
        %1661 = vmatpush1.msra.mxu0 %v526
        %1662 = vmatprep.subr.mxu0 %v511
        %1663 = vmatpush1.msra.mxu0 %v510
        %1664 = vmatprep.subr.mxu0 %v495
        %1665 = vmatpush1.msra.mxu0 %v494
        %1666 = vmatprep.subr.mxu0 %v479
        %1667 = vmatpush1.msra.mxu0 %v478
        %1668 = vmatprep.subr.mxu0 %v463
        %1669 = vmatpush1.msra.mxu0 %v462
        %1670 = vmatprep.subr.mxu0 %v447
        %1671 = vmatpush1.msra.mxu0 %v446
        %1672 = vmatprep.subr.mxu0 %v431
        %1673 = vmatpush1.msra.mxu0 %v430
        %1674 = vmatprep.subr.mxu0 %v415
        %1675 = vmatpush1.msra.mxu0 %v414
        %1676 = vmatprep.subr.mxu0 %v399
        %1677 = vmatpush1.msra.mxu0 %v398
        %1678 = vmatprep.subr.mxu0 %v895
        %1679 = vmatpush2.msra.mxu0 %v894
        %1680 = vmatprep.subr.mxu0 %v879
        %1681 = vmatpush2.msra.mxu0 %v878
        %1682 = vmatprep.subr.mxu0 %v863
        %1683 = vmatpush2.msra.mxu0 %v862
        %1684 = vmatprep.subr.mxu0 %v847
        %1685 = vmatpush2.msra.mxu0 %v846
        %1686 = vmatprep.subr.mxu0 %v831
        %1687 = vmatpush2.msra.mxu0 %v830
        %1688 = vmatprep.subr.mxu0 %v815
        %1689 = vmatpush2.msra.mxu0 %v814
        %1690 = vmatprep.subr.mxu0 %v799
        %1691 = vmatpush2.msra.mxu0 %v798
        %1692 = vmatprep.subr.mxu0 %v783
        %1693 = vmatpush2.msra.mxu0 %v782
        %1694 = vmatprep.subr.mxu0 %v767
        %1695 = vmatpush2.msra.mxu0 %v766
        %1696 = vmatprep.subr.mxu0 %v751
        %1697 = vmatpush2.msra.mxu0 %v750
        %1698 = vmatprep.subr.mxu0 %v735
        %1699 = vmatpush2.msra.mxu0 %v734
        %1700 = vmatprep.subr.mxu0 %v719
        %1701 = vmatpush2.msra.mxu0 %v718
        %1702 = vmatprep.subr.mxu0 %v703
        %1703 = vmatpush2.msra.mxu0 %v702
        %1704 = vmatprep.subr.mxu0 %v687
        %1705 = vmatpush2.msra.mxu0 %v686
        %1706 = vmatprep.subr.mxu0 %v671
        %1707 = vmatpush2.msra.mxu0 %v670
        %1708 = vmatprep.subr.mxu0 %v655
        %1709 = vmatpush2.msra.mxu0 %v654
        %1710 = vmatprep.mubr.f32.mxu0 %v393
        %1711 = vmatmul.mubr.f32.gmra.mxu0 %v392
        %v1712 = vpop.f32.mrf.mxu0
        %v1713 = vadd.f32 %v1435, %v1712
        %v1714 = vpop.f32.mrf.mxu0
        %v1715 = vadd.f32 %v1439, %v1714
        %1716 = vdwg.mxu0
        %1717 = vmatprep.subr.mxu0 %v1151
        %1718 = vmatpush1.msra.mxu0 %v1150
        %1719 = vmatprep.subr.mxu0 %v1135
        %1720 = vmatpush1.msra.mxu0 %v1134
        %1721 = vmatprep.subr.mxu0 %v1119
        %1722 = vmatpush1.msra.mxu0 %v1118
        %1723 = vmatprep.subr.mxu0 %v1103
        %1724 = vmatpush1.msra.mxu0 %v1102
        %1725 = vmatprep.subr.mxu0 %v1087
        %1726 = vmatpush1.msra.mxu0 %v1086
        %1727 = vmatprep.subr.mxu0 %v1071
        %1728 = vmatpush1.msra.mxu0 %v1070
        %1729 = vmatprep.subr.mxu0 %v1055
        %1730 = vmatpush1.msra.mxu0 %v1054
        %1731 = vmatprep.subr.mxu0 %v1039
        %1732 = vmatpush1.msra.mxu0 %v1038
        %1733 = vmatprep.subr.mxu0 %v1023
        %1734 = vmatpush1.msra.mxu0 %v1022
        %1735 = vmatprep.subr.mxu0 %v1007
        %1736 = vmatpush1.msra.mxu0 %v1006
        %1737 = vmatprep.subr.mxu0 %v991
        %1738 = vmatpush1.msra.mxu0 %v990
        %1739 = vmatprep.subr.mxu0 %v975
        %1740 = vmatpush1.msra.mxu0 %v974
        %1741 = vmatprep.subr.mxu0 %v959
        %1742 = vmatpush1.msra.mxu0 %v958
        %1743 = vmatprep.subr.mxu0 %v943
        %1744 = vmatpush1.msra.mxu0 %v942
        %1745 = vmatprep.subr.mxu0 %v927
        %1746 = vmatpush1.msra.mxu0 %v926
        %1747 = vmatprep.subr.mxu0 %v911
        %1748 = vmatpush1.msra.mxu0 %v910
        %1749 = vmatprep.subr.mxu0 %v1407
        %1750 = vmatpush2.msra.mxu0 %v1406
        %1751 = vmatprep.subr.mxu0 %v1391
        %1752 = vmatpush2.msra.mxu0 %v1390
        %1753 = vmatprep.subr.mxu0 %v1375
        %1754 = vmatpush2.msra.mxu0 %v1374
        %1755 = vmatprep.subr.mxu0 %v1359
        %1756 = vmatpush2.msra.mxu0 %v1358
        %1757 = vmatprep.subr.mxu0 %v1343
        %1758 = vmatpush2.msra.mxu0 %v1342
        %1759 = vmatprep.subr.mxu0 %v1327
        %1760 = vmatpush2.msra.mxu0 %v1326
        %1761 = vmatprep.subr.mxu0 %v1311
        %1762 = vmatpush2.msra.mxu0 %v1310
        %1763 = vmatprep.subr.mxu0 %v1295
        %1764 = vmatpush2.msra.mxu0 %v1294
        %1765 = vmatprep.subr.mxu0 %v1279
        %1766 = vmatpush2.msra.mxu0 %v1278
        %1767 = vmatprep.subr.mxu0 %v1263
        %1768 = vmatpush2.msra.mxu0 %v1262
        %1769 = vmatprep.subr.mxu0 %v1247
        %1770 = vmatpush2.msra.mxu0 %v1246
        %1771 = vmatprep.subr.mxu0 %v1231
        %1772 = vmatpush2.msra.mxu0 %v1230
        %1773 = vmatprep.subr.mxu0 %v1215
        %1774 = vmatpush2.msra.mxu0 %v1214
        %1775 = vmatprep.subr.mxu0 %v1199
        %1776 = vmatpush2.msra.mxu0 %v1198
        %1777 = vmatprep.subr.mxu0 %v1183
        %1778 = vmatpush2.msra.mxu0 %v1182
        %1779 = vmatprep.subr.mxu0 %v1167
        %1780 = vmatpush2.msra.mxu0 %v1166
        %1781 = vmatprep.mubr.f32.mxu0 %v395
        %1782 = vmatmul.mubr.f32.gmra.mxu0 %v394
        %v1783 = vpop.f32.mrf.mxu0
        %v1784 = vadd.f32 %v1713, %v1783
        %v1785 = vpop.f32.mrf.mxu0
        %v1786 = vadd.f32 %v1715, %v1785
        %1787 = vdwg.mxu0
        %1788 = vmatprep.subr.mxu0 %v641
        %1789 = vmatpush1.msra.mxu0 %v640
        %1790 = vmatprep.subr.mxu0 %v625
        %1791 = vmatpush1.msra.mxu0 %v624
        %1792 = vmatprep.subr.mxu0 %v609
        %1793 = vmatpush1.msra.mxu0 %v608
        %1794 = vmatprep.subr.mxu0 %v593
        %1795 = vmatpush1.msra.mxu0 %v592
        %1796 = vmatprep.subr.mxu0 %v577
        %1797 = vmatpush1.msra.mxu0 %v576
        %1798 = vmatprep.subr.mxu0 %v561
        %1799 = vmatpush1.msra.mxu0 %v560
        %1800 = vmatprep.subr.mxu0 %v545
        %1801 = vmatpush1.msra.mxu0 %v544
        %1802 = vmatprep.subr.mxu0 %v529
        %1803 = vmatpush1.msra.mxu0 %v528
        %1804 = vmatprep.subr.mxu0 %v513
        %1805 = vmatpush1.msra.mxu0 %v512
        %1806 = vmatprep.subr.mxu0 %v497
        %1807 = vmatpush1.msra.mxu0 %v496
        %1808 = vmatprep.subr.mxu0 %v481
        %1809 = vmatpush1.msra.mxu0 %v480
        %1810 = vmatprep.subr.mxu0 %v465
        %1811 = vmatpush1.msra.mxu0 %v464
        %1812 = vmatprep.subr.mxu0 %v449
        %1813 = vmatpush1.msra.mxu0 %v448
        %1814 = vmatprep.subr.mxu0 %v433
        %1815 = vmatpush1.msra.mxu0 %v432
        %1816 = vmatprep.subr.mxu0 %v417
        %1817 = vmatpush1.msra.mxu0 %v416
        %1818 = vmatprep.subr.mxu0 %v401
        %1819 = vmatpush1.msra.mxu0 %v400
        %1820 = vmatprep.subr.mxu0 %v897
        %1821 = vmatpush2.msra.mxu0 %v896
        %1822 = vmatprep.subr.mxu0 %v881
        %1823 = vmatpush2.msra.mxu0 %v880
        %1824 = vmatprep.subr.mxu0 %v865
        %1825 = vmatpush2.msra.mxu0 %v864
        %1826 = vmatprep.subr.mxu0 %v849
        %1827 = vmatpush2.msra.mxu0 %v848
        %1828 = vmatprep.subr.mxu0 %v833
        %1829 = vmatpush2.msra.mxu0 %v832
        %1830 = vmatprep.subr.mxu0 %v817
        %1831 = vmatpush2.msra.mxu0 %v816
        %1832 = vmatprep.subr.mxu0 %v801
        %1833 = vmatpush2.msra.mxu0 %v800
        %1834 = vmatprep.subr.mxu0 %v785
        %1835 = vmatpush2.msra.mxu0 %v784
        %1836 = vmatprep.subr.mxu0 %v769
        %1837 = vmatpush2.msra.mxu0 %v768
        %1838 = vmatprep.subr.mxu0 %v753
        %1839 = vmatpush2.msra.mxu0 %v752
        %1840 = vmatprep.subr.mxu0 %v737
        %1841 = vmatpush2.msra.mxu0 %v736
        %1842 = vmatprep.subr.mxu0 %v721
        %1843 = vmatpush2.msra.mxu0 %v720
        %1844 = vmatprep.subr.mxu0 %v705
        %1845 = vmatpush2.msra.mxu0 %v704
        %1846 = vmatprep.subr.mxu0 %v689
        %1847 = vmatpush2.msra.mxu0 %v688
        %1848 = vmatprep.subr.mxu0 %v673
        %1849 = vmatpush2.msra.mxu0 %v672
        %1850 = vmatprep.subr.mxu0 %v657
        %1851 = vmatpush2.msra.mxu0 %v656
        %1852 = vmatprep.mubr.f32.mxu0 %v393
        %1853 = vmatmul.mubr.f32.gmra.mxu0 %v392
        %v1854 = vpop.f32.mrf.mxu0
        %v1855 = vadd.f32 %v1443, %v1854
        %v1856 = vpop.f32.mrf.mxu0
        %v1857 = vadd.f32 %v1447, %v1856
        %1858 = vdwg.mxu0
        %1859 = vmatprep.subr.mxu0 %v1153
        %1860 = vmatpush1.msra.mxu0 %v1152
        %1861 = vmatprep.subr.mxu0 %v1137
        %1862 = vmatpush1.msra.mxu0 %v1136
        %1863 = vmatprep.subr.mxu0 %v1121
        %1864 = vmatpush1.msra.mxu0 %v1120
        %1865 = vmatprep.subr.mxu0 %v1105
        %1866 = vmatpush1.msra.mxu0 %v1104
        %1867 = vmatprep.subr.mxu0 %v1089
        %1868 = vmatpush1.msra.mxu0 %v1088
        %1869 = vmatprep.subr.mxu0 %v1073
        %1870 = vmatpush1.msra.mxu0 %v1072
        %1871 = vmatprep.subr.mxu0 %v1057
        %1872 = vmatpush1.msra.mxu0 %v1056
        %1873 = vmatprep.subr.mxu0 %v1041
        %1874 = vmatpush1.msra.mxu0 %v1040
        %1875 = vmatprep.subr.mxu0 %v1025
        %1876 = vmatpush1.msra.mxu0 %v1024
        %1877 = vmatprep.subr.mxu0 %v1009
        %1878 = vmatpush1.msra.mxu0 %v1008
        %1879 = vmatprep.subr.mxu0 %v993
        %1880 = vmatpush1.msra.mxu0 %v992
        %1881 = vmatprep.subr.mxu0 %v977
        %1882 = vmatpush1.msra.mxu0 %v976
        %1883 = vmatprep.subr.mxu0 %v961
        %1884 = vmatpush1.msra.mxu0 %v960
        %1885 = vmatprep.subr.mxu0 %v945
        %1886 = vmatpush1.msra.mxu0 %v944
        %1887 = vmatprep.subr.mxu0 %v929
        %1888 = vmatpush1.msra.mxu0 %v928
        %1889 = vmatprep.subr.mxu0 %v913
        %1890 = vmatpush1.msra.mxu0 %v912
        %1891 = vmatprep.subr.mxu0 %v1409
        %1892 = vmatpush2.msra.mxu0 %v1408
        %1893 = vmatprep.subr.mxu0 %v1393
        %1894 = vmatpush2.msra.mxu0 %v1392
        %1895 = vmatprep.subr.mxu0 %v1377
        %1896 = vmatpush2.msra.mxu0 %v1376
        %1897 = vmatprep.subr.mxu0 %v1361
        %1898 = vmatpush2.msra.mxu0 %v1360
        %1899 = vmatprep.subr.mxu0 %v1345
        %1900 = vmatpush2.msra.mxu0 %v1344
        %1901 = vmatprep.subr.mxu0 %v1329
        %1902 = vmatpush2.msra.mxu0 %v1328
        %1903 = vmatprep.subr.mxu0 %v1313
        %1904 = vmatpush2.msra.mxu0 %v1312
        %1905 = vmatprep.subr.mxu0 %v1297
        %1906 = vmatpush2.msra.mxu0 %v1296
        %1907 = vmatprep.subr.mxu0 %v1281
        %1908 = vmatpush2.msra.mxu0 %v1280
        %1909 = vmatprep.subr.mxu0 %v1265
        %1910 = vmatpush2.msra.mxu0 %v1264
        %1911 = vmatprep.subr.mxu0 %v1249
        %1912 = vmatpush2.msra.mxu0 %v1248
        %1913 = vmatprep.subr.mxu0 %v1233
        %1914 = vmatpush2.msra.mxu0 %v1232
        %1915 = vmatprep.subr.mxu0 %v1217
        %1916 = vmatpush2.msra.mxu0 %v1216
        %1917 = vmatprep.subr.mxu0 %v1201
        %1918 = vmatpush2.msra.mxu0 %v1200
        %1919 = vmatprep.subr.mxu0 %v1185
        %1920 = vmatpush2.msra.mxu0 %v1184
        %1921 = vmatprep.subr.mxu0 %v1169
        %1922 = vmatpush2.msra.mxu0 %v1168
        %1923 = vmatprep.mubr.f32.mxu0 %v395
        %1924 = vmatmul.mubr.f32.gmra.mxu0 %v394
        %v1925 = vpop.f32.mrf.mxu0
        %v1926 = vadd.f32 %v1855, %v1925
        %v1927 = vpop.f32.mrf.mxu0
        %v1928 = vadd.f32 %v1857, %v1927
        %1929 = vdwg.mxu0
        %1930 = vmatprep.subr.mxu0 %v643
        %1931 = vmatpush1.msra.mxu0 %v642
        %1932 = vmatprep.subr.mxu0 %v627
        %1933 = vmatpush1.msra.mxu0 %v626
        %1934 = vmatprep.subr.mxu0 %v611
        %1935 = vmatpush1.msra.mxu0 %v610
        %1936 = vmatprep.subr.mxu0 %v595
        %1937 = vmatpush1.msra.mxu0 %v594
        %1938 = vmatprep.subr.mxu0 %v579
        %1939 = vmatpush1.msra.mxu0 %v578
        %1940 = vmatprep.subr.mxu0 %v563
        %1941 = vmatpush1.msra.mxu0 %v562
        %1942 = vmatprep.subr.mxu0 %v547
        %1943 = vmatpush1.msra.mxu0 %v546
        %1944 = vmatprep.subr.mxu0 %v531
        %1945 = vmatpush1.msra.mxu0 %v530
        %1946 = vmatprep.subr.mxu0 %v515
        %1947 = vmatpush1.msra.mxu0 %v514
        %1948 = vmatprep.subr.mxu0 %v499
        %1949 = vmatpush1.msra.mxu0 %v498
        %1950 = vmatprep.subr.mxu0 %v483
        %1951 = vmatpush1.msra.mxu0 %v482
        %1952 = vmatprep.subr.mxu0 %v467
        %1953 = vmatpush1.msra.mxu0 %v466
        %1954 = vmatprep.subr.mxu0 %v451
        %1955 = vmatpush1.msra.mxu0 %v450
        %1956 = vmatprep.subr.mxu0 %v435
        %1957 = vmatpush1.msra.mxu0 %v434
        %1958 = vmatprep.subr.mxu0 %v419
        %1959 = vmatpush1.msra.mxu0 %v418
        %1960 = vmatprep.subr.mxu0 %v403
        %1961 = vmatpush1.msra.mxu0 %v402
        %1962 = vmatprep.subr.mxu0 %v899
        %1963 = vmatpush2.msra.mxu0 %v898
        %1964 = vmatprep.subr.mxu0 %v883
        %1965 = vmatpush2.msra.mxu0 %v882
        %1966 = vmatprep.subr.mxu0 %v867
        %1967 = vmatpush2.msra.mxu0 %v866
        %1968 = vmatprep.subr.mxu0 %v851
        %1969 = vmatpush2.msra.mxu0 %v850
        %1970 = vmatprep.subr.mxu0 %v835
        %1971 = vmatpush2.msra.mxu0 %v834
        %1972 = vmatprep.subr.mxu0 %v819
        %1973 = vmatpush2.msra.mxu0 %v818
        %1974 = vmatprep.subr.mxu0 %v803
        %1975 = vmatpush2.msra.mxu0 %v802
        %1976 = vmatprep.subr.mxu0 %v787
        %1977 = vmatpush2.msra.mxu0 %v786
        %1978 = vmatprep.subr.mxu0 %v771
        %1979 = vmatpush2.msra.mxu0 %v770
        %1980 = vmatprep.subr.mxu0 %v755
        %1981 = vmatpush2.msra.mxu0 %v754
        %1982 = vmatprep.subr.mxu0 %v739
        %1983 = vmatpush2.msra.mxu0 %v738
        %1984 = vmatprep.subr.mxu0 %v723
        %1985 = vmatpush2.msra.mxu0 %v722
        %1986 = vmatprep.subr.mxu0 %v707
        %1987 = vmatpush2.msra.mxu0 %v706
        %1988 = vmatprep.subr.mxu0 %v691
        %1989 = vmatpush2.msra.mxu0 %v690
        %1990 = vmatprep.subr.mxu0 %v675
        %1991 = vmatpush2.msra.mxu0 %v674
        %1992 = vmatprep.subr.mxu0 %v659
        %1993 = vmatpush2.msra.mxu0 %v658
        %1994 = vmatprep.mubr.f32.mxu0 %v393
        %1995 = vmatmul.mubr.f32.gmra.mxu0 %v392
        %v1996 = vpop.f32.mrf.mxu0
        %v1997 = vadd.f32 %v1451, %v1996
        %v1998 = vpop.f32.mrf.mxu0
        %v1999 = vadd.f32 %v1455, %v1998
        %2000 = vdwg.mxu0
        %2001 = vmatprep.subr.mxu0 %v1155
        %2002 = vmatpush1.msra.mxu0 %v1154
        %2003 = vmatprep.subr.mxu0 %v1139
        %2004 = vmatpush1.msra.mxu0 %v1138
        %2005 = vmatprep.subr.mxu0 %v1123
        %2006 = vmatpush1.msra.mxu0 %v1122
        %2007 = vmatprep.subr.mxu0 %v1107
        %2008 = vmatpush1.msra.mxu0 %v1106
        %2009 = vmatprep.subr.mxu0 %v1091
        %2010 = vmatpush1.msra.mxu0 %v1090
        %2011 = vmatprep.subr.mxu0 %v1075
        %2012 = vmatpush1.msra.mxu0 %v1074
        %2013 = vmatprep.subr.mxu0 %v1059
        %2014 = vmatpush1.msra.mxu0 %v1058
        %2015 = vmatprep.subr.mxu0 %v1043
        %2016 = vmatpush1.msra.mxu0 %v1042
        %2017 = vmatprep.subr.mxu0 %v1027
        %2018 = vmatpush1.msra.mxu0 %v1026
        %2019 = vmatprep.subr.mxu0 %v1011
        %2020 = vmatpush1.msra.mxu0 %v1010
        %2021 = vmatprep.subr.mxu0 %v995
        %2022 = vmatpush1.msra.mxu0 %v994
        %2023 = vmatprep.subr.mxu0 %v979
        %2024 = vmatpush1.msra.mxu0 %v978
        %2025 = vmatprep.subr.mxu0 %v963
        %2026 = vmatpush1.msra.mxu0 %v962
        %2027 = vmatprep.subr.mxu0 %v947
        %2028 = vmatpush1.msra.mxu0 %v946
        %2029 = vmatprep.subr.mxu0 %v931
        %2030 = vmatpush1.msra.mxu0 %v930
        %2031 = vmatprep.subr.mxu0 %v915
        %2032 = vmatpush1.msra.mxu0 %v914
        %2033 = vmatprep.subr.mxu0 %v1411
        %2034 = vmatpush2.msra.mxu0 %v1410
        %2035 = vmatprep.subr.mxu0 %v1395
        %2036 = vmatpush2.msra.mxu0 %v1394
        %2037 = vmatprep.subr.mxu0 %v1379
        %2038 = vmatpush2.msra.mxu0 %v1378
        %2039 = vmatprep.subr.mxu0 %v1363
        %2040 = vmatpush2.msra.mxu0 %v1362
        %2041 = vmatprep.subr.mxu0 %v1347
        %2042 = vmatpush2.msra.mxu0 %v1346
        %2043 = vmatprep.subr.mxu0 %v1331
        %2044 = vmatpush2.msra.mxu0 %v1330
        %2045 = vmatprep.subr.mxu0 %v1315
        %2046 = vmatpush2.msra.mxu0 %v1314
        %2047 = vmatprep.subr.mxu0 %v1299
        %2048 = vmatpush2.msra.mxu0 %v1298
        %2049 = vmatprep.subr.mxu0 %v1283
        %2050 = vmatpush2.msra.mxu0 %v1282
        %2051 = vmatprep.subr.mxu0 %v1267
        %2052 = vmatpush2.msra.mxu0 %v1266
        %2053 = vmatprep.subr.mxu0 %v1251
        %2054 = vmatpush2.msra.mxu0 %v1250
        %2055 = vmatprep.subr.mxu0 %v1235
        %2056 = vmatpush2.msra.mxu0 %v1234
        %2057 = vmatprep.subr.mxu0 %v1219
        %2058 = vmatpush2.msra.mxu0 %v1218
        %2059 = vmatprep.subr.mxu0 %v1203
        %2060 = vmatpush2.msra.mxu0 %v1202
        %2061 = vmatprep.subr.mxu0 %v1187
        %2062 = vmatpush2.msra.mxu0 %v1186
        %2063 = vmatprep.subr.mxu0 %v1171
        %2064 = vmatpush2.msra.mxu0 %v1170
        %2065 = vmatprep.mubr.f32.mxu0 %v395
        %2066 = vmatmul.mubr.f32.gmra.mxu0 %v394
        %v2067 = vpop.f32.mrf.mxu0
        %v2068 = vadd.f32 %v1997, %v2067
        %v2069 = vpop.f32.mrf.mxu0
        %v2070 = vadd.f32 %v1999, %v2069
        %2071 = vdwg.mxu0
        %2072 = vmatprep.subr.mxu0 %v645
        %2073 = vmatpush1.msra.mxu0 %v644
        %2074 = vmatprep.subr.mxu0 %v629
        %2075 = vmatpush1.msra.mxu0 %v628
        %2076 = vmatprep.subr.mxu0 %v613
        %2077 = vmatpush1.msra.mxu0 %v612
        %2078 = vmatprep.subr.mxu0 %v597
        %2079 = vmatpush1.msra.mxu0 %v596
        %2080 = vmatprep.subr.mxu0 %v581
        %2081 = vmatpush1.msra.mxu0 %v580
        %2082 = vmatprep.subr.mxu0 %v565
        %2083 = vmatpush1.msra.mxu0 %v564
        %2084 = vmatprep.subr.mxu0 %v549
        %2085 = vmatpush1.msra.mxu0 %v548
        %2086 = vmatprep.subr.mxu0 %v533
        %2087 = vmatpush1.msra.mxu0 %v532
        %2088 = vmatprep.subr.mxu0 %v517
        %2089 = vmatpush1.msra.mxu0 %v516
        %2090 = vmatprep.subr.mxu0 %v501
        %2091 = vmatpush1.msra.mxu0 %v500
        %2092 = vmatprep.subr.mxu0 %v485
        %2093 = vmatpush1.msra.mxu0 %v484
        %2094 = vmatprep.subr.mxu0 %v469
        %2095 = vmatpush1.msra.mxu0 %v468
        %2096 = vmatprep.subr.mxu0 %v453
        %2097 = vmatpush1.msra.mxu0 %v452
        %2098 = vmatprep.subr.mxu0 %v437
        %2099 = vmatpush1.msra.mxu0 %v436
        %2100 = vmatprep.subr.mxu0 %v421
        %2101 = vmatpush1.msra.mxu0 %v420
        %2102 = vmatprep.subr.mxu0 %v405
        %2103 = vmatpush1.msra.mxu0 %v404
        %2104 = vmatprep.subr.mxu0 %v901
        %2105 = vmatpush2.msra.mxu0 %v900
        %2106 = vmatprep.subr.mxu0 %v885
        %2107 = vmatpush2.msra.mxu0 %v884
        %2108 = vmatprep.subr.mxu0 %v869
        %2109 = vmatpush2.msra.mxu0 %v868
        %2110 = vmatprep.subr.mxu0 %v853
        %2111 = vmatpush2.msra.mxu0 %v852
        %2112 = vmatprep.subr.mxu0 %v837
        %2113 = vmatpush2.msra.mxu0 %v836
        %2114 = vmatprep.subr.mxu0 %v821
        %2115 = vmatpush2.msra.mxu0 %v820
        %2116 = vmatprep.subr.mxu0 %v805
        %2117 = vmatpush2.msra.mxu0 %v804
        %2118 = vmatprep.subr.mxu0 %v789
        %2119 = vmatpush2.msra.mxu0 %v788
        %2120 = vmatprep.subr.mxu0 %v773
        %2121 = vmatpush2.msra.mxu0 %v772
        %2122 = vmatprep.subr.mxu0 %v757
        %2123 = vmatpush2.msra.mxu0 %v756
        %2124 = vmatprep.subr.mxu0 %v741
        %2125 = vmatpush2.msra.mxu0 %v740
        %2126 = vmatprep.subr.mxu0 %v725
        %2127 = vmatpush2.msra.mxu0 %v724
        %2128 = vmatprep.subr.mxu0 %v709
        %2129 = vmatpush2.msra.mxu0 %v708
        %2130 = vmatprep.subr.mxu0 %v693
        %2131 = vmatpush2.msra.mxu0 %v692
        %2132 = vmatprep.subr.mxu0 %v677
        %2133 = vmatpush2.msra.mxu0 %v676
        %2134 = vmatprep.subr.mxu0 %v661
        %2135 = vmatpush2.msra.mxu0 %v660
        %2136 = vmatprep.mubr.f32.mxu0 %v393
        %2137 = vmatmul.mubr.f32.gmra.mxu0 %v392
        %v2138 = vpop.f32.mrf.mxu0
        %v2139 = vadd.f32 %v1459, %v2138
        %v2140 = vpop.f32.mrf.mxu0
        %v2141 = vadd.f32 %v1463, %v2140
        %2142 = vdwg.mxu0
        %2143 = vmatprep.subr.mxu0 %v1157
        %2144 = vmatpush1.msra.mxu0 %v1156
        %2145 = vmatprep.subr.mxu0 %v1141
        %2146 = vmatpush1.msra.mxu0 %v1140
        %2147 = vmatprep.subr.mxu0 %v1125
        %2148 = vmatpush1.msra.mxu0 %v1124
        %2149 = vmatprep.subr.mxu0 %v1109
        %2150 = vmatpush1.msra.mxu0 %v1108
        %2151 = vmatprep.subr.mxu0 %v1093
        %2152 = vmatpush1.msra.mxu0 %v1092
        %2153 = vmatprep.subr.mxu0 %v1077
        %2154 = vmatpush1.msra.mxu0 %v1076
        %2155 = vmatprep.subr.mxu0 %v1061
        %2156 = vmatpush1.msra.mxu0 %v1060
        %2157 = vmatprep.subr.mxu0 %v1045
        %2158 = vmatpush1.msra.mxu0 %v1044
        %2159 = vmatprep.subr.mxu0 %v1029
        %2160 = vmatpush1.msra.mxu0 %v1028
        %2161 = vmatprep.subr.mxu0 %v1013
        %2162 = vmatpush1.msra.mxu0 %v1012
        %2163 = vmatprep.subr.mxu0 %v997
        %2164 = vmatpush1.msra.mxu0 %v996
        %2165 = vmatprep.subr.mxu0 %v981
        %2166 = vmatpush1.msra.mxu0 %v980
        %2167 = vmatprep.subr.mxu0 %v965
        %2168 = vmatpush1.msra.mxu0 %v964
        %2169 = vmatprep.subr.mxu0 %v949
        %2170 = vmatpush1.msra.mxu0 %v948
        %2171 = vmatprep.subr.mxu0 %v933
        %2172 = vmatpush1.msra.mxu0 %v932
        %2173 = vmatprep.subr.mxu0 %v917
        %2174 = vmatpush1.msra.mxu0 %v916
        %2175 = vmatprep.subr.mxu0 %v1413
        %2176 = vmatpush2.msra.mxu0 %v1412
        %2177 = vmatprep.subr.mxu0 %v1397
        %2178 = vmatpush2.msra.mxu0 %v1396
        %2179 = vmatprep.subr.mxu0 %v1381
        %2180 = vmatpush2.msra.mxu0 %v1380
        %2181 = vmatprep.subr.mxu0 %v1365
        %2182 = vmatpush2.msra.mxu0 %v1364
        %2183 = vmatprep.subr.mxu0 %v1349
        %2184 = vmatpush2.msra.mxu0 %v1348
        %2185 = vmatprep.subr.mxu0 %v1333
        %2186 = vmatpush2.msra.mxu0 %v1332
        %2187 = vmatprep.subr.mxu0 %v1317
        %2188 = vmatpush2.msra.mxu0 %v1316
        %2189 = vmatprep.subr.mxu0 %v1301
        %2190 = vmatpush2.msra.mxu0 %v1300
        %2191 = vmatprep.subr.mxu0 %v1285
        %2192 = vmatpush2.msra.mxu0 %v1284
        %2193 = vmatprep.subr.mxu0 %v1269
        %2194 = vmatpush2.msra.mxu0 %v1268
        %2195 = vmatprep.subr.mxu0 %v1253
        %2196 = vmatpush2.msra.mxu0 %v1252
        %2197 = vmatprep.subr.mxu0 %v1237
        %2198 = vmatpush2.msra.mxu0 %v1236
        %2199 = vmatprep.subr.mxu0 %v1221
        %2200 = vmatpush2.msra.mxu0 %v1220
        %2201 = vmatprep.subr.mxu0 %v1205
        %2202 = vmatpush2.msra.mxu0 %v1204
        %2203 = vmatprep.subr.mxu0 %v1189
        %2204 = vmatpush2.msra.mxu0 %v1188
        %2205 = vmatprep.subr.mxu0 %v1173
        %2206 = vmatpush2.msra.mxu0 %v1172
        %2207 = vmatprep.mubr.f32.mxu0 %v395
        %2208 = vmatmul.mubr.f32.gmra.mxu0 %v394
        %v2209 = vpop.f32.mrf.mxu0
        %v2210 = vadd.f32 %v2139, %v2209
        %v2211 = vpop.f32.mrf.mxu0
        %v2212 = vadd.f32 %v2141, %v2211
        %2213 = vdwg.mxu0
        %2214 = vmatprep.subr.mxu0 %v647
        %2215 = vmatpush1.msra.mxu0 %v646
        %2216 = vmatprep.subr.mxu0 %v631
        %2217 = vmatpush1.msra.mxu0 %v630
        %2218 = vmatprep.subr.mxu0 %v615
        %2219 = vmatpush1.msra.mxu0 %v614
        %2220 = vmatprep.subr.mxu0 %v599
        %2221 = vmatpush1.msra.mxu0 %v598
        %2222 = vmatprep.subr.mxu0 %v583
        %2223 = vmatpush1.msra.mxu0 %v582
        %2224 = vmatprep.subr.mxu0 %v567
        %2225 = vmatpush1.msra.mxu0 %v566
        %2226 = vmatprep.subr.mxu0 %v551
        %2227 = vmatpush1.msra.mxu0 %v550
        %2228 = vmatprep.subr.mxu0 %v535
        %2229 = vmatpush1.msra.mxu0 %v534
        %2230 = vmatprep.subr.mxu0 %v519
        %2231 = vmatpush1.msra.mxu0 %v518
        %2232 = vmatprep.subr.mxu0 %v503
        %2233 = vmatpush1.msra.mxu0 %v502
        %2234 = vmatprep.subr.mxu0 %v487
        %2235 = vmatpush1.msra.mxu0 %v486
        %2236 = vmatprep.subr.mxu0 %v471
        %2237 = vmatpush1.msra.mxu0 %v470
        %2238 = vmatprep.subr.mxu0 %v455
        %2239 = vmatpush1.msra.mxu0 %v454
        %2240 = vmatprep.subr.mxu0 %v439
        %2241 = vmatpush1.msra.mxu0 %v438
        %2242 = vmatprep.subr.mxu0 %v423
        %2243 = vmatpush1.msra.mxu0 %v422
        %2244 = vmatprep.subr.mxu0 %v407
        %2245 = vmatpush1.msra.mxu0 %v406
        %2246 = vmatprep.subr.mxu0 %v903
        %2247 = vmatpush2.msra.mxu0 %v902
        %2248 = vmatprep.subr.mxu0 %v887
        %2249 = vmatpush2.msra.mxu0 %v886
        %2250 = vmatprep.subr.mxu0 %v871
        %2251 = vmatpush2.msra.mxu0 %v870
        %2252 = vmatprep.subr.mxu0 %v855
        %2253 = vmatpush2.msra.mxu0 %v854
        %2254 = vmatprep.subr.mxu0 %v839
        %2255 = vmatpush2.msra.mxu0 %v838
        %2256 = vmatprep.subr.mxu0 %v823
        %2257 = vmatpush2.msra.mxu0 %v822
        %2258 = vmatprep.subr.mxu0 %v807
        %2259 = vmatpush2.msra.mxu0 %v806
        %2260 = vmatprep.subr.mxu0 %v791
        %2261 = vmatpush2.msra.mxu0 %v790
        %2262 = vmatprep.subr.mxu0 %v775
        %2263 = vmatpush2.msra.mxu0 %v774
        %2264 = vmatprep.subr.mxu0 %v759
        %2265 = vmatpush2.msra.mxu0 %v758
        %2266 = vmatprep.subr.mxu0 %v743
        %2267 = vmatpush2.msra.mxu0 %v742
        %2268 = vmatprep.subr.mxu0 %v727
        %2269 = vmatpush2.msra.mxu0 %v726
        %2270 = vmatprep.subr.mxu0 %v711
        %2271 = vmatpush2.msra.mxu0 %v710
        %2272 = vmatprep.subr.mxu0 %v695
        %2273 = vmatpush2.msra.mxu0 %v694
        %2274 = vmatprep.subr.mxu0 %v679
        %2275 = vmatpush2.msra.mxu0 %v678
        %2276 = vmatprep.subr.mxu0 %v663
        %2277 = vmatpush2.msra.mxu0 %v662
        %2278 = vmatprep.mubr.f32.mxu0 %v393
        %2279 = vmatmul.mubr.f32.gmra.mxu0 %v392
        %v2280 = vpop.f32.mrf.mxu0
        %v2281 = vadd.f32 %v1467, %v2280
        %v2282 = vpop.f32.mrf.mxu0
        %v2283 = vadd.f32 %v1471, %v2282
        %2284 = vdwg.mxu0
        %2285 = vmatprep.subr.mxu0 %v1159
        %2286 = vmatpush1.msra.mxu0 %v1158
        %2287 = vmatprep.subr.mxu0 %v1143
        %2288 = vmatpush1.msra.mxu0 %v1142
        %2289 = vmatprep.subr.mxu0 %v1127
        %2290 = vmatpush1.msra.mxu0 %v1126
        %2291 = vmatprep.subr.mxu0 %v1111
        %2292 = vmatpush1.msra.mxu0 %v1110
        %2293 = vmatprep.subr.mxu0 %v1095
        %2294 = vmatpush1.msra.mxu0 %v1094
        %2295 = vmatprep.subr.mxu0 %v1079
        %2296 = vmatpush1.msra.mxu0 %v1078
        %2297 = vmatprep.subr.mxu0 %v1063
        %2298 = vmatpush1.msra.mxu0 %v1062
        %2299 = vmatprep.subr.mxu0 %v1047
        %2300 = vmatpush1.msra.mxu0 %v1046
        %2301 = vmatprep.subr.mxu0 %v1031
        %2302 = vmatpush1.msra.mxu0 %v1030
        %2303 = vmatprep.subr.mxu0 %v1015
        %2304 = vmatpush1.msra.mxu0 %v1014
        %2305 = vmatprep.subr.mxu0 %v999
        %2306 = vmatpush1.msra.mxu0 %v998
        %2307 = vmatprep.subr.mxu0 %v983
        %2308 = vmatpush1.msra.mxu0 %v982
        %2309 = vmatprep.subr.mxu0 %v967
        %2310 = vmatpush1.msra.mxu0 %v966
        %2311 = vmatprep.subr.mxu0 %v951
        %2312 = vmatpush1.msra.mxu0 %v950
        %2313 = vmatprep.subr.mxu0 %v935
        %2314 = vmatpush1.msra.mxu0 %v934
        %2315 = vmatprep.subr.mxu0 %v919
        %2316 = vmatpush1.msra.mxu0 %v918
        %2317 = vmatprep.subr.mxu0 %v1415
        %2318 = vmatpush2.msra.mxu0 %v1414
        %2319 = vmatprep.subr.mxu0 %v1399
        %2320 = vmatpush2.msra.mxu0 %v1398
        %2321 = vmatprep.subr.mxu0 %v1383
        %2322 = vmatpush2.msra.mxu0 %v1382
        %2323 = vmatprep.subr.mxu0 %v1367
        %2324 = vmatpush2.msra.mxu0 %v1366
        %2325 = vmatprep.subr.mxu0 %v1351
        %2326 = vmatpush2.msra.mxu0 %v1350
        %2327 = vmatprep.subr.mxu0 %v1335
        %2328 = vmatpush2.msra.mxu0 %v1334
        %2329 = vmatprep.subr.mxu0 %v1319
        %2330 = vmatpush2.msra.mxu0 %v1318
        %2331 = vmatprep.subr.mxu0 %v1303
        %2332 = vmatpush2.msra.mxu0 %v1302
        %2333 = vmatprep.subr.mxu0 %v1287
        %2334 = vmatpush2.msra.mxu0 %v1286
        %2335 = vmatprep.subr.mxu0 %v1271
        %2336 = vmatpush2.msra.mxu0 %v1270
        %2337 = vmatprep.subr.mxu0 %v1255
        %2338 = vmatpush2.msra.mxu0 %v1254
        %2339 = vmatprep.subr.mxu0 %v1239
        %2340 = vmatpush2.msra.mxu0 %v1238
        %2341 = vmatprep.subr.mxu0 %v1223
        %2342 = vmatpush2.msra.mxu0 %v1222
        %2343 = vmatprep.subr.mxu0 %v1207
        %2344 = vmatpush2.msra.mxu0 %v1206
        %2345 = vmatprep.subr.mxu0 %v1191
        %2346 = vmatpush2.msra.mxu0 %v1190
        %2347 = vmatprep.subr.mxu0 %v1175
        %2348 = vmatpush2.msra.mxu0 %v1174
        %2349 = vmatprep.mubr.f32.mxu0 %v395
        %2350 = vmatmul.mubr.f32.gmra.mxu0 %v394
        %v2351 = vpop.f32.mrf.mxu0
        %v2352 = vadd.f32 %v2281, %v2351
        %v2353 = vpop.f32.mrf.mxu0
        %v2354 = vadd.f32 %v2283, %v2353
        %2355 = vdwg.mxu0
        %2356 = vmatprep.subr.mxu0 %v649
        %2357 = vmatpush1.msra.mxu0 %v648
        %2358 = vmatprep.subr.mxu0 %v633
        %2359 = vmatpush1.msra.mxu0 %v632
        %2360 = vmatprep.subr.mxu0 %v617
        %2361 = vmatpush1.msra.mxu0 %v616
        %2362 = vmatprep.subr.mxu0 %v601
        %2363 = vmatpush1.msra.mxu0 %v600
        %2364 = vmatprep.subr.mxu0 %v585
        %2365 = vmatpush1.msra.mxu0 %v584
        %2366 = vmatprep.subr.mxu0 %v569
        %2367 = vmatpush1.msra.mxu0 %v568
        %2368 = vmatprep.subr.mxu0 %v553
        %2369 = vmatpush1.msra.mxu0 %v552
        %2370 = vmatprep.subr.mxu0 %v537
        %2371 = vmatpush1.msra.mxu0 %v536
        %2372 = vmatprep.subr.mxu0 %v521
        %2373 = vmatpush1.msra.mxu0 %v520
        %2374 = vmatprep.subr.mxu0 %v505
        %2375 = vmatpush1.msra.mxu0 %v504
        %2376 = vmatprep.subr.mxu0 %v489
        %2377 = vmatpush1.msra.mxu0 %v488
        %2378 = vmatprep.subr.mxu0 %v473
        %2379 = vmatpush1.msra.mxu0 %v472
        %2380 = vmatprep.subr.mxu0 %v457
        %2381 = vmatpush1.msra.mxu0 %v456
        %2382 = vmatprep.subr.mxu0 %v441
        %2383 = vmatpush1.msra.mxu0 %v440
        %2384 = vmatprep.subr.mxu0 %v425
        %2385 = vmatpush1.msra.mxu0 %v424
        %2386 = vmatprep.subr.mxu0 %v409
        %2387 = vmatpush1.msra.mxu0 %v408
        %2388 = vmatprep.subr.mxu0 %v905
        %2389 = vmatpush2.msra.mxu0 %v904
        %2390 = vmatprep.subr.mxu0 %v889
        %2391 = vmatpush2.msra.mxu0 %v888
        %2392 = vmatprep.subr.mxu0 %v873
        %2393 = vmatpush2.msra.mxu0 %v872
        %2394 = vmatprep.subr.mxu0 %v857
        %2395 = vmatpush2.msra.mxu0 %v856
        %2396 = vmatprep.subr.mxu0 %v841
        %2397 = vmatpush2.msra.mxu0 %v840
        %2398 = vmatprep.subr.mxu0 %v825
        %2399 = vmatpush2.msra.mxu0 %v824
        %2400 = vmatprep.subr.mxu0 %v809
        %2401 = vmatpush2.msra.mxu0 %v808
        %2402 = vmatprep.subr.mxu0 %v793
        %2403 = vmatpush2.msra.mxu0 %v792
        %2404 = vmatprep.subr.mxu0 %v777
        %2405 = vmatpush2.msra.mxu0 %v776
        %2406 = vmatprep.subr.mxu0 %v761
        %2407 = vmatpush2.msra.mxu0 %v760
        %2408 = vmatprep.subr.mxu0 %v745
        %2409 = vmatpush2.msra.mxu0 %v744
        %2410 = vmatprep.subr.mxu0 %v729
        %2411 = vmatpush2.msra.mxu0 %v728
        %2412 = vmatprep.subr.mxu0 %v713
        %2413 = vmatpush2.msra.mxu0 %v712
        %2414 = vmatprep.subr.mxu0 %v697
        %2415 = vmatpush2.msra.mxu0 %v696
        %2416 = vmatprep.subr.mxu0 %v681
        %2417 = vmatpush2.msra.mxu0 %v680
        %2418 = vmatprep.subr.mxu0 %v665
        %2419 = vmatpush2.msra.mxu0 %v664
        %2420 = vmatprep.mubr.f32.mxu0 %v393
        %2421 = vmatmul.mubr.f32.gmra.mxu0 %v392
        %v2422 = vpop.f32.mrf.mxu0
        %v2423 = vadd.f32 %v1475, %v2422
        %v2424 = vpop.f32.mrf.mxu0
        %v2425 = vadd.f32 %v1479, %v2424
        %2426 = vdwg.mxu0
        %2427 = vmatprep.subr.mxu0 %v1161
        %2428 = vmatpush1.msra.mxu0 %v1160
        %2429 = vmatprep.subr.mxu0 %v1145
        %2430 = vmatpush1.msra.mxu0 %v1144
        %2431 = vmatprep.subr.mxu0 %v1129
        %2432 = vmatpush1.msra.mxu0 %v1128
        %2433 = vmatprep.subr.mxu0 %v1113
        %2434 = vmatpush1.msra.mxu0 %v1112
        %2435 = vmatprep.subr.mxu0 %v1097
        %2436 = vmatpush1.msra.mxu0 %v1096
        %2437 = vmatprep.subr.mxu0 %v1081
        %2438 = vmatpush1.msra.mxu0 %v1080
        %2439 = vmatprep.subr.mxu0 %v1065
        %2440 = vmatpush1.msra.mxu0 %v1064
        %2441 = vmatprep.subr.mxu0 %v1049
        %2442 = vmatpush1.msra.mxu0 %v1048
        %2443 = vmatprep.subr.mxu0 %v1033
        %2444 = vmatpush1.msra.mxu0 %v1032
        %2445 = vmatprep.subr.mxu0 %v1017
        %2446 = vmatpush1.msra.mxu0 %v1016
        %2447 = vmatprep.subr.mxu0 %v1001
        %2448 = vmatpush1.msra.mxu0 %v1000
        %2449 = vmatprep.subr.mxu0 %v985
        %2450 = vmatpush1.msra.mxu0 %v984
        %2451 = vmatprep.subr.mxu0 %v969
        %2452 = vmatpush1.msra.mxu0 %v968
        %2453 = vmatprep.subr.mxu0 %v953
        %2454 = vmatpush1.msra.mxu0 %v952
        %2455 = vmatprep.subr.mxu0 %v937
        %2456 = vmatpush1.msra.mxu0 %v936
        %2457 = vmatprep.subr.mxu0 %v921
        %2458 = vmatpush1.msra.mxu0 %v920
        %2459 = vmatprep.subr.mxu0 %v1417
        %2460 = vmatpush2.msra.mxu0 %v1416
        %2461 = vmatprep.subr.mxu0 %v1401
        %2462 = vmatpush2.msra.mxu0 %v1400
        %2463 = vmatprep.subr.mxu0 %v1385
        %2464 = vmatpush2.msra.mxu0 %v1384
        %2465 = vmatprep.subr.mxu0 %v1369
        %2466 = vmatpush2.msra.mxu0 %v1368
        %2467 = vmatprep.subr.mxu0 %v1353
        %2468 = vmatpush2.msra.mxu0 %v1352
        %2469 = vmatprep.subr.mxu0 %v1337
        %2470 = vmatpush2.msra.mxu0 %v1336
        %2471 = vmatprep.subr.mxu0 %v1321
        %2472 = vmatpush2.msra.mxu0 %v1320
        %2473 = vmatprep.subr.mxu0 %v1305
        %2474 = vmatpush2.msra.mxu0 %v1304
        %2475 = vmatprep.subr.mxu0 %v1289
        %2476 = vmatpush2.msra.mxu0 %v1288
        %2477 = vmatprep.subr.mxu0 %v1273
        %2478 = vmatpush2.msra.mxu0 %v1272
        %2479 = vmatprep.subr.mxu0 %v1257
        %2480 = vmatpush2.msra.mxu0 %v1256
        %2481 = vmatprep.subr.mxu0 %v1241
        %2482 = vmatpush2.msra.mxu0 %v1240
        %2483 = vmatprep.subr.mxu0 %v1225
        %2484 = vmatpush2.msra.mxu0 %v1224
        %2485 = vmatprep.subr.mxu0 %v1209
        %2486 = vmatpush2.msra.mxu0 %v1208
        %2487 = vmatprep.subr.mxu0 %v1193
        %2488 = vmatpush2.msra.mxu0 %v1192
        %2489 = vmatprep.subr.mxu0 %v1177
        %2490 = vmatpush2.msra.mxu0 %v1176
        %2491 = vmatprep.mubr.f32.mxu0 %v395
        %2492 = vmatmul.mubr.f32.gmra.mxu0 %v394
        %v2493 = vpop.f32.mrf.mxu0
        %v2494 = vadd.f32 %v2423, %v2493
        %v2495 = vpop.f32.mrf.mxu0
        %v2496 = vadd.f32 %v2425, %v2495
        %2497 = vdwg.mxu0
        %2498 = vmatprep.subr.mxu0 %v651
        %2499 = vmatpush1.msra.mxu0 %v650
        %2500 = vmatprep.subr.mxu0 %v635
        %2501 = vmatpush1.msra.mxu0 %v634
        %2502 = vmatprep.subr.mxu0 %v619
        %2503 = vmatpush1.msra.mxu0 %v618
        %2504 = vmatprep.subr.mxu0 %v603
        %2505 = vmatpush1.msra.mxu0 %v602
        %2506 = vmatprep.subr.mxu0 %v587
        %2507 = vmatpush1.msra.mxu0 %v586
        %2508 = vmatprep.subr.mxu0 %v571
        %2509 = vmatpush1.msra.mxu0 %v570
        %2510 = vmatprep.subr.mxu0 %v555
        %2511 = vmatpush1.msra.mxu0 %v554
        %2512 = vmatprep.subr.mxu0 %v539
        %2513 = vmatpush1.msra.mxu0 %v538
        %2514 = vmatprep.subr.mxu0 %v523
        %2515 = vmatpush1.msra.mxu0 %v522
        %2516 = vmatprep.subr.mxu0 %v507
        %2517 = vmatpush1.msra.mxu0 %v506
        %2518 = vmatprep.subr.mxu0 %v491
        %2519 = vmatpush1.msra.mxu0 %v490
        %2520 = vmatprep.subr.mxu0 %v475
        %2521 = vmatpush1.msra.mxu0 %v474
        %2522 = vmatprep.subr.mxu0 %v459
        %2523 = vmatpush1.msra.mxu0 %v458
        %2524 = vmatprep.subr.mxu0 %v443
        %2525 = vmatpush1.msra.mxu0 %v442
        %2526 = vmatprep.subr.mxu0 %v427
        %2527 = vmatpush1.msra.mxu0 %v426
        %2528 = vmatprep.subr.mxu0 %v411
        %2529 = vmatpush1.msra.mxu0 %v410
        %2530 = vmatprep.subr.mxu0 %v907
        %2531 = vmatpush2.msra.mxu0 %v906
        %2532 = vmatprep.subr.mxu0 %v891
        %2533 = vmatpush2.msra.mxu0 %v890
        %2534 = vmatprep.subr.mxu0 %v875
        %2535 = vmatpush2.msra.mxu0 %v874
        %2536 = vmatprep.subr.mxu0 %v859
        %2537 = vmatpush2.msra.mxu0 %v858
        %2538 = vmatprep.subr.mxu0 %v843
        %2539 = vmatpush2.msra.mxu0 %v842
        %2540 = vmatprep.subr.mxu0 %v827
        %2541 = vmatpush2.msra.mxu0 %v826
        %2542 = vmatprep.subr.mxu0 %v811
        %2543 = vmatpush2.msra.mxu0 %v810
        %2544 = vmatprep.subr.mxu0 %v795
        %2545 = vmatpush2.msra.mxu0 %v794
        %2546 = vmatprep.subr.mxu0 %v779
        %2547 = vmatpush2.msra.mxu0 %v778
        %2548 = vmatprep.subr.mxu0 %v763
        %2549 = vmatpush2.msra.mxu0 %v762
        %2550 = vmatprep.subr.mxu0 %v747
        %2551 = vmatpush2.msra.mxu0 %v746
        %2552 = vmatprep.subr.mxu0 %v731
        %2553 = vmatpush2.msra.mxu0 %v730
        %2554 = vmatprep.subr.mxu0 %v715
        %2555 = vmatpush2.msra.mxu0 %v714
        %2556 = vmatprep.subr.mxu0 %v699
        %2557 = vmatpush2.msra.mxu0 %v698
        %2558 = vmatprep.subr.mxu0 %v683
        %2559 = vmatpush2.msra.mxu0 %v682
        %2560 = vmatprep.subr.mxu0 %v667
        %2561 = vmatpush2.msra.mxu0 %v666
        %2562 = vmatprep.mubr.f32.mxu0 %v393
        %2563 = vmatmul.mubr.f32.gmra.mxu0 %v392
        %v2564 = vpop.f32.mrf.mxu0
        %v2565 = vadd.f32 %v1483, %v2564
        %v2566 = vpop.f32.mrf.mxu0
        %v2567 = vadd.f32 %v1487, %v2566
        %2568 = vdwg.mxu0
        %2569 = vmatprep.subr.mxu0 %v1163
        %2570 = vmatpush1.msra.mxu0 %v1162
        %2571 = vmatprep.subr.mxu0 %v1147
        %2572 = vmatpush1.msra.mxu0 %v1146
        %2573 = vmatprep.subr.mxu0 %v1131
        %2574 = vmatpush1.msra.mxu0 %v1130
        %2575 = vmatprep.subr.mxu0 %v1115
        %2576 = vmatpush1.msra.mxu0 %v1114
        %2577 = vmatprep.subr.mxu0 %v1099
        %2578 = vmatpush1.msra.mxu0 %v1098
        %2579 = vmatprep.subr.mxu0 %v1083
        %2580 = vmatpush1.msra.mxu0 %v1082
        %2581 = vmatprep.subr.mxu0 %v1067
        %2582 = vmatpush1.msra.mxu0 %v1066
        %2583 = vmatprep.subr.mxu0 %v1051
        %2584 = vmatpush1.msra.mxu0 %v1050
        %2585 = vmatprep.subr.mxu0 %v1035
        %2586 = vmatpush1.msra.mxu0 %v1034
        %2587 = vmatprep.subr.mxu0 %v1019
        %2588 = vmatpush1.msra.mxu0 %v1018
        %2589 = vmatprep.subr.mxu0 %v1003
        %2590 = vmatpush1.msra.mxu0 %v1002
        %2591 = vmatprep.subr.mxu0 %v987
        %2592 = vmatpush1.msra.mxu0 %v986
        %2593 = vmatprep.subr.mxu0 %v971
        %2594 = vmatpush1.msra.mxu0 %v970
        %2595 = vmatprep.subr.mxu0 %v955
        %2596 = vmatpush1.msra.mxu0 %v954
        %2597 = vmatprep.subr.mxu0 %v939
        %2598 = vmatpush1.msra.mxu0 %v938
        %2599 = vmatprep.subr.mxu0 %v923
        %2600 = vmatpush1.msra.mxu0 %v922
        %2601 = vmatprep.subr.mxu0 %v1419
        %2602 = vmatpush2.msra.mxu0 %v1418
        %2603 = vmatprep.subr.mxu0 %v1403
        %2604 = vmatpush2.msra.mxu0 %v1402
        %2605 = vmatprep.subr.mxu0 %v1387
        %2606 = vmatpush2.msra.mxu0 %v1386
        %2607 = vmatprep.subr.mxu0 %v1371
        %2608 = vmatpush2.msra.mxu0 %v1370
        %2609 = vmatprep.subr.mxu0 %v1355
        %2610 = vmatpush2.msra.mxu0 %v1354
        %2611 = vmatprep.subr.mxu0 %v1339
        %2612 = vmatpush2.msra.mxu0 %v1338
        %2613 = vmatprep.subr.mxu0 %v1323
        %2614 = vmatpush2.msra.mxu0 %v1322
        %2615 = vmatprep.subr.mxu0 %v1307
        %2616 = vmatpush2.msra.mxu0 %v1306
        %2617 = vmatprep.subr.mxu0 %v1291
        %2618 = vmatpush2.msra.mxu0 %v1290
        %2619 = vmatprep.subr.mxu0 %v1275
        %2620 = vmatpush2.msra.mxu0 %v1274
        %2621 = vmatprep.subr.mxu0 %v1259
        %2622 = vmatpush2.msra.mxu0 %v1258
        %2623 = vmatprep.subr.mxu0 %v1243
        %2624 = vmatpush2.msra.mxu0 %v1242
        %2625 = vmatprep.subr.mxu0 %v1227
        %2626 = vmatpush2.msra.mxu0 %v1226
        %2627 = vmatprep.subr.mxu0 %v1211
        %2628 = vmatpush2.msra.mxu0 %v1210
        %2629 = vmatprep.subr.mxu0 %v1195
        %2630 = vmatpush2.msra.mxu0 %v1194
        %2631 = vmatprep.subr.mxu0 %v1179
        %2632 = vmatpush2.msra.mxu0 %v1178
        %2633 = vmatprep.mubr.f32.mxu0 %v395
        %2634 = vmatmul.mubr.f32.gmra.mxu0 %v394
        %v2635 = vpop.f32.mrf.mxu0
        %v2636 = vadd.f32 %v2565, %v2635
        %v2637 = vpop.f32.mrf.mxu0
        %v2638 = vadd.f32 %v2567, %v2637
        %2639 = vdwg.mxu0
        %v2640 = vmax.f32 %v1642, 0.0
        %v2641 = vmax.f32 %v1644, 0.0
        %v2642 = vmax.f32 %v1784, 0.0
        %v2643 = vmax.f32 %v1786, 0.0
        %v2644 = vmax.f32 %v1926, 0.0
        %v2645 = vmax.f32 %v1928, 0.0
        %v2646 = vmax.f32 %v2068, 0.0
        %v2647 = vmax.f32 %v2070, 0.0
        %v2648 = vmax.f32 %v2210, 0.0
        %v2649 = vmax.f32 %v2212, 0.0
        %v2650 = vmax.f32 %v2352, 0.0
        %v2651 = vmax.f32 %v2354, 0.0
        %v2652 = vmax.f32 %v2494, 0.0
        %v2653 = vmax.f32 %v2496, 0.0
        %v2654 = vmax.f32 %v2636, 0.0
        %v2655 = vmax.f32 %v2638, 0.0
        %v2656 = vld [vmem:[%s333] sm:$0xff]
        %v2657 = vld [vmem:[%s333 + $0x8] sm:$0xff]
        %v2658 = vld [vmem:[%s333 + $0x10] sm:$0xff]
        %v2659 = vld [vmem:[%s333 + $0x18] sm:$0xff]
        %v2660 = vld [vmem:[%s333 + $0x20] sm:$0xff]
        %v2661 = vld [vmem:[%s333 + $0x28] sm:$0xff]
        %v2662 = vld [vmem:[%s333 + $0x30] sm:$0xff]
        %v2663 = vld [vmem:[%s333 + $0x38] sm:$0xff]
        %v2664 = vld [vmem:[%s333 + $0x40] sm:$0xff]
        %v2665 = vld [vmem:[%s333 + $0x48] sm:$0xff]
        %v2666 = vld [vmem:[%s333 + $0x50] sm:$0xff]
        %v2667 = vld [vmem:[%s333 + $0x58] sm:$0xff]
        %v2668 = vld [vmem:[%s333 + $0x60] sm:$0xff]
        %v2669 = vld [vmem:[%s333 + $0x68] sm:$0xff]
        %v2670 = vld [vmem:[%s333 + $0x70] sm:$0xff]
        %v2671 = vld [vmem:[%s333 + $0x78] sm:$0xff]
        %v2672 = vld [vmem:[%s333 + $0x80] sm:$0xff]
        %v2673 = vld [vmem:[%s333 + $0x88] sm:$0xff]
        %v2674 = vld [vmem:[%s333 + $0x90] sm:$0xff]
        %v2675 = vld [vmem:[%s333 + $0x98] sm:$0xff]
        %v2676 = vld [vmem:[%s333 + $0xa0] sm:$0xff]
        %v2677 = vld [vmem:[%s333 + $0xa8] sm:$0xff]
        %v2678 = vld [vmem:[%s333 + $0xb0] sm:$0xff]
        %v2679 = vld [vmem:[%s333 + $0xb8] sm:$0xff]
        %v2680 = vld [vmem:[%s333 + $0xc0] sm:$0xff]
        %v2681 = vld [vmem:[%s333 + $0xc8] sm:$0xff]
        %v2682 = vld [vmem:[%s333 + $0xd0] sm:$0xff]
        %v2683 = vld [vmem:[%s333 + $0xd8] sm:$0xff]
        %v2684 = vld [vmem:[%s333 + $0xe0] sm:$0xff]
        %v2685 = vld [vmem:[%s333 + $0xe8] sm:$0xff]
        %v2686 = vld [vmem:[%s333 + $0xf0] sm:$0xff]
        %v2687 = vld [vmem:[%s333 + $0xf8] sm:$0xff]
        %v2688 = vld [vmem:[%s333 + $0x100] sm:$0xff]
        %v2689 = vld [vmem:[%s333 + $0x108] sm:$0xff]
        %v2690 = vld [vmem:[%s333 + $0x110] sm:$0xff]
        %v2691 = vld [vmem:[%s333 + $0x118] sm:$0xff]
        %v2692 = vld [vmem:[%s333 + $0x120] sm:$0xff]
        %v2693 = vld [vmem:[%s333 + $0x128] sm:$0xff]
        %v2694 = vld [vmem:[%s333 + $0x130] sm:$0xff]
        %v2695 = vld [vmem:[%s333 + $0x138] sm:$0xff]
        %v2696 = vld [vmem:[%s333 + $0x140] sm:$0xff]
        %v2697 = vld [vmem:[%s333 + $0x148] sm:$0xff]
        %v2698 = vld [vmem:[%s333 + $0x150] sm:$0xff]
        %v2699 = vld [vmem:[%s333 + $0x158] sm:$0xff]
        %v2700 = vld [vmem:[%s333 + $0x160] sm:$0xff]
        %v2701 = vld [vmem:[%s333 + $0x168] sm:$0xff]
        %v2702 = vld [vmem:[%s333 + $0x170] sm:$0xff]
        %v2703 = vld [vmem:[%s333 + $0x178] sm:$0xff]
        %v2704 = vld [vmem:[%s333 + $0x180] sm:$0xff]
        %v2705 = vld [vmem:[%s333 + $0x188] sm:$0xff]
        %v2706 = vld [vmem:[%s333 + $0x190] sm:$0xff]
        %v2707 = vld [vmem:[%s333 + $0x198] sm:$0xff]
        %v2708 = vld [vmem:[%s333 + $0x1a0] sm:$0xff]
        %v2709 = vld [vmem:[%s333 + $0x1a8] sm:$0xff]
        %v2710 = vld [vmem:[%s333 + $0x1b0] sm:$0xff]
        %v2711 = vld [vmem:[%s333 + $0x1b8] sm:$0xff]
        %v2712 = vld [vmem:[%s333 + $0x1c0] sm:$0xff]
        %v2713 = vld [vmem:[%s333 + $0x1c8] sm:$0xff]
        %v2714 = vld [vmem:[%s333 + $0x1d0] sm:$0xff]
        %v2715 = vld [vmem:[%s333 + $0x1d8] sm:$0xff]
        %v2716 = vld [vmem:[%s333 + $0x1e0] sm:$0xff]
        %v2717 = vld [vmem:[%s333 + $0x1e8] sm:$0xff]
        %v2718 = vld [vmem:[%s333 + $0x1f0] sm:$0xff]
        %v2719 = vld [vmem:[%s333 + $0x1f8] sm:$0xff]
        %v2720 = vld [vmem:[%s333 + $0x200] sm:$0xff]
        %v2721 = vld [vmem:[%s333 + $0x208] sm:$0xff]
        %v2722 = vld [vmem:[%s333 + $0x210] sm:$0xff]
        %v2723 = vld [vmem:[%s333 + $0x218] sm:$0xff]
        %v2724 = vld [vmem:[%s333 + $0x220] sm:$0xff]
        %v2725 = vld [vmem:[%s333 + $0x228] sm:$0xff]
        %v2726 = vld [vmem:[%s333 + $0x230] sm:$0xff]
        %v2727 = vld [vmem:[%s333 + $0x238] sm:$0xff]
        %v2728 = vld [vmem:[%s333 + $0x240] sm:$0xff]
        %v2729 = vld [vmem:[%s333 + $0x248] sm:$0xff]
        %v2730 = vld [vmem:[%s333 + $0x250] sm:$0xff]
        %v2731 = vld [vmem:[%s333 + $0x258] sm:$0xff]
        %v2732 = vld [vmem:[%s333 + $0x260] sm:$0xff]
        %v2733 = vld [vmem:[%s333 + $0x268] sm:$0xff]
        %v2734 = vld [vmem:[%s333 + $0x270] sm:$0xff]
        %v2735 = vld [vmem:[%s333 + $0x278] sm:$0xff]
        %v2736 = vld [vmem:[%s333 + $0x280] sm:$0xff]
        %v2737 = vld [vmem:[%s333 + $0x288] sm:$0xff]
        %v2738 = vld [vmem:[%s333 + $0x290] sm:$0xff]
        %v2739 = vld [vmem:[%s333 + $0x298] sm:$0xff]
        %v2740 = vld [vmem:[%s333 + $0x2a0] sm:$0xff]
        %v2741 = vld [vmem:[%s333 + $0x2a8] sm:$0xff]
        %v2742 = vld [vmem:[%s333 + $0x2b0] sm:$0xff]
        %v2743 = vld [vmem:[%s333 + $0x2b8] sm:$0xff]
        %v2744 = vld [vmem:[%s333 + $0x2c0] sm:$0xff]
        %v2745 = vld [vmem:[%s333 + $0x2c8] sm:$0xff]
        %v2746 = vld [vmem:[%s333 + $0x2d0] sm:$0xff]
        %v2747 = vld [vmem:[%s333 + $0x2d8] sm:$0xff]
        %v2748 = vld [vmem:[%s333 + $0x2e0] sm:$0xff]
        %v2749 = vld [vmem:[%s333 + $0x2e8] sm:$0xff]
        %v2750 = vld [vmem:[%s333 + $0x2f0] sm:$0xff]
        %v2751 = vld [vmem:[%s333 + $0x2f8] sm:$0xff]
        %v2752 = vld [vmem:[%s333 + $0x300] sm:$0xff]
        %v2753 = vld [vmem:[%s333 + $0x308] sm:$0xff]
        %v2754 = vld [vmem:[%s333 + $0x310] sm:$0xff]
        %v2755 = vld [vmem:[%s333 + $0x318] sm:$0xff]
        %v2756 = vld [vmem:[%s333 + $0x320] sm:$0xff]
        %v2757 = vld [vmem:[%s333 + $0x328] sm:$0xff]
        %v2758 = vld [vmem:[%s333 + $0x330] sm:$0xff]
        %v2759 = vld [vmem:[%s333 + $0x338] sm:$0xff]
        %v2760 = vld [vmem:[%s333 + $0x340] sm:$0xff]
        %v2761 = vld [vmem:[%s333 + $0x348] sm:$0xff]
        %v2762 = vld [vmem:[%s333 + $0x350] sm:$0xff]
        %v2763 = vld [vmem:[%s333 + $0x358] sm:$0xff]
        %v2764 = vld [vmem:[%s333 + $0x360] sm:$0xff]
        %v2765 = vld [vmem:[%s333 + $0x368] sm:$0xff]
        %v2766 = vld [vmem:[%s333 + $0x370] sm:$0xff]
        %v2767 = vld [vmem:[%s333 + $0x378] sm:$0xff]
        %v2768 = vld [vmem:[%s333 + $0x380] sm:$0xff]
        %v2769 = vld [vmem:[%s333 + $0x388] sm:$0xff]
        %v2770 = vld [vmem:[%s333 + $0x390] sm:$0xff]
        %v2771 = vld [vmem:[%s333 + $0x398] sm:$0xff]
        %v2772 = vld [vmem:[%s333 + $0x3a0] sm:$0xff]
        %v2773 = vld [vmem:[%s333 + $0x3a8] sm:$0xff]
        %v2774 = vld [vmem:[%s333 + $0x3b0] sm:$0xff]
        %v2775 = vld [vmem:[%s333 + $0x3b8] sm:$0xff]
        %v2776 = vld [vmem:[%s333 + $0x3c0] sm:$0xff]
        %v2777 = vld [vmem:[%s333 + $0x3c8] sm:$0xff]
        %v2778 = vld [vmem:[%s333 + $0x3d0] sm:$0xff]
        %v2779 = vld [vmem:[%s333 + $0x3d8] sm:$0xff]
        %v2780 = vld [vmem:[%s333 + $0x3e0] sm:$0xff]
        %v2781 = vld [vmem:[%s333 + $0x3e8] sm:$0xff]
        %v2782 = vld [vmem:[%s333 + $0x3f0] sm:$0xff]
        %v2783 = vld [vmem:[%s333 + $0x3f8] sm:$0xff]
        %v2784 = vld [vmem:[%s333 + $0x400] sm:$0xff]
        %v2785 = vld [vmem:[%s333 + $0x408] sm:$0xff]
        %v2786 = vld [vmem:[%s333 + $0x410] sm:$0xff]
        %v2787 = vld [vmem:[%s333 + $0x418] sm:$0xff]
        %v2788 = vld [vmem:[%s333 + $0x420] sm:$0xff]
        %v2789 = vld [vmem:[%s333 + $0x428] sm:$0xff]
        %v2790 = vld [vmem:[%s333 + $0x430] sm:$0xff]
        %v2791 = vld [vmem:[%s333 + $0x438] sm:$0xff]
        %v2792 = vld [vmem:[%s333 + $0x440] sm:$0xff]
        %v2793 = vld [vmem:[%s333 + $0x448] sm:$0xff]
        %v2794 = vld [vmem:[%s333 + $0x450] sm:$0xff]
        %v2795 = vld [vmem:[%s333 + $0x458] sm:$0xff]
        %v2796 = vld [vmem:[%s333 + $0x460] sm:$0xff]
        %v2797 = vld [vmem:[%s333 + $0x468] sm:$0xff]
        %v2798 = vld [vmem:[%s333 + $0x470] sm:$0xff]
        %v2799 = vld [vmem:[%s333 + $0x478] sm:$0xff]
        %v2800 = vld [vmem:[%s333 + $0x480] sm:$0xff]
        %v2801 = vld [vmem:[%s333 + $0x488] sm:$0xff]
        %v2802 = vld [vmem:[%s333 + $0x490] sm:$0xff]
        %v2803 = vld [vmem:[%s333 + $0x498] sm:$0xff]
        %v2804 = vld [vmem:[%s333 + $0x4a0] sm:$0xff]
        %v2805 = vld [vmem:[%s333 + $0x4a8] sm:$0xff]
        %v2806 = vld [vmem:[%s333 + $0x4b0] sm:$0xff]
        %v2807 = vld [vmem:[%s333 + $0x4b8] sm:$0xff]
        %v2808 = vld [vmem:[%s333 + $0x4c0] sm:$0xff]
        %v2809 = vld [vmem:[%s333 + $0x4c8] sm:$0xff]
        %v2810 = vld [vmem:[%s333 + $0x4d0] sm:$0xff]
        %v2811 = vld [vmem:[%s333 + $0x4d8] sm:$0xff]
        %v2812 = vld [vmem:[%s333 + $0x4e0] sm:$0xff]
        %v2813 = vld [vmem:[%s333 + $0x4e8] sm:$0xff]
        %v2814 = vld [vmem:[%s333 + $0x4f0] sm:$0xff]
        %v2815 = vld [vmem:[%s333 + $0x4f8] sm:$0xff]
        %v2816 = vld [vmem:[%s333 + $0x500] sm:$0xff]
        %v2817 = vld [vmem:[%s333 + $0x508] sm:$0xff]
        %v2818 = vld [vmem:[%s333 + $0x510] sm:$0xff]
        %v2819 = vld [vmem:[%s333 + $0x518] sm:$0xff]
        %v2820 = vld [vmem:[%s333 + $0x520] sm:$0xff]
        %v2821 = vld [vmem:[%s333 + $0x528] sm:$0xff]
        %v2822 = vld [vmem:[%s333 + $0x530] sm:$0xff]
        %v2823 = vld [vmem:[%s333 + $0x538] sm:$0xff]
        %v2824 = vld [vmem:[%s333 + $0x540] sm:$0xff]
        %v2825 = vld [vmem:[%s333 + $0x548] sm:$0xff]
        %v2826 = vld [vmem:[%s333 + $0x550] sm:$0xff]
        %v2827 = vld [vmem:[%s333 + $0x558] sm:$0xff]
        %v2828 = vld [vmem:[%s333 + $0x560] sm:$0xff]
        %v2829 = vld [vmem:[%s333 + $0x568] sm:$0xff]
        %v2830 = vld [vmem:[%s333 + $0x570] sm:$0xff]
        %v2831 = vld [vmem:[%s333 + $0x578] sm:$0xff]
        %v2832 = vld [vmem:[%s333 + $0x580] sm:$0xff]
        %v2833 = vld [vmem:[%s333 + $0x588] sm:$0xff]
        %v2834 = vld [vmem:[%s333 + $0x590] sm:$0xff]
        %v2835 = vld [vmem:[%s333 + $0x598] sm:$0xff]
        %v2836 = vld [vmem:[%s333 + $0x5a0] sm:$0xff]
        %v2837 = vld [vmem:[%s333 + $0x5a8] sm:$0xff]
        %v2838 = vld [vmem:[%s333 + $0x5b0] sm:$0xff]
        %v2839 = vld [vmem:[%s333 + $0x5b8] sm:$0xff]
        %v2840 = vld [vmem:[%s333 + $0x5c0] sm:$0xff]
        %v2841 = vld [vmem:[%s333 + $0x5c8] sm:$0xff]
        %v2842 = vld [vmem:[%s333 + $0x5d0] sm:$0xff]
        %v2843 = vld [vmem:[%s333 + $0x5d8] sm:$0xff]
        %v2844 = vld [vmem:[%s333 + $0x5e0] sm:$0xff]
        %v2845 = vld [vmem:[%s333 + $0x5e8] sm:$0xff]
        %v2846 = vld [vmem:[%s333 + $0x5f0] sm:$0xff]
        %v2847 = vld [vmem:[%s333 + $0x5f8] sm:$0xff]
        %v2848 = vld [vmem:[%s333 + $0x600] sm:$0xff]
        %v2849 = vld [vmem:[%s333 + $0x608] sm:$0xff]
        %v2850 = vld [vmem:[%s333 + $0x610] sm:$0xff]
        %v2851 = vld [vmem:[%s333 + $0x618] sm:$0xff]
        %v2852 = vld [vmem:[%s333 + $0x620] sm:$0xff]
        %v2853 = vld [vmem:[%s333 + $0x628] sm:$0xff]
        %v2854 = vld [vmem:[%s333 + $0x630] sm:$0xff]
        %v2855 = vld [vmem:[%s333 + $0x638] sm:$0xff]
        %v2856 = vld [vmem:[%s333 + $0x640] sm:$0xff]
        %v2857 = vld [vmem:[%s333 + $0x648] sm:$0xff]
        %v2858 = vld [vmem:[%s333 + $0x650] sm:$0xff]
        %v2859 = vld [vmem:[%s333 + $0x658] sm:$0xff]
        %v2860 = vld [vmem:[%s333 + $0x660] sm:$0xff]
        %v2861 = vld [vmem:[%s333 + $0x668] sm:$0xff]
        %v2862 = vld [vmem:[%s333 + $0x670] sm:$0xff]
        %v2863 = vld [vmem:[%s333 + $0x678] sm:$0xff]
        %v2864 = vld [vmem:[%s333 + $0x680] sm:$0xff]
        %v2865 = vld [vmem:[%s333 + $0x688] sm:$0xff]
        %v2866 = vld [vmem:[%s333 + $0x690] sm:$0xff]
        %v2867 = vld [vmem:[%s333 + $0x698] sm:$0xff]
        %v2868 = vld [vmem:[%s333 + $0x6a0] sm:$0xff]
        %v2869 = vld [vmem:[%s333 + $0x6a8] sm:$0xff]
        %v2870 = vld [vmem:[%s333 + $0x6b0] sm:$0xff]
        %v2871 = vld [vmem:[%s333 + $0x6b8] sm:$0xff]
        %v2872 = vld [vmem:[%s333 + $0x6c0] sm:$0xff]
        %v2873 = vld [vmem:[%s333 + $0x6c8] sm:$0xff]
        %v2874 = vld [vmem:[%s333 + $0x6d0] sm:$0xff]
        %v2875 = vld [vmem:[%s333 + $0x6d8] sm:$0xff]
        %v2876 = vld [vmem:[%s333 + $0x6e0] sm:$0xff]
        %v2877 = vld [vmem:[%s333 + $0x6e8] sm:$0xff]
        %v2878 = vld [vmem:[%s333 + $0x6f0] sm:$0xff]
        %v2879 = vld [vmem:[%s333 + $0x6f8] sm:$0xff]
        %v2880 = vld [vmem:[%s333 + $0x700] sm:$0xff]
        %v2881 = vld [vmem:[%s333 + $0x708] sm:$0xff]
        %v2882 = vld [vmem:[%s333 + $0x710] sm:$0xff]
        %v2883 = vld [vmem:[%s333 + $0x718] sm:$0xff]
        %v2884 = vld [vmem:[%s333 + $0x720] sm:$0xff]
        %v2885 = vld [vmem:[%s333 + $0x728] sm:$0xff]
        %v2886 = vld [vmem:[%s333 + $0x730] sm:$0xff]
        %v2887 = vld [vmem:[%s333 + $0x738] sm:$0xff]
        %v2888 = vld [vmem:[%s333 + $0x740] sm:$0xff]
        %v2889 = vld [vmem:[%s333 + $0x748] sm:$0xff]
        %v2890 = vld [vmem:[%s333 + $0x750] sm:$0xff]
        %v2891 = vld [vmem:[%s333 + $0x758] sm:$0xff]
        %v2892 = vld [vmem:[%s333 + $0x760] sm:$0xff]
        %v2893 = vld [vmem:[%s333 + $0x768] sm:$0xff]
        %v2894 = vld [vmem:[%s333 + $0x770] sm:$0xff]
        %v2895 = vld [vmem:[%s333 + $0x778] sm:$0xff]
        %v2896 = vld [vmem:[%s333 + $0x780] sm:$0xff]
        %v2897 = vld [vmem:[%s333 + $0x788] sm:$0xff]
        %v2898 = vld [vmem:[%s333 + $0x790] sm:$0xff]
        %v2899 = vld [vmem:[%s333 + $0x798] sm:$0xff]
        %v2900 = vld [vmem:[%s333 + $0x7a0] sm:$0xff]
        %v2901 = vld [vmem:[%s333 + $0x7a8] sm:$0xff]
        %v2902 = vld [vmem:[%s333 + $0x7b0] sm:$0xff]
        %v2903 = vld [vmem:[%s333 + $0x7b8] sm:$0xff]
        %v2904 = vld [vmem:[%s333 + $0x7c0] sm:$0xff]
        %v2905 = vld [vmem:[%s333 + $0x7c8] sm:$0xff]
        %v2906 = vld [vmem:[%s333 + $0x7d0] sm:$0xff]
        %v2907 = vld [vmem:[%s333 + $0x7d8] sm:$0xff]
        %v2908 = vld [vmem:[%s333 + $0x7e0] sm:$0xff]
        %v2909 = vld [vmem:[%s333 + $0x7e8] sm:$0xff]
        %v2910 = vld [vmem:[%s333 + $0x7f0] sm:$0xff]
        %v2911 = vld [vmem:[%s333 + $0x7f8] sm:$0xff]
        %v2912 = vld [vmem:[%s333 + $0x800] sm:$0xff]
        %v2913 = vld [vmem:[%s333 + $0x808] sm:$0xff]
        %v2914 = vld [vmem:[%s333 + $0x810] sm:$0xff]
        %v2915 = vld [vmem:[%s333 + $0x818] sm:$0xff]
        %v2916 = vld [vmem:[%s333 + $0x820] sm:$0xff]
        %v2917 = vld [vmem:[%s333 + $0x828] sm:$0xff]
        %v2918 = vld [vmem:[%s333 + $0x830] sm:$0xff]
        %v2919 = vld [vmem:[%s333 + $0x838] sm:$0xff]
        %v2920 = vld [vmem:[%s333 + $0x840] sm:$0xff]
        %v2921 = vld [vmem:[%s333 + $0x848] sm:$0xff]
        %v2922 = vld [vmem:[%s333 + $0x850] sm:$0xff]
        %v2923 = vld [vmem:[%s333 + $0x858] sm:$0xff]
        %v2924 = vld [vmem:[%s333 + $0x860] sm:$0xff]
        %v2925 = vld [vmem:[%s333 + $0x868] sm:$0xff]
        %v2926 = vld [vmem:[%s333 + $0x870] sm:$0xff]
        %v2927 = vld [vmem:[%s333 + $0x878] sm:$0xff]
        %v2928 = vld [vmem:[%s333 + $0x880] sm:$0xff]
        %v2929 = vld [vmem:[%s333 + $0x888] sm:$0xff]
        %v2930 = vld [vmem:[%s333 + $0x890] sm:$0xff]
        %v2931 = vld [vmem:[%s333 + $0x898] sm:$0xff]
        %v2932 = vld [vmem:[%s333 + $0x8a0] sm:$0xff]
        %v2933 = vld [vmem:[%s333 + $0x8a8] sm:$0xff]
        %v2934 = vld [vmem:[%s333 + $0x8b0] sm:$0xff]
        %v2935 = vld [vmem:[%s333 + $0x8b8] sm:$0xff]
        %v2936 = vld [vmem:[%s333 + $0x8c0] sm:$0xff]
        %v2937 = vld [vmem:[%s333 + $0x8c8] sm:$0xff]
        %v2938 = vld [vmem:[%s333 + $0x8d0] sm:$0xff]
        %v2939 = vld [vmem:[%s333 + $0x8d8] sm:$0xff]
        %v2940 = vld [vmem:[%s333 + $0x8e0] sm:$0xff]
        %v2941 = vld [vmem:[%s333 + $0x8e8] sm:$0xff]
        %v2942 = vld [vmem:[%s333 + $0x8f0] sm:$0xff]
        %v2943 = vld [vmem:[%s333 + $0x8f8] sm:$0xff]
        %v2944 = vld [vmem:[%s333 + $0x900] sm:$0xff]
        %v2945 = vld [vmem:[%s333 + $0x908] sm:$0xff]
        %v2946 = vld [vmem:[%s333 + $0x910] sm:$0xff]
        %v2947 = vld [vmem:[%s333 + $0x918] sm:$0xff]
        %v2948 = vld [vmem:[%s333 + $0x920] sm:$0xff]
        %v2949 = vld [vmem:[%s333 + $0x928] sm:$0xff]
        %v2950 = vld [vmem:[%s333 + $0x930] sm:$0xff]
        %v2951 = vld [vmem:[%s333 + $0x938] sm:$0xff]
        %v2952 = vld [vmem:[%s333 + $0x940] sm:$0xff]
        %v2953 = vld [vmem:[%s333 + $0x948] sm:$0xff]
        %v2954 = vld [vmem:[%s333 + $0x950] sm:$0xff]
        %v2955 = vld [vmem:[%s333 + $0x958] sm:$0xff]
        %v2956 = vld [vmem:[%s333 + $0x960] sm:$0xff]
        %v2957 = vld [vmem:[%s333 + $0x968] sm:$0xff]
        %v2958 = vld [vmem:[%s333 + $0x970] sm:$0xff]
        %v2959 = vld [vmem:[%s333 + $0x978] sm:$0xff]
        %v2960 = vld [vmem:[%s333 + $0x980] sm:$0xff]
        %v2961 = vld [vmem:[%s333 + $0x988] sm:$0xff]
        %v2962 = vld [vmem:[%s333 + $0x990] sm:$0xff]
        %v2963 = vld [vmem:[%s333 + $0x998] sm:$0xff]
        %v2964 = vld [vmem:[%s333 + $0x9a0] sm:$0xff]
        %v2965 = vld [vmem:[%s333 + $0x9a8] sm:$0xff]
        %v2966 = vld [vmem:[%s333 + $0x9b0] sm:$0xff]
        %v2967 = vld [vmem:[%s333 + $0x9b8] sm:$0xff]
        %v2968 = vld [vmem:[%s333 + $0x9c0] sm:$0xff]
        %v2969 = vld [vmem:[%s333 + $0x9c8] sm:$0xff]
        %v2970 = vld [vmem:[%s333 + $0x9d0] sm:$0xff]
        %v2971 = vld [vmem:[%s333 + $0x9d8] sm:$0xff]
        %v2972 = vld [vmem:[%s333 + $0x9e0] sm:$0xff]
        %v2973 = vld [vmem:[%s333 + $0x9e8] sm:$0xff]
        %v2974 = vld [vmem:[%s333 + $0x9f0] sm:$0xff]
        %v2975 = vld [vmem:[%s333 + $0x9f8] sm:$0xff]
        %v2976 = vld [vmem:[%s333 + $0xa00] sm:$0xff]
        %v2977 = vld [vmem:[%s333 + $0xa08] sm:$0xff]
        %v2978 = vld [vmem:[%s333 + $0xa10] sm:$0xff]
        %v2979 = vld [vmem:[%s333 + $0xa18] sm:$0xff]
        %v2980 = vld [vmem:[%s333 + $0xa20] sm:$0xff]
        %v2981 = vld [vmem:[%s333 + $0xa28] sm:$0xff]
        %v2982 = vld [vmem:[%s333 + $0xa30] sm:$0xff]
        %v2983 = vld [vmem:[%s333 + $0xa38] sm:$0xff]
        %v2984 = vld [vmem:[%s333 + $0xa40] sm:$0xff]
        %v2985 = vld [vmem:[%s333 + $0xa48] sm:$0xff]
        %v2986 = vld [vmem:[%s333 + $0xa50] sm:$0xff]
        %v2987 = vld [vmem:[%s333 + $0xa58] sm:$0xff]
        %v2988 = vld [vmem:[%s333 + $0xa60] sm:$0xff]
        %v2989 = vld [vmem:[%s333 + $0xa68] sm:$0xff]
        %v2990 = vld [vmem:[%s333 + $0xa70] sm:$0xff]
        %v2991 = vld [vmem:[%s333 + $0xa78] sm:$0xff]
        %v2992 = vld [vmem:[%s333 + $0xa80] sm:$0xff]
        %v2993 = vld [vmem:[%s333 + $0xa88] sm:$0xff]
        %v2994 = vld [vmem:[%s333 + $0xa90] sm:$0xff]
        %v2995 = vld [vmem:[%s333 + $0xa98] sm:$0xff]
        %v2996 = vld [vmem:[%s333 + $0xaa0] sm:$0xff]
        %v2997 = vld [vmem:[%s333 + $0xaa8] sm:$0xff]
        %v2998 = vld [vmem:[%s333 + $0xab0] sm:$0xff]
        %v2999 = vld [vmem:[%s333 + $0xab8] sm:$0xff]
        %v3000 = vld [vmem:[%s333 + $0xac0] sm:$0xff]
        %v3001 = vld [vmem:[%s333 + $0xac8] sm:$0xff]
        %v3002 = vld [vmem:[%s333 + $0xad0] sm:$0xff]
        %v3003 = vld [vmem:[%s333 + $0xad8] sm:$0xff]
        %v3004 = vld [vmem:[%s333 + $0xae0] sm:$0xff]
        %v3005 = vld [vmem:[%s333 + $0xae8] sm:$0xff]
        %v3006 = vld [vmem:[%s333 + $0xaf0] sm:$0xff]
        %v3007 = vld [vmem:[%s333 + $0xaf8] sm:$0xff]
        %v3008 = vld [vmem:[%s333 + $0xb00] sm:$0xff]
        %v3009 = vld [vmem:[%s333 + $0xb08] sm:$0xff]
        %v3010 = vld [vmem:[%s333 + $0xb10] sm:$0xff]
        %v3011 = vld [vmem:[%s333 + $0xb18] sm:$0xff]
        %v3012 = vld [vmem:[%s333 + $0xb20] sm:$0xff]
        %v3013 = vld [vmem:[%s333 + $0xb28] sm:$0xff]
        %v3014 = vld [vmem:[%s333 + $0xb30] sm:$0xff]
        %v3015 = vld [vmem:[%s333 + $0xb38] sm:$0xff]
        %v3016 = vld [vmem:[%s333 + $0xb40] sm:$0xff]
        %v3017 = vld [vmem:[%s333 + $0xb48] sm:$0xff]
        %v3018 = vld [vmem:[%s333 + $0xb50] sm:$0xff]
        %v3019 = vld [vmem:[%s333 + $0xb58] sm:$0xff]
        %v3020 = vld [vmem:[%s333 + $0xb60] sm:$0xff]
        %v3021 = vld [vmem:[%s333 + $0xb68] sm:$0xff]
        %v3022 = vld [vmem:[%s333 + $0xb70] sm:$0xff]
        %v3023 = vld [vmem:[%s333 + $0xb78] sm:$0xff]
        %v3024 = vld [vmem:[%s333 + $0xb80] sm:$0xff]
        %v3025 = vld [vmem:[%s333 + $0xb88] sm:$0xff]
        %v3026 = vld [vmem:[%s333 + $0xb90] sm:$0xff]
        %v3027 = vld [vmem:[%s333 + $0xb98] sm:$0xff]
        %v3028 = vld [vmem:[%s333 + $0xba0] sm:$0xff]
        %v3029 = vld [vmem:[%s333 + $0xba8] sm:$0xff]
        %v3030 = vld [vmem:[%s333 + $0xbb0] sm:$0xff]
        %v3031 = vld [vmem:[%s333 + $0xbb8] sm:$0xff]
        %v3032 = vld [vmem:[%s333 + $0xbc0] sm:$0xff]
        %v3033 = vld [vmem:[%s333 + $0xbc8] sm:$0xff]
        %v3034 = vld [vmem:[%s333 + $0xbd0] sm:$0xff]
        %v3035 = vld [vmem:[%s333 + $0xbd8] sm:$0xff]
        %v3036 = vld [vmem:[%s333 + $0xbe0] sm:$0xff]
        %v3037 = vld [vmem:[%s333 + $0xbe8] sm:$0xff]
        %v3038 = vld [vmem:[%s333 + $0xbf0] sm:$0xff]
        %v3039 = vld [vmem:[%s333 + $0xbf8] sm:$0xff]
        %v3040 = vld [vmem:[%s333 + $0xc00] sm:$0xff]
        %v3041 = vld [vmem:[%s333 + $0xc08] sm:$0xff]
        %v3042 = vld [vmem:[%s333 + $0xc10] sm:$0xff]
        %v3043 = vld [vmem:[%s333 + $0xc18] sm:$0xff]
        %v3044 = vld [vmem:[%s333 + $0xc20] sm:$0xff]
        %v3045 = vld [vmem:[%s333 + $0xc28] sm:$0xff]
        %v3046 = vld [vmem:[%s333 + $0xc30] sm:$0xff]
        %v3047 = vld [vmem:[%s333 + $0xc38] sm:$0xff]
        %v3048 = vld [vmem:[%s333 + $0xc40] sm:$0xff]
        %v3049 = vld [vmem:[%s333 + $0xc48] sm:$0xff]
        %v3050 = vld [vmem:[%s333 + $0xc50] sm:$0xff]
        %v3051 = vld [vmem:[%s333 + $0xc58] sm:$0xff]
        %v3052 = vld [vmem:[%s333 + $0xc60] sm:$0xff]
        %v3053 = vld [vmem:[%s333 + $0xc68] sm:$0xff]
        %v3054 = vld [vmem:[%s333 + $0xc70] sm:$0xff]
        %v3055 = vld [vmem:[%s333 + $0xc78] sm:$0xff]
        %v3056 = vld [vmem:[%s333 + $0xc80] sm:$0xff]
        %v3057 = vld [vmem:[%s333 + $0xc88] sm:$0xff]
        %v3058 = vld [vmem:[%s333 + $0xc90] sm:$0xff]
        %v3059 = vld [vmem:[%s333 + $0xc98] sm:$0xff]
        %v3060 = vld [vmem:[%s333 + $0xca0] sm:$0xff]
        %v3061 = vld [vmem:[%s333 + $0xca8] sm:$0xff]
        %v3062 = vld [vmem:[%s333 + $0xcb0] sm:$0xff]
        %v3063 = vld [vmem:[%s333 + $0xcb8] sm:$0xff]
        %v3064 = vld [vmem:[%s333 + $0xcc0] sm:$0xff]
        %v3065 = vld [vmem:[%s333 + $0xcc8] sm:$0xff]
        %v3066 = vld [vmem:[%s333 + $0xcd0] sm:$0xff]
        %v3067 = vld [vmem:[%s333 + $0xcd8] sm:$0xff]
        %v3068 = vld [vmem:[%s333 + $0xce0] sm:$0xff]
        %v3069 = vld [vmem:[%s333 + $0xce8] sm:$0xff]
        %v3070 = vld [vmem:[%s333 + $0xcf0] sm:$0xff]
        %v3071 = vld [vmem:[%s333 + $0xcf8] sm:$0xff]
        %v3072 = vld [vmem:[%s333 + $0xd00] sm:$0xff]
        %v3073 = vld [vmem:[%s333 + $0xd08] sm:$0xff]
        %v3074 = vld [vmem:[%s333 + $0xd10] sm:$0xff]
        %v3075 = vld [vmem:[%s333 + $0xd18] sm:$0xff]
        %v3076 = vld [vmem:[%s333 + $0xd20] sm:$0xff]
        %v3077 = vld [vmem:[%s333 + $0xd28] sm:$0xff]
        %v3078 = vld [vmem:[%s333 + $0xd30] sm:$0xff]
        %v3079 = vld [vmem:[%s333 + $0xd38] sm:$0xff]
        %v3080 = vld [vmem:[%s333 + $0xd40] sm:$0xff]
        %v3081 = vld [vmem:[%s333 + $0xd48] sm:$0xff]
        %v3082 = vld [vmem:[%s333 + $0xd50] sm:$0xff]
        %v3083 = vld [vmem:[%s333 + $0xd58] sm:$0xff]
        %v3084 = vld [vmem:[%s333 + $0xd60] sm:$0xff]
        %v3085 = vld [vmem:[%s333 + $0xd68] sm:$0xff]
        %v3086 = vld [vmem:[%s333 + $0xd70] sm:$0xff]
        %v3087 = vld [vmem:[%s333 + $0xd78] sm:$0xff]
        %v3088 = vld [vmem:[%s333 + $0xd80] sm:$0xff]
        %v3089 = vld [vmem:[%s333 + $0xd88] sm:$0xff]
        %v3090 = vld [vmem:[%s333 + $0xd90] sm:$0xff]
        %v3091 = vld [vmem:[%s333 + $0xd98] sm:$0xff]
        %v3092 = vld [vmem:[%s333 + $0xda0] sm:$0xff]
        %v3093 = vld [vmem:[%s333 + $0xda8] sm:$0xff]
        %v3094 = vld [vmem:[%s333 + $0xdb0] sm:$0xff]
        %v3095 = vld [vmem:[%s333 + $0xdb8] sm:$0xff]
        %v3096 = vld [vmem:[%s333 + $0xdc0] sm:$0xff]
        %v3097 = vld [vmem:[%s333 + $0xdc8] sm:$0xff]
        %v3098 = vld [vmem:[%s333 + $0xdd0] sm:$0xff]
        %v3099 = vld [vmem:[%s333 + $0xdd8] sm:$0xff]
        %v3100 = vld [vmem:[%s333 + $0xde0] sm:$0xff]
        %v3101 = vld [vmem:[%s333 + $0xde8] sm:$0xff]
        %v3102 = vld [vmem:[%s333 + $0xdf0] sm:$0xff]
        %v3103 = vld [vmem:[%s333 + $0xdf8] sm:$0xff]
        %v3104 = vld [vmem:[%s333 + $0xe00] sm:$0xff]
        %v3105 = vld [vmem:[%s333 + $0xe08] sm:$0xff]
        %v3106 = vld [vmem:[%s333 + $0xe10] sm:$0xff]
        %v3107 = vld [vmem:[%s333 + $0xe18] sm:$0xff]
        %v3108 = vld [vmem:[%s333 + $0xe20] sm:$0xff]
        %v3109 = vld [vmem:[%s333 + $0xe28] sm:$0xff]
        %v3110 = vld [vmem:[%s333 + $0xe30] sm:$0xff]
        %v3111 = vld [vmem:[%s333 + $0xe38] sm:$0xff]
        %v3112 = vld [vmem:[%s333 + $0xe40] sm:$0xff]
        %v3113 = vld [vmem:[%s333 + $0xe48] sm:$0xff]
        %v3114 = vld [vmem:[%s333 + $0xe50] sm:$0xff]
        %v3115 = vld [vmem:[%s333 + $0xe58] sm:$0xff]
        %v3116 = vld [vmem:[%s333 + $0xe60] sm:$0xff]
        %v3117 = vld [vmem:[%s333 + $0xe68] sm:$0xff]
        %v3118 = vld [vmem:[%s333 + $0xe70] sm:$0xff]
        %v3119 = vld [vmem:[%s333 + $0xe78] sm:$0xff]
        %v3120 = vld [vmem:[%s333 + $0xe80] sm:$0xff]
        %v3121 = vld [vmem:[%s333 + $0xe88] sm:$0xff]
        %v3122 = vld [vmem:[%s333 + $0xe90] sm:$0xff]
        %v3123 = vld [vmem:[%s333 + $0xe98] sm:$0xff]
        %v3124 = vld [vmem:[%s333 + $0xea0] sm:$0xff]
        %v3125 = vld [vmem:[%s333 + $0xea8] sm:$0xff]
        %v3126 = vld [vmem:[%s333 + $0xeb0] sm:$0xff]
        %v3127 = vld [vmem:[%s333 + $0xeb8] sm:$0xff]
        %v3128 = vld [vmem:[%s333 + $0xec0] sm:$0xff]
        %v3129 = vld [vmem:[%s333 + $0xec8] sm:$0xff]
        %v3130 = vld [vmem:[%s333 + $0xed0] sm:$0xff]
        %v3131 = vld [vmem:[%s333 + $0xed8] sm:$0xff]
        %v3132 = vld [vmem:[%s333 + $0xee0] sm:$0xff]
        %v3133 = vld [vmem:[%s333 + $0xee8] sm:$0xff]
        %v3134 = vld [vmem:[%s333 + $0xef0] sm:$0xff]
        %v3135 = vld [vmem:[%s333 + $0xef8] sm:$0xff]
        %v3136 = vld [vmem:[%s333 + $0xf00] sm:$0xff]
        %v3137 = vld [vmem:[%s333 + $0xf08] sm:$0xff]
        %v3138 = vld [vmem:[%s333 + $0xf10] sm:$0xff]
        %v3139 = vld [vmem:[%s333 + $0xf18] sm:$0xff]
        %v3140 = vld [vmem:[%s333 + $0xf20] sm:$0xff]
        %v3141 = vld [vmem:[%s333 + $0xf28] sm:$0xff]
        %v3142 = vld [vmem:[%s333 + $0xf30] sm:$0xff]
        %v3143 = vld [vmem:[%s333 + $0xf38] sm:$0xff]
        %v3144 = vld [vmem:[%s333 + $0xf40] sm:$0xff]
        %v3145 = vld [vmem:[%s333 + $0xf48] sm:$0xff]
        %v3146 = vld [vmem:[%s333 + $0xf50] sm:$0xff]
        %v3147 = vld [vmem:[%s333 + $0xf58] sm:$0xff]
        %v3148 = vld [vmem:[%s333 + $0xf60] sm:$0xff]
        %v3149 = vld [vmem:[%s333 + $0xf68] sm:$0xff]
        %v3150 = vld [vmem:[%s333 + $0xf70] sm:$0xff]
        %v3151 = vld [vmem:[%s333 + $0xf78] sm:$0xff]
        %v3152 = vld [vmem:[%s333 + $0xf80] sm:$0xff]
        %v3153 = vld [vmem:[%s333 + $0xf88] sm:$0xff]
        %v3154 = vld [vmem:[%s333 + $0xf90] sm:$0xff]
        %v3155 = vld [vmem:[%s333 + $0xf98] sm:$0xff]
        %v3156 = vld [vmem:[%s333 + $0xfa0] sm:$0xff]
        %v3157 = vld [vmem:[%s333 + $0xfa8] sm:$0xff]
        %v3158 = vld [vmem:[%s333 + $0xfb0] sm:$0xff]
        %v3159 = vld [vmem:[%s333 + $0xfb8] sm:$0xff]
        %v3160 = vld [vmem:[%s333 + $0xfc0] sm:$0xff]
        %v3161 = vld [vmem:[%s333 + $0xfc8] sm:$0xff]
        %v3162 = vld [vmem:[%s333 + $0xfd0] sm:$0xff]
        %v3163 = vld [vmem:[%s333 + $0xfd8] sm:$0xff]
        %v3164 = vld [vmem:[%s333 + $0xfe0] sm:$0xff]
        %v3165 = vld [vmem:[%s333 + $0xfe8] sm:$0xff]
        %v3166 = vld [vmem:[%s333 + $0xff0] sm:$0xff]
        %v3167 = vld [vmem:[%s333 + $0xff8] sm:$0xff]
        %v3168 = vld [vmem:[%s333 + $0x1000] sm:$0xff]
        %v3169 = vld [vmem:[%s333 + $0x1008] sm:$0xff]
        %v3170 = vld [vmem:[%s333 + $0x1010] sm:$0xff]
        %v3171 = vld [vmem:[%s333 + $0x1018] sm:$0xff]
        %v3172 = vld [vmem:[%s333 + $0x1020] sm:$0xff]
        %v3173 = vld [vmem:[%s333 + $0x1028] sm:$0xff]
        %v3174 = vld [vmem:[%s333 + $0x1030] sm:$0xff]
        %v3175 = vld [vmem:[%s333 + $0x1038] sm:$0xff]
        %v3176 = vld [vmem:[%s333 + $0x1040] sm:$0xff]
        %v3177 = vld [vmem:[%s333 + $0x1048] sm:$0xff]
        %v3178 = vld [vmem:[%s333 + $0x1050] sm:$0xff]
        %v3179 = vld [vmem:[%s333 + $0x1058] sm:$0xff]
        %v3180 = vld [vmem:[%s333 + $0x1060] sm:$0xff]
        %v3181 = vld [vmem:[%s333 + $0x1068] sm:$0xff]
        %v3182 = vld [vmem:[%s333 + $0x1070] sm:$0xff]
        %v3183 = vld [vmem:[%s333 + $0x1078] sm:$0xff]
        %v3184 = vld [vmem:[%s333 + $0x1080] sm:$0xff]
        %v3185 = vld [vmem:[%s333 + $0x1088] sm:$0xff]
        %v3186 = vld [vmem:[%s333 + $0x1090] sm:$0xff]
        %v3187 = vld [vmem:[%s333 + $0x1098] sm:$0xff]
        %v3188 = vld [vmem:[%s333 + $0x10a0] sm:$0xff]
        %v3189 = vld [vmem:[%s333 + $0x10a8] sm:$0xff]
        %v3190 = vld [vmem:[%s333 + $0x10b0] sm:$0xff]
        %v3191 = vld [vmem:[%s333 + $0x10b8] sm:$0xff]
        %v3192 = vld [vmem:[%s333 + $0x10c0] sm:$0xff]
        %v3193 = vld [vmem:[%s333 + $0x10c8] sm:$0xff]
        %v3194 = vld [vmem:[%s333 + $0x10d0] sm:$0xff]
        %v3195 = vld [vmem:[%s333 + $0x10d8] sm:$0xff]
        %v3196 = vld [vmem:[%s333 + $0x10e0] sm:$0xff]
        %v3197 = vld [vmem:[%s333 + $0x10e8] sm:$0xff]
        %v3198 = vld [vmem:[%s333 + $0x10f0] sm:$0xff]
        %v3199 = vld [vmem:[%s333 + $0x10f8] sm:$0xff]
        %v3200 = vld [vmem:[%s333 + $0x1100] sm:$0xff]
        %v3201 = vld [vmem:[%s333 + $0x1108] sm:$0xff]
        %v3202 = vld [vmem:[%s333 + $0x1110] sm:$0xff]
        %v3203 = vld [vmem:[%s333 + $0x1118] sm:$0xff]
        %v3204 = vld [vmem:[%s333 + $0x1120] sm:$0xff]
        %v3205 = vld [vmem:[%s333 + $0x1128] sm:$0xff]
        %v3206 = vld [vmem:[%s333 + $0x1130] sm:$0xff]
        %v3207 = vld [vmem:[%s333 + $0x1138] sm:$0xff]
        %v3208 = vld [vmem:[%s333 + $0x1140] sm:$0xff]
        %v3209 = vld [vmem:[%s333 + $0x1148] sm:$0xff]
        %v3210 = vld [vmem:[%s333 + $0x1150] sm:$0xff]
        %v3211 = vld [vmem:[%s333 + $0x1158] sm:$0xff]
        %v3212 = vld [vmem:[%s333 + $0x1160] sm:$0xff]
        %v3213 = vld [vmem:[%s333 + $0x1168] sm:$0xff]
        %v3214 = vld [vmem:[%s333 + $0x1170] sm:$0xff]
        %v3215 = vld [vmem:[%s333 + $0x1178] sm:$0xff]
        %v3216 = vld [vmem:[%s333 + $0x1180] sm:$0xff]
        %v3217 = vld [vmem:[%s333 + $0x1188] sm:$0xff]
        %v3218 = vld [vmem:[%s333 + $0x1190] sm:$0xff]
        %v3219 = vld [vmem:[%s333 + $0x1198] sm:$0xff]
        %v3220 = vld [vmem:[%s333 + $0x11a0] sm:$0xff]
        %v3221 = vld [vmem:[%s333 + $0x11a8] sm:$0xff]
        %v3222 = vld [vmem:[%s333 + $0x11b0] sm:$0xff]
        %v3223 = vld [vmem:[%s333 + $0x11b8] sm:$0xff]
        %v3224 = vld [vmem:[%s333 + $0x11c0] sm:$0xff]
        %v3225 = vld [vmem:[%s333 + $0x11c8] sm:$0xff]
        %v3226 = vld [vmem:[%s333 + $0x11d0] sm:$0xff]
        %v3227 = vld [vmem:[%s333 + $0x11d8] sm:$0xff]
        %v3228 = vld [vmem:[%s333 + $0x11e0] sm:$0xff]
        %v3229 = vld [vmem:[%s333 + $0x11e8] sm:$0xff]
        %v3230 = vld [vmem:[%s333 + $0x11f0] sm:$0xff]
        %v3231 = vld [vmem:[%s333 + $0x11f8] sm:$0xff]
        %v3232 = vld [vmem:[%s333 + $0x1200] sm:$0xff]
        %v3233 = vld [vmem:[%s333 + $0x1208] sm:$0xff]
        %v3234 = vld [vmem:[%s333 + $0x1210] sm:$0xff]
        %v3235 = vld [vmem:[%s333 + $0x1218] sm:$0xff]
        %v3236 = vld [vmem:[%s333 + $0x1220] sm:$0xff]
        %v3237 = vld [vmem:[%s333 + $0x1228] sm:$0xff]
        %v3238 = vld [vmem:[%s333 + $0x1230] sm:$0xff]
        %v3239 = vld [vmem:[%s333 + $0x1238] sm:$0xff]
        %v3240 = vld [vmem:[%s333 + $0x1240] sm:$0xff]
        %v3241 = vld [vmem:[%s333 + $0x1248] sm:$0xff]
        %v3242 = vld [vmem:[%s333 + $0x1250] sm:$0xff]
        %v3243 = vld [vmem:[%s333 + $0x1258] sm:$0xff]
        %v3244 = vld [vmem:[%s333 + $0x1260] sm:$0xff]
        %v3245 = vld [vmem:[%s333 + $0x1268] sm:$0xff]
        %v3246 = vld [vmem:[%s333 + $0x1270] sm:$0xff]
        %v3247 = vld [vmem:[%s333 + $0x1278] sm:$0xff]
        %v3248 = vld [vmem:[%s333 + $0x1280] sm:$0xff]
        %v3249 = vld [vmem:[%s333 + $0x1288] sm:$0xff]
        %v3250 = vld [vmem:[%s333 + $0x1290] sm:$0xff]
        %v3251 = vld [vmem:[%s333 + $0x1298] sm:$0xff]
        %v3252 = vld [vmem:[%s333 + $0x12a0] sm:$0xff]
        %v3253 = vld [vmem:[%s333 + $0x12a8] sm:$0xff]
        %v3254 = vld [vmem:[%s333 + $0x12b0] sm:$0xff]
        %v3255 = vld [vmem:[%s333 + $0x12b8] sm:$0xff]
        %v3256 = vld [vmem:[%s333 + $0x12c0] sm:$0xff]
        %v3257 = vld [vmem:[%s333 + $0x12c8] sm:$0xff]
        %v3258 = vld [vmem:[%s333 + $0x12d0] sm:$0xff]
        %v3259 = vld [vmem:[%s333 + $0x12d8] sm:$0xff]
        %v3260 = vld [vmem:[%s333 + $0x12e0] sm:$0xff]
        %v3261 = vld [vmem:[%s333 + $0x12e8] sm:$0xff]
        %v3262 = vld [vmem:[%s333 + $0x12f0] sm:$0xff]
        %v3263 = vld [vmem:[%s333 + $0x12f8] sm:$0xff]
        %v3264 = vld [vmem:[%s333 + $0x1300] sm:$0xff]
        %v3265 = vld [vmem:[%s333 + $0x1308] sm:$0xff]
        %v3266 = vld [vmem:[%s333 + $0x1310] sm:$0xff]
        %v3267 = vld [vmem:[%s333 + $0x1318] sm:$0xff]
        %v3268 = vld [vmem:[%s333 + $0x1320] sm:$0xff]
        %v3269 = vld [vmem:[%s333 + $0x1328] sm:$0xff]
        %v3270 = vld [vmem:[%s333 + $0x1330] sm:$0xff]
        %v3271 = vld [vmem:[%s333 + $0x1338] sm:$0xff]
        %v3272 = vld [vmem:[%s333 + $0x1340] sm:$0xff]
        %v3273 = vld [vmem:[%s333 + $0x1348] sm:$0xff]
        %v3274 = vld [vmem:[%s333 + $0x1350] sm:$0xff]
        %v3275 = vld [vmem:[%s333 + $0x1358] sm:$0xff]
        %v3276 = vld [vmem:[%s333 + $0x1360] sm:$0xff]
        %v3277 = vld [vmem:[%s333 + $0x1368] sm:$0xff]
        %v3278 = vld [vmem:[%s333 + $0x1370] sm:$0xff]
        %v3279 = vld [vmem:[%s333 + $0x1378] sm:$0xff]
        %v3280 = vld [vmem:[%s333 + $0x1380] sm:$0xff]
        %v3281 = vld [vmem:[%s333 + $0x1388] sm:$0xff]
        %v3282 = vld [vmem:[%s333 + $0x1390] sm:$0xff]
        %v3283 = vld [vmem:[%s333 + $0x1398] sm:$0xff]
        %v3284 = vld [vmem:[%s333 + $0x13a0] sm:$0xff]
        %v3285 = vld [vmem:[%s333 + $0x13a8] sm:$0xff]
        %v3286 = vld [vmem:[%s333 + $0x13b0] sm:$0xff]
        %v3287 = vld [vmem:[%s333 + $0x13b8] sm:$0xff]
        %v3288 = vld [vmem:[%s333 + $0x13c0] sm:$0xff]
        %v3289 = vld [vmem:[%s333 + $0x13c8] sm:$0xff]
        %v3290 = vld [vmem:[%s333 + $0x13d0] sm:$0xff]
        %v3291 = vld [vmem:[%s333 + $0x13d8] sm:$0xff]
        %v3292 = vld [vmem:[%s333 + $0x13e0] sm:$0xff]
        %v3293 = vld [vmem:[%s333 + $0x13e8] sm:$0xff]
        %v3294 = vld [vmem:[%s333 + $0x13f0] sm:$0xff]
        %v3295 = vld [vmem:[%s333 + $0x13f8] sm:$0xff]
        %v3296 = vld [vmem:[%s333 + $0x1400] sm:$0xff]
        %v3297 = vld [vmem:[%s333 + $0x1408] sm:$0xff]
        %v3298 = vld [vmem:[%s333 + $0x1410] sm:$0xff]
        %v3299 = vld [vmem:[%s333 + $0x1418] sm:$0xff]
        %v3300 = vld [vmem:[%s333 + $0x1420] sm:$0xff]
        %v3301 = vld [vmem:[%s333 + $0x1428] sm:$0xff]
        %v3302 = vld [vmem:[%s333 + $0x1430] sm:$0xff]
        %v3303 = vld [vmem:[%s333 + $0x1438] sm:$0xff]
        %v3304 = vld [vmem:[%s333 + $0x1440] sm:$0xff]
        %v3305 = vld [vmem:[%s333 + $0x1448] sm:$0xff]
        %v3306 = vld [vmem:[%s333 + $0x1450] sm:$0xff]
        %v3307 = vld [vmem:[%s333 + $0x1458] sm:$0xff]
        %v3308 = vld [vmem:[%s333 + $0x1460] sm:$0xff]
        %v3309 = vld [vmem:[%s333 + $0x1468] sm:$0xff]
        %v3310 = vld [vmem:[%s333 + $0x1470] sm:$0xff]
        %v3311 = vld [vmem:[%s333 + $0x1478] sm:$0xff]
        %v3312 = vld [vmem:[%s333 + $0x1480] sm:$0xff]
        %v3313 = vld [vmem:[%s333 + $0x1488] sm:$0xff]
        %v3314 = vld [vmem:[%s333 + $0x1490] sm:$0xff]
        %v3315 = vld [vmem:[%s333 + $0x1498] sm:$0xff]
        %v3316 = vld [vmem:[%s333 + $0x14a0] sm:$0xff]
        %v3317 = vld [vmem:[%s333 + $0x14a8] sm:$0xff]
        %v3318 = vld [vmem:[%s333 + $0x14b0] sm:$0xff]
        %v3319 = vld [vmem:[%s333 + $0x14b8] sm:$0xff]
        %v3320 = vld [vmem:[%s333 + $0x14c0] sm:$0xff]
        %v3321 = vld [vmem:[%s333 + $0x14c8] sm:$0xff]
        %v3322 = vld [vmem:[%s333 + $0x14d0] sm:$0xff]
        %v3323 = vld [vmem:[%s333 + $0x14d8] sm:$0xff]
        %v3324 = vld [vmem:[%s333 + $0x14e0] sm:$0xff]
        %v3325 = vld [vmem:[%s333 + $0x14e8] sm:$0xff]
        %v3326 = vld [vmem:[%s333 + $0x14f0] sm:$0xff]
        %v3327 = vld [vmem:[%s333 + $0x14f8] sm:$0xff]
        %v3328 = vld [vmem:[%s333 + $0x1500] sm:$0xff]
        %v3329 = vld [vmem:[%s333 + $0x1508] sm:$0xff]
        %v3330 = vld [vmem:[%s333 + $0x1510] sm:$0xff]
        %v3331 = vld [vmem:[%s333 + $0x1518] sm:$0xff]
        %v3332 = vld [vmem:[%s333 + $0x1520] sm:$0xff]
        %v3333 = vld [vmem:[%s333 + $0x1528] sm:$0xff]
        %v3334 = vld [vmem:[%s333 + $0x1530] sm:$0xff]
        %v3335 = vld [vmem:[%s333 + $0x1538] sm:$0xff]
        %v3336 = vld [vmem:[%s333 + $0x1540] sm:$0xff]
        %v3337 = vld [vmem:[%s333 + $0x1548] sm:$0xff]
        %v3338 = vld [vmem:[%s333 + $0x1550] sm:$0xff]
        %v3339 = vld [vmem:[%s333 + $0x1558] sm:$0xff]
        %v3340 = vld [vmem:[%s333 + $0x1560] sm:$0xff]
        %v3341 = vld [vmem:[%s333 + $0x1568] sm:$0xff]
        %v3342 = vld [vmem:[%s333 + $0x1570] sm:$0xff]
        %v3343 = vld [vmem:[%s333 + $0x1578] sm:$0xff]
        %v3344 = vld [vmem:[%s333 + $0x1580] sm:$0xff]
        %v3345 = vld [vmem:[%s333 + $0x1588] sm:$0xff]
        %v3346 = vld [vmem:[%s333 + $0x1590] sm:$0xff]
        %v3347 = vld [vmem:[%s333 + $0x1598] sm:$0xff]
        %v3348 = vld [vmem:[%s333 + $0x15a0] sm:$0xff]
        %v3349 = vld [vmem:[%s333 + $0x15a8] sm:$0xff]
        %v3350 = vld [vmem:[%s333 + $0x15b0] sm:$0xff]
        %v3351 = vld [vmem:[%s333 + $0x15b8] sm:$0xff]
        %v3352 = vld [vmem:[%s333 + $0x15c0] sm:$0xff]
        %v3353 = vld [vmem:[%s333 + $0x15c8] sm:$0xff]
        %v3354 = vld [vmem:[%s333 + $0x15d0] sm:$0xff]
        %v3355 = vld [vmem:[%s333 + $0x15d8] sm:$0xff]
        %v3356 = vld [vmem:[%s333 + $0x15e0] sm:$0xff]
        %v3357 = vld [vmem:[%s333 + $0x15e8] sm:$0xff]
        %v3358 = vld [vmem:[%s333 + $0x15f0] sm:$0xff]
        %v3359 = vld [vmem:[%s333 + $0x15f8] sm:$0xff]
        %v3360 = vld [vmem:[%s333 + $0x1600] sm:$0xff]
        %v3361 = vld [vmem:[%s333 + $0x1608] sm:$0xff]
        %v3362 = vld [vmem:[%s333 + $0x1610] sm:$0xff]
        %v3363 = vld [vmem:[%s333 + $0x1618] sm:$0xff]
        %v3364 = vld [vmem:[%s333 + $0x1620] sm:$0xff]
        %v3365 = vld [vmem:[%s333 + $0x1628] sm:$0xff]
        %v3366 = vld [vmem:[%s333 + $0x1630] sm:$0xff]
        %v3367 = vld [vmem:[%s333 + $0x1638] sm:$0xff]
        %v3368 = vld [vmem:[%s333 + $0x1640] sm:$0xff]
        %v3369 = vld [vmem:[%s333 + $0x1648] sm:$0xff]
        %v3370 = vld [vmem:[%s333 + $0x1650] sm:$0xff]
        %v3371 = vld [vmem:[%s333 + $0x1658] sm:$0xff]
        %v3372 = vld [vmem:[%s333 + $0x1660] sm:$0xff]
        %v3373 = vld [vmem:[%s333 + $0x1668] sm:$0xff]
        %v3374 = vld [vmem:[%s333 + $0x1670] sm:$0xff]
        %v3375 = vld [vmem:[%s333 + $0x1678] sm:$0xff]
        %v3376 = vld [vmem:[%s333 + $0x1680] sm:$0xff]
        %v3377 = vld [vmem:[%s333 + $0x1688] sm:$0xff]
        %v3378 = vld [vmem:[%s333 + $0x1690] sm:$0xff]
        %v3379 = vld [vmem:[%s333 + $0x1698] sm:$0xff]
        %v3380 = vld [vmem:[%s333 + $0x16a0] sm:$0xff]
        %v3381 = vld [vmem:[%s333 + $0x16a8] sm:$0xff]
        %v3382 = vld [vmem:[%s333 + $0x16b0] sm:$0xff]
        %v3383 = vld [vmem:[%s333 + $0x16b8] sm:$0xff]
        %v3384 = vld [vmem:[%s333 + $0x16c0] sm:$0xff]
        %v3385 = vld [vmem:[%s333 + $0x16c8] sm:$0xff]
        %v3386 = vld [vmem:[%s333 + $0x16d0] sm:$0xff]
        %v3387 = vld [vmem:[%s333 + $0x16d8] sm:$0xff]
        %v3388 = vld [vmem:[%s333 + $0x16e0] sm:$0xff]
        %v3389 = vld [vmem:[%s333 + $0x16e8] sm:$0xff]
        %v3390 = vld [vmem:[%s333 + $0x16f0] sm:$0xff]
        %v3391 = vld [vmem:[%s333 + $0x16f8] sm:$0xff]
        %v3392 = vld [vmem:[%s333 + $0x1700] sm:$0xff]
        %v3393 = vld [vmem:[%s333 + $0x1708] sm:$0xff]
        %v3394 = vld [vmem:[%s333 + $0x1710] sm:$0xff]
        %v3395 = vld [vmem:[%s333 + $0x1718] sm:$0xff]
        %v3396 = vld [vmem:[%s333 + $0x1720] sm:$0xff]
        %v3397 = vld [vmem:[%s333 + $0x1728] sm:$0xff]
        %v3398 = vld [vmem:[%s333 + $0x1730] sm:$0xff]
        %v3399 = vld [vmem:[%s333 + $0x1738] sm:$0xff]
        %v3400 = vld [vmem:[%s333 + $0x1740] sm:$0xff]
        %v3401 = vld [vmem:[%s333 + $0x1748] sm:$0xff]
        %v3402 = vld [vmem:[%s333 + $0x1750] sm:$0xff]
        %v3403 = vld [vmem:[%s333 + $0x1758] sm:$0xff]
        %v3404 = vld [vmem:[%s333 + $0x1760] sm:$0xff]
        %v3405 = vld [vmem:[%s333 + $0x1768] sm:$0xff]
        %v3406 = vld [vmem:[%s333 + $0x1770] sm:$0xff]
        %v3407 = vld [vmem:[%s333 + $0x1778] sm:$0xff]
        %v3408 = vld [vmem:[%s333 + $0x1780] sm:$0xff]
        %v3409 = vld [vmem:[%s333 + $0x1788] sm:$0xff]
        %v3410 = vld [vmem:[%s333 + $0x1790] sm:$0xff]
        %v3411 = vld [vmem:[%s333 + $0x1798] sm:$0xff]
        %v3412 = vld [vmem:[%s333 + $0x17a0] sm:$0xff]
        %v3413 = vld [vmem:[%s333 + $0x17a8] sm:$0xff]
        %v3414 = vld [vmem:[%s333 + $0x17b0] sm:$0xff]
        %v3415 = vld [vmem:[%s333 + $0x17b8] sm:$0xff]
        %v3416 = vld [vmem:[%s333 + $0x17c0] sm:$0xff]
        %v3417 = vld [vmem:[%s333 + $0x17c8] sm:$0xff]
        %v3418 = vld [vmem:[%s333 + $0x17d0] sm:$0xff]
        %v3419 = vld [vmem:[%s333 + $0x17d8] sm:$0xff]
        %v3420 = vld [vmem:[%s333 + $0x17e0] sm:$0xff]
        %v3421 = vld [vmem:[%s333 + $0x17e8] sm:$0xff]
        %v3422 = vld [vmem:[%s333 + $0x17f0] sm:$0xff]
        %v3423 = vld [vmem:[%s333 + $0x17f8] sm:$0xff]
        %v3424 = vld [vmem:[%s333 + $0x1800] sm:$0xff]
        %v3425 = vld [vmem:[%s333 + $0x1808] sm:$0xff]
        %v3426 = vld [vmem:[%s333 + $0x1810] sm:$0xff]
        %v3427 = vld [vmem:[%s333 + $0x1818] sm:$0xff]
        %v3428 = vld [vmem:[%s333 + $0x1820] sm:$0xff]
        %v3429 = vld [vmem:[%s333 + $0x1828] sm:$0xff]
        %v3430 = vld [vmem:[%s333 + $0x1830] sm:$0xff]
        %v3431 = vld [vmem:[%s333 + $0x1838] sm:$0xff]
        %v3432 = vld [vmem:[%s333 + $0x1840] sm:$0xff]
        %v3433 = vld [vmem:[%s333 + $0x1848] sm:$0xff]
        %v3434 = vld [vmem:[%s333 + $0x1850] sm:$0xff]
        %v3435 = vld [vmem:[%s333 + $0x1858] sm:$0xff]
        %v3436 = vld [vmem:[%s333 + $0x1860] sm:$0xff]
        %v3437 = vld [vmem:[%s333 + $0x1868] sm:$0xff]
        %v3438 = vld [vmem:[%s333 + $0x1870] sm:$0xff]
        %v3439 = vld [vmem:[%s333 + $0x1878] sm:$0xff]
        %v3440 = vld [vmem:[%s333 + $0x1880] sm:$0xff]
        %v3441 = vld [vmem:[%s333 + $0x1888] sm:$0xff]
        %v3442 = vld [vmem:[%s333 + $0x1890] sm:$0xff]
        %v3443 = vld [vmem:[%s333 + $0x1898] sm:$0xff]
        %v3444 = vld [vmem:[%s333 + $0x18a0] sm:$0xff]
        %v3445 = vld [vmem:[%s333 + $0x18a8] sm:$0xff]
        %v3446 = vld [vmem:[%s333 + $0x18b0] sm:$0xff]
        %v3447 = vld [vmem:[%s333 + $0x18b8] sm:$0xff]
        %v3448 = vld [vmem:[%s333 + $0x18c0] sm:$0xff]
        %v3449 = vld [vmem:[%s333 + $0x18c8] sm:$0xff]
        %v3450 = vld [vmem:[%s333 + $0x18d0] sm:$0xff]
        %v3451 = vld [vmem:[%s333 + $0x18d8] sm:$0xff]
        %v3452 = vld [vmem:[%s333 + $0x18e0] sm:$0xff]
        %v3453 = vld [vmem:[%s333 + $0x18e8] sm:$0xff]
        %v3454 = vld [vmem:[%s333 + $0x18f0] sm:$0xff]
        %v3455 = vld [vmem:[%s333 + $0x18f8] sm:$0xff]
        %v3456 = vld [vmem:[%s333 + $0x1900] sm:$0xff]
        %v3457 = vld [vmem:[%s333 + $0x1908] sm:$0xff]
        %v3458 = vld [vmem:[%s333 + $0x1910] sm:$0xff]
        %v3459 = vld [vmem:[%s333 + $0x1918] sm:$0xff]
        %v3460 = vld [vmem:[%s333 + $0x1920] sm:$0xff]
        %v3461 = vld [vmem:[%s333 + $0x1928] sm:$0xff]
        %v3462 = vld [vmem:[%s333 + $0x1930] sm:$0xff]
        %v3463 = vld [vmem:[%s333 + $0x1938] sm:$0xff]
        %v3464 = vld [vmem:[%s333 + $0x1940] sm:$0xff]
        %v3465 = vld [vmem:[%s333 + $0x1948] sm:$0xff]
        %v3466 = vld [vmem:[%s333 + $0x1950] sm:$0xff]
        %v3467 = vld [vmem:[%s333 + $0x1958] sm:$0xff]
        %v3468 = vld [vmem:[%s333 + $0x1960] sm:$0xff]
        %v3469 = vld [vmem:[%s333 + $0x1968] sm:$0xff]
        %v3470 = vld [vmem:[%s333 + $0x1970] sm:$0xff]
        %v3471 = vld [vmem:[%s333 + $0x1978] sm:$0xff]
        %v3472 = vld [vmem:[%s333 + $0x1980] sm:$0xff]
        %v3473 = vld [vmem:[%s333 + $0x1988] sm:$0xff]
        %v3474 = vld [vmem:[%s333 + $0x1990] sm:$0xff]
        %v3475 = vld [vmem:[%s333 + $0x1998] sm:$0xff]
        %v3476 = vld [vmem:[%s333 + $0x19a0] sm:$0xff]
        %v3477 = vld [vmem:[%s333 + $0x19a8] sm:$0xff]
        %v3478 = vld [vmem:[%s333 + $0x19b0] sm:$0xff]
        %v3479 = vld [vmem:[%s333 + $0x19b8] sm:$0xff]
        %v3480 = vld [vmem:[%s333 + $0x19c0] sm:$0xff]
        %v3481 = vld [vmem:[%s333 + $0x19c8] sm:$0xff]
        %v3482 = vld [vmem:[%s333 + $0x19d0] sm:$0xff]
        %v3483 = vld [vmem:[%s333 + $0x19d8] sm:$0xff]
        %v3484 = vld [vmem:[%s333 + $0x19e0] sm:$0xff]
        %v3485 = vld [vmem:[%s333 + $0x19e8] sm:$0xff]
        %v3486 = vld [vmem:[%s333 + $0x19f0] sm:$0xff]
        %v3487 = vld [vmem:[%s333 + $0x19f8] sm:$0xff]
        %v3488 = vld [vmem:[%s333 + $0x1a00] sm:$0xff]
        %v3489 = vld [vmem:[%s333 + $0x1a08] sm:$0xff]
        %v3490 = vld [vmem:[%s333 + $0x1a10] sm:$0xff]
        %v3491 = vld [vmem:[%s333 + $0x1a18] sm:$0xff]
        %v3492 = vld [vmem:[%s333 + $0x1a20] sm:$0xff]
        %v3493 = vld [vmem:[%s333 + $0x1a28] sm:$0xff]
        %v3494 = vld [vmem:[%s333 + $0x1a30] sm:$0xff]
        %v3495 = vld [vmem:[%s333 + $0x1a38] sm:$0xff]
        %v3496 = vld [vmem:[%s333 + $0x1a40] sm:$0xff]
        %v3497 = vld [vmem:[%s333 + $0x1a48] sm:$0xff]
        %v3498 = vld [vmem:[%s333 + $0x1a50] sm:$0xff]
        %v3499 = vld [vmem:[%s333 + $0x1a58] sm:$0xff]
        %v3500 = vld [vmem:[%s333 + $0x1a60] sm:$0xff]
        %v3501 = vld [vmem:[%s333 + $0x1a68] sm:$0xff]
        %v3502 = vld [vmem:[%s333 + $0x1a70] sm:$0xff]
        %v3503 = vld [vmem:[%s333 + $0x1a78] sm:$0xff]
        %v3504 = vld [vmem:[%s333 + $0x1a80] sm:$0xff]
        %v3505 = vld [vmem:[%s333 + $0x1a88] sm:$0xff]
        %v3506 = vld [vmem:[%s333 + $0x1a90] sm:$0xff]
        %v3507 = vld [vmem:[%s333 + $0x1a98] sm:$0xff]
        %v3508 = vld [vmem:[%s333 + $0x1aa0] sm:$0xff]
        %v3509 = vld [vmem:[%s333 + $0x1aa8] sm:$0xff]
        %v3510 = vld [vmem:[%s333 + $0x1ab0] sm:$0xff]
        %v3511 = vld [vmem:[%s333 + $0x1ab8] sm:$0xff]
        %v3512 = vld [vmem:[%s333 + $0x1ac0] sm:$0xff]
        %v3513 = vld [vmem:[%s333 + $0x1ac8] sm:$0xff]
        %v3514 = vld [vmem:[%s333 + $0x1ad0] sm:$0xff]
        %v3515 = vld [vmem:[%s333 + $0x1ad8] sm:$0xff]
        %v3516 = vld [vmem:[%s333 + $0x1ae0] sm:$0xff]
        %v3517 = vld [vmem:[%s333 + $0x1ae8] sm:$0xff]
        %v3518 = vld [vmem:[%s333 + $0x1af0] sm:$0xff]
        %v3519 = vld [vmem:[%s333 + $0x1af8] sm:$0xff]
        %v3520 = vld [vmem:[%s333 + $0x1b00] sm:$0xff]
        %v3521 = vld [vmem:[%s333 + $0x1b08] sm:$0xff]
        %v3522 = vld [vmem:[%s333 + $0x1b10] sm:$0xff]
        %v3523 = vld [vmem:[%s333 + $0x1b18] sm:$0xff]
        %v3524 = vld [vmem:[%s333 + $0x1b20] sm:$0xff]
        %v3525 = vld [vmem:[%s333 + $0x1b28] sm:$0xff]
        %v3526 = vld [vmem:[%s333 + $0x1b30] sm:$0xff]
        %v3527 = vld [vmem:[%s333 + $0x1b38] sm:$0xff]
        %v3528 = vld [vmem:[%s333 + $0x1b40] sm:$0xff]
        %v3529 = vld [vmem:[%s333 + $0x1b48] sm:$0xff]
        %v3530 = vld [vmem:[%s333 + $0x1b50] sm:$0xff]
        %v3531 = vld [vmem:[%s333 + $0x1b58] sm:$0xff]
        %v3532 = vld [vmem:[%s333 + $0x1b60] sm:$0xff]
        %v3533 = vld [vmem:[%s333 + $0x1b68] sm:$0xff]
        %v3534 = vld [vmem:[%s333 + $0x1b70] sm:$0xff]
        %v3535 = vld [vmem:[%s333 + $0x1b78] sm:$0xff]
        %v3536 = vld [vmem:[%s333 + $0x1b80] sm:$0xff]
        %v3537 = vld [vmem:[%s333 + $0x1b88] sm:$0xff]
        %v3538 = vld [vmem:[%s333 + $0x1b90] sm:$0xff]
        %v3539 = vld [vmem:[%s333 + $0x1b98] sm:$0xff]
        %v3540 = vld [vmem:[%s333 + $0x1ba0] sm:$0xff]
        %v3541 = vld [vmem:[%s333 + $0x1ba8] sm:$0xff]
        %v3542 = vld [vmem:[%s333 + $0x1bb0] sm:$0xff]
        %v3543 = vld [vmem:[%s333 + $0x1bb8] sm:$0xff]
        %v3544 = vld [vmem:[%s333 + $0x1bc0] sm:$0xff]
        %v3545 = vld [vmem:[%s333 + $0x1bc8] sm:$0xff]
        %v3546 = vld [vmem:[%s333 + $0x1bd0] sm:$0xff]
        %v3547 = vld [vmem:[%s333 + $0x1bd8] sm:$0xff]
        %v3548 = vld [vmem:[%s333 + $0x1be0] sm:$0xff]
        %v3549 = vld [vmem:[%s333 + $0x1be8] sm:$0xff]
        %v3550 = vld [vmem:[%s333 + $0x1bf0] sm:$0xff]
        %v3551 = vld [vmem:[%s333 + $0x1bf8] sm:$0xff]
        %v3552 = vld [vmem:[%s333 + $0x1c00] sm:$0xff]
        %v3553 = vld [vmem:[%s333 + $0x1c08] sm:$0xff]
        %v3554 = vld [vmem:[%s333 + $0x1c10] sm:$0xff]
        %v3555 = vld [vmem:[%s333 + $0x1c18] sm:$0xff]
        %v3556 = vld [vmem:[%s333 + $0x1c20] sm:$0xff]
        %v3557 = vld [vmem:[%s333 + $0x1c28] sm:$0xff]
        %v3558 = vld [vmem:[%s333 + $0x1c30] sm:$0xff]
        %v3559 = vld [vmem:[%s333 + $0x1c38] sm:$0xff]
        %v3560 = vld [vmem:[%s333 + $0x1c40] sm:$0xff]
        %v3561 = vld [vmem:[%s333 + $0x1c48] sm:$0xff]
        %v3562 = vld [vmem:[%s333 + $0x1c50] sm:$0xff]
        %v3563 = vld [vmem:[%s333 + $0x1c58] sm:$0xff]
        %v3564 = vld [vmem:[%s333 + $0x1c60] sm:$0xff]
        %v3565 = vld [vmem:[%s333 + $0x1c68] sm:$0xff]
        %v3566 = vld [vmem:[%s333 + $0x1c70] sm:$0xff]
        %v3567 = vld [vmem:[%s333 + $0x1c78] sm:$0xff]
        %v3568 = vld [vmem:[%s333 + $0x1c80] sm:$0xff]
        %v3569 = vld [vmem:[%s333 + $0x1c88] sm:$0xff]
        %v3570 = vld [vmem:[%s333 + $0x1c90] sm:$0xff]
        %v3571 = vld [vmem:[%s333 + $0x1c98] sm:$0xff]
        %v3572 = vld [vmem:[%s333 + $0x1ca0] sm:$0xff]
        %v3573 = vld [vmem:[%s333 + $0x1ca8] sm:$0xff]
        %v3574 = vld [vmem:[%s333 + $0x1cb0] sm:$0xff]
        %v3575 = vld [vmem:[%s333 + $0x1cb8] sm:$0xff]
        %v3576 = vld [vmem:[%s333 + $0x1cc0] sm:$0xff]
        %v3577 = vld [vmem:[%s333 + $0x1cc8] sm:$0xff]
        %v3578 = vld [vmem:[%s333 + $0x1cd0] sm:$0xff]
        %v3579 = vld [vmem:[%s333 + $0x1cd8] sm:$0xff]
        %v3580 = vld [vmem:[%s333 + $0x1ce0] sm:$0xff]
        %v3581 = vld [vmem:[%s333 + $0x1ce8] sm:$0xff]
        %v3582 = vld [vmem:[%s333 + $0x1cf0] sm:$0xff]
        %v3583 = vld [vmem:[%s333 + $0x1cf8] sm:$0xff]
        %v3584 = vld [vmem:[%s333 + $0x1d00] sm:$0xff]
        %v3585 = vld [vmem:[%s333 + $0x1d08] sm:$0xff]
        %v3586 = vld [vmem:[%s333 + $0x1d10] sm:$0xff]
        %v3587 = vld [vmem:[%s333 + $0x1d18] sm:$0xff]
        %v3588 = vld [vmem:[%s333 + $0x1d20] sm:$0xff]
        %v3589 = vld [vmem:[%s333 + $0x1d28] sm:$0xff]
        %v3590 = vld [vmem:[%s333 + $0x1d30] sm:$0xff]
        %v3591 = vld [vmem:[%s333 + $0x1d38] sm:$0xff]
        %v3592 = vld [vmem:[%s333 + $0x1d40] sm:$0xff]
        %v3593 = vld [vmem:[%s333 + $0x1d48] sm:$0xff]
        %v3594 = vld [vmem:[%s333 + $0x1d50] sm:$0xff]
        %v3595 = vld [vmem:[%s333 + $0x1d58] sm:$0xff]
        %v3596 = vld [vmem:[%s333 + $0x1d60] sm:$0xff]
        %v3597 = vld [vmem:[%s333 + $0x1d68] sm:$0xff]
        %v3598 = vld [vmem:[%s333 + $0x1d70] sm:$0xff]
        %v3599 = vld [vmem:[%s333 + $0x1d78] sm:$0xff]
        %v3600 = vld [vmem:[%s333 + $0x1d80] sm:$0xff]
        %v3601 = vld [vmem:[%s333 + $0x1d88] sm:$0xff]
        %v3602 = vld [vmem:[%s333 + $0x1d90] sm:$0xff]
        %v3603 = vld [vmem:[%s333 + $0x1d98] sm:$0xff]
        %v3604 = vld [vmem:[%s333 + $0x1da0] sm:$0xff]
        %v3605 = vld [vmem:[%s333 + $0x1da8] sm:$0xff]
        %v3606 = vld [vmem:[%s333 + $0x1db0] sm:$0xff]
        %v3607 = vld [vmem:[%s333 + $0x1db8] sm:$0xff]
        %v3608 = vld [vmem:[%s333 + $0x1dc0] sm:$0xff]
        %v3609 = vld [vmem:[%s333 + $0x1dc8] sm:$0xff]
        %v3610 = vld [vmem:[%s333 + $0x1dd0] sm:$0xff]
        %v3611 = vld [vmem:[%s333 + $0x1dd8] sm:$0xff]
        %v3612 = vld [vmem:[%s333 + $0x1de0] sm:$0xff]
        %v3613 = vld [vmem:[%s333 + $0x1de8] sm:$0xff]
        %v3614 = vld [vmem:[%s333 + $0x1df0] sm:$0xff]
        %v3615 = vld [vmem:[%s333 + $0x1df8] sm:$0xff]
        %v3616 = vld [vmem:[%s333 + $0x1e00] sm:$0xff]
        %v3617 = vld [vmem:[%s333 + $0x1e08] sm:$0xff]
        %v3618 = vld [vmem:[%s333 + $0x1e10] sm:$0xff]
        %v3619 = vld [vmem:[%s333 + $0x1e18] sm:$0xff]
        %v3620 = vld [vmem:[%s333 + $0x1e20] sm:$0xff]
        %v3621 = vld [vmem:[%s333 + $0x1e28] sm:$0xff]
        %v3622 = vld [vmem:[%s333 + $0x1e30] sm:$0xff]
        %v3623 = vld [vmem:[%s333 + $0x1e38] sm:$0xff]
        %v3624 = vld [vmem:[%s333 + $0x1e40] sm:$0xff]
        %v3625 = vld [vmem:[%s333 + $0x1e48] sm:$0xff]
        %v3626 = vld [vmem:[%s333 + $0x1e50] sm:$0xff]
        %v3627 = vld [vmem:[%s333 + $0x1e58] sm:$0xff]
        %v3628 = vld [vmem:[%s333 + $0x1e60] sm:$0xff]
        %v3629 = vld [vmem:[%s333 + $0x1e68] sm:$0xff]
        %v3630 = vld [vmem:[%s333 + $0x1e70] sm:$0xff]
        %v3631 = vld [vmem:[%s333 + $0x1e78] sm:$0xff]
        %v3632 = vld [vmem:[%s333 + $0x1e80] sm:$0xff]
        %v3633 = vld [vmem:[%s333 + $0x1e88] sm:$0xff]
        %v3634 = vld [vmem:[%s333 + $0x1e90] sm:$0xff]
        %v3635 = vld [vmem:[%s333 + $0x1e98] sm:$0xff]
        %v3636 = vld [vmem:[%s333 + $0x1ea0] sm:$0xff]
        %v3637 = vld [vmem:[%s333 + $0x1ea8] sm:$0xff]
        %v3638 = vld [vmem:[%s333 + $0x1eb0] sm:$0xff]
        %v3639 = vld [vmem:[%s333 + $0x1eb8] sm:$0xff]
        %v3640 = vld [vmem:[%s333 + $0x1ec0] sm:$0xff]
        %v3641 = vld [vmem:[%s333 + $0x1ec8] sm:$0xff]
        %v3642 = vld [vmem:[%s333 + $0x1ed0] sm:$0xff]
        %v3643 = vld [vmem:[%s333 + $0x1ed8] sm:$0xff]
        %v3644 = vld [vmem:[%s333 + $0x1ee0] sm:$0xff]
        %v3645 = vld [vmem:[%s333 + $0x1ee8] sm:$0xff]
        %v3646 = vld [vmem:[%s333 + $0x1ef0] sm:$0xff]
        %v3647 = vld [vmem:[%s333 + $0x1ef8] sm:$0xff]
        %v3648 = vld [vmem:[%s333 + $0x1f00] sm:$0xff]
        %v3649 = vld [vmem:[%s333 + $0x1f08] sm:$0xff]
        %v3650 = vld [vmem:[%s333 + $0x1f10] sm:$0xff]
        %v3651 = vld [vmem:[%s333 + $0x1f18] sm:$0xff]
        %v3652 = vld [vmem:[%s333 + $0x1f20] sm:$0xff]
        %v3653 = vld [vmem:[%s333 + $0x1f28] sm:$0xff]
        %v3654 = vld [vmem:[%s333 + $0x1f30] sm:$0xff]
        %v3655 = vld [vmem:[%s333 + $0x1f38] sm:$0xff]
        %v3656 = vld [vmem:[%s333 + $0x1f40] sm:$0xff]
        %v3657 = vld [vmem:[%s333 + $0x1f48] sm:$0xff]
        %v3658 = vld [vmem:[%s333 + $0x1f50] sm:$0xff]
        %v3659 = vld [vmem:[%s333 + $0x1f58] sm:$0xff]
        %v3660 = vld [vmem:[%s333 + $0x1f60] sm:$0xff]
        %v3661 = vld [vmem:[%s333 + $0x1f68] sm:$0xff]
        %v3662 = vld [vmem:[%s333 + $0x1f70] sm:$0xff]
        %v3663 = vld [vmem:[%s333 + $0x1f78] sm:$0xff]
        %v3664 = vld [vmem:[%s333 + $0x1f80] sm:$0xff]
        %v3665 = vld [vmem:[%s333 + $0x1f88] sm:$0xff]
        %v3666 = vld [vmem:[%s333 + $0x1f90] sm:$0xff]
        %v3667 = vld [vmem:[%s333 + $0x1f98] sm:$0xff]
        %v3668 = vld [vmem:[%s333 + $0x1fa0] sm:$0xff]
        %v3669 = vld [vmem:[%s333 + $0x1fa8] sm:$0xff]
        %v3670 = vld [vmem:[%s333 + $0x1fb0] sm:$0xff]
        %v3671 = vld [vmem:[%s333 + $0x1fb8] sm:$0xff]
        %v3672 = vld [vmem:[%s333 + $0x1fc0] sm:$0xff]
        %v3673 = vld [vmem:[%s333 + $0x1fc8] sm:$0xff]
        %v3674 = vld [vmem:[%s333 + $0x1fd0] sm:$0xff]
        %v3675 = vld [vmem:[%s333 + $0x1fd8] sm:$0xff]
        %v3676 = vld [vmem:[%s333 + $0x1fe0] sm:$0xff]
        %v3677 = vld [vmem:[%s333 + $0x1fe8] sm:$0xff]
        %v3678 = vld [vmem:[%s333 + $0x1ff0] sm:$0xff]
        %v3679 = vld [vmem:[%s333 + $0x1ff8] sm:$0xff]
        %v3680 = vld [vmem:[%s342] sm:$0xf]
        %v3682 = vlaneseq
        %v3683 = vshrl.u32 %v3682, 7
        %v3684 = vsub.s32 0, %v3683
        %v3685 = vrot.slane %v3680, %v3684
        %v3686 = vlaneseq
        %v3687 = vshrl.u32 %v3686, 7
        %v3688 = vsub.s32 1, %v3687
        %v3689 = vrot.slane %v3680, %v3688
        %v3690 = vlaneseq
        %v3691 = vshrl.u32 %v3690, 7
        %v3692 = vsub.s32 2, %v3691
        %v3693 = vrot.slane %v3680, %v3692
        %v3694 = vlaneseq
        %v3695 = vshrl.u32 %v3694, 7
        %v3696 = vsub.s32 3, %v3695
        %v3697 = vrot.slane %v3680, %v3696
        %3702 = vmatprep.subr.mxu0 %v2717
        %3703 = vmatpush1.msra.mxu0 %v2716
        %3704 = vmatprep.subr.mxu0 %v2713
        %3705 = vmatpush1.msra.mxu0 %v2712
        %3706 = vmatprep.subr.mxu0 %v2709
        %3707 = vmatpush1.msra.mxu0 %v2708
        %3708 = vmatprep.subr.mxu0 %v2705
        %3709 = vmatpush1.msra.mxu0 %v2704
        %3710 = vmatprep.subr.mxu0 %v2701
        %3711 = vmatpush1.msra.mxu0 %v2700
        %3712 = vmatprep.subr.mxu0 %v2697
        %3713 = vmatpush1.msra.mxu0 %v2696
        %3714 = vmatprep.subr.mxu0 %v2693
        %3715 = vmatpush1.msra.mxu0 %v2692
        %3716 = vmatprep.subr.mxu0 %v2689
        %3717 = vmatpush1.msra.mxu0 %v2688
        %3718 = vmatprep.subr.mxu0 %v2685
        %3719 = vmatpush1.msra.mxu0 %v2684
        %3720 = vmatprep.subr.mxu0 %v2681
        %3721 = vmatpush1.msra.mxu0 %v2680
        %3722 = vmatprep.subr.mxu0 %v2677
        %3723 = vmatpush1.msra.mxu0 %v2676
        %3724 = vmatprep.subr.mxu0 %v2673
        %3725 = vmatpush1.msra.mxu0 %v2672
        %3726 = vmatprep.subr.mxu0 %v2669
        %3727 = vmatpush1.msra.mxu0 %v2668
        %3728 = vmatprep.subr.mxu0 %v2665
        %3729 = vmatpush1.msra.mxu0 %v2664
        %3730 = vmatprep.subr.mxu0 %v2661
        %3731 = vmatpush1.msra.mxu0 %v2660
        %3732 = vmatprep.subr.mxu0 %v2657
        %3733 = vmatpush1.msra.mxu0 %v2656
        %3734 = vmatprep.subr.mxu0 %v2781
        %3735 = vmatpush2.msra.mxu0 %v2780
        %3736 = vmatprep.subr.mxu0 %v2777
        %3737 = vmatpush2.msra.mxu0 %v2776
        %3738 = vmatprep.subr.mxu0 %v2773
        %3739 = vmatpush2.msra.mxu0 %v2772
        %3740 = vmatprep.subr.mxu0 %v2769
        %3741 = vmatpush2.msra.mxu0 %v2768
        %3742 = vmatprep.subr.mxu0 %v2765
        %3743 = vmatpush2.msra.mxu0 %v2764
        %3744 = vmatprep.subr.mxu0 %v2761
        %3745 = vmatpush2.msra.mxu0 %v2760
        %3746 = vmatprep.subr.mxu0 %v2757
        %3747 = vmatpush2.msra.mxu0 %v2756
        %3748 = vmatprep.subr.mxu0 %v2753
        %3749 = vmatpush2.msra.mxu0 %v2752
        %3750 = vmatprep.subr.mxu0 %v2749
        %3751 = vmatpush2.msra.mxu0 %v2748
        %3752 = vmatprep.subr.mxu0 %v2745
        %3753 = vmatpush2.msra.mxu0 %v2744
        %3754 = vmatprep.subr.mxu0 %v2741
        %3755 = vmatpush2.msra.mxu0 %v2740
        %3756 = vmatprep.subr.mxu0 %v2737
        %3757 = vmatpush2.msra.mxu0 %v2736
        %3758 = vmatprep.subr.mxu0 %v2733
        %3759 = vmatpush2.msra.mxu0 %v2732
        %3760 = vmatprep.subr.mxu0 %v2729
        %3761 = vmatpush2.msra.mxu0 %v2728
        %3762 = vmatprep.subr.mxu0 %v2725
        %3763 = vmatpush2.msra.mxu0 %v2724
        %3764 = vmatprep.subr.mxu0 %v2721
        %3765 = vmatpush2.msra.mxu0 %v2720
        %3766 = vmatprep.mubr.f32.mxu0 %v2641
        %3767 = vmatmul.mubr.f32.gmra.mxu0 %v2640
        %v3768 = vpop.f32.mrf.mxu0
        %v3769 = vadd.f32 %v3685, %v3768
        %v3770 = vpop.f32.mrf.mxu0
        %v3771 = vadd.f32 %v3689, %v3770
        %3772 = vdwg.mxu0
        %3773 = vmatprep.subr.mxu0 %v2845
        %3774 = vmatpush1.msra.mxu0 %v2844
        %3775 = vmatprep.subr.mxu0 %v2841
        %3776 = vmatpush1.msra.mxu0 %v2840
        %3777 = vmatprep.subr.mxu0 %v2837
        %3778 = vmatpush1.msra.mxu0 %v2836
        %3779 = vmatprep.subr.mxu0 %v2833
        %3780 = vmatpush1.msra.mxu0 %v2832
        %3781 = vmatprep.subr.mxu0 %v2829
        %3782 = vmatpush1.msra.mxu0 %v2828
        %3783 = vmatprep.subr.mxu0 %v2825
        %3784 = vmatpush1.msra.mxu0 %v2824
        %3785 = vmatprep.subr.mxu0 %v2821
        %3786 = vmatpush1.msra.mxu0 %v2820
        %3787 = vmatprep.subr.mxu0 %v2817
        %3788 = vmatpush1.msra.mxu0 %v2816
        %3789 = vmatprep.subr.mxu0 %v2813
        %3790 = vmatpush1.msra.mxu0 %v2812
        %3791 = vmatprep.subr.mxu0 %v2809
        %3792 = vmatpush1.msra.mxu0 %v2808
        %3793 = vmatprep.subr.mxu0 %v2805
        %3794 = vmatpush1.msra.mxu0 %v2804
        %3795 = vmatprep.subr.mxu0 %v2801
        %3796 = vmatpush1.msra.mxu0 %v2800
        %3797 = vmatprep.subr.mxu0 %v2797
        %3798 = vmatpush1.msra.mxu0 %v2796
        %3799 = vmatprep.subr.mxu0 %v2793
        %3800 = vmatpush1.msra.mxu0 %v2792
        %3801 = vmatprep.subr.mxu0 %v2789
        %3802 = vmatpush1.msra.mxu0 %v2788
        %3803 = vmatprep.subr.mxu0 %v2785
        %3804 = vmatpush1.msra.mxu0 %v2784
        %3805 = vmatprep.subr.mxu0 %v2909
        %3806 = vmatpush2.msra.mxu0 %v2908
        %3807 = vmatprep.subr.mxu0 %v2905
        %3808 = vmatpush2.msra.mxu0 %v2904
        %3809 = vmatprep.subr.mxu0 %v2901
        %3810 = vmatpush2.msra.mxu0 %v2900
        %3811 = vmatprep.subr.mxu0 %v2897
        %3812 = vmatpush2.msra.mxu0 %v2896
        %3813 = vmatprep.subr.mxu0 %v2893
        %3814 = vmatpush2.msra.mxu0 %v2892
        %3815 = vmatprep.subr.mxu0 %v2889
        %3816 = vmatpush2.msra.mxu0 %v2888
        %3817 = vmatprep.subr.mxu0 %v2885
        %3818 = vmatpush2.msra.mxu0 %v2884
        %3819 = vmatprep.subr.mxu0 %v2881
        %3820 = vmatpush2.msra.mxu0 %v2880
        %3821 = vmatprep.subr.mxu0 %v2877
        %3822 = vmatpush2.msra.mxu0 %v2876
        %3823 = vmatprep.subr.mxu0 %v2873
        %3824 = vmatpush2.msra.mxu0 %v2872
        %3825 = vmatprep.subr.mxu0 %v2869
        %3826 = vmatpush2.msra.mxu0 %v2868
        %3827 = vmatprep.subr.mxu0 %v2865
        %3828 = vmatpush2.msra.mxu0 %v2864
        %3829 = vmatprep.subr.mxu0 %v2861
        %3830 = vmatpush2.msra.mxu0 %v2860
        %3831 = vmatprep.subr.mxu0 %v2857
        %3832 = vmatpush2.msra.mxu0 %v2856
        %3833 = vmatprep.subr.mxu0 %v2853
        %3834 = vmatpush2.msra.mxu0 %v2852
        %3835 = vmatprep.subr.mxu0 %v2849
        %3836 = vmatpush2.msra.mxu0 %v2848
        %3837 = vmatprep.mubr.f32.mxu0 %v2643
        %3838 = vmatmul.mubr.f32.gmra.mxu0 %v2642
        %v3839 = vpop.f32.mrf.mxu0
        %v3840 = vadd.f32 %v3769, %v3839
        %v3841 = vpop.f32.mrf.mxu0
        %v3842 = vadd.f32 %v3771, %v3841
        %3843 = vdwg.mxu0
        %3844 = vmatprep.subr.mxu0 %v2973
        %3845 = vmatpush1.msra.mxu0 %v2972
        %3846 = vmatprep.subr.mxu0 %v2969
        %3847 = vmatpush1.msra.mxu0 %v2968
        %3848 = vmatprep.subr.mxu0 %v2965
        %3849 = vmatpush1.msra.mxu0 %v2964
        %3850 = vmatprep.subr.mxu0 %v2961
        %3851 = vmatpush1.msra.mxu0 %v2960
        %3852 = vmatprep.subr.mxu0 %v2957
        %3853 = vmatpush1.msra.mxu0 %v2956
        %3854 = vmatprep.subr.mxu0 %v2953
        %3855 = vmatpush1.msra.mxu0 %v2952
        %3856 = vmatprep.subr.mxu0 %v2949
        %3857 = vmatpush1.msra.mxu0 %v2948
        %3858 = vmatprep.subr.mxu0 %v2945
        %3859 = vmatpush1.msra.mxu0 %v2944
        %3860 = vmatprep.subr.mxu0 %v2941
        %3861 = vmatpush1.msra.mxu0 %v2940
        %3862 = vmatprep.subr.mxu0 %v2937
        %3863 = vmatpush1.msra.mxu0 %v2936
        %3864 = vmatprep.subr.mxu0 %v2933
        %3865 = vmatpush1.msra.mxu0 %v2932
        %3866 = vmatprep.subr.mxu0 %v2929
        %3867 = vmatpush1.msra.mxu0 %v2928
        %3868 = vmatprep.subr.mxu0 %v2925
        %3869 = vmatpush1.msra.mxu0 %v2924
        %3870 = vmatprep.subr.mxu0 %v2921
        %3871 = vmatpush1.msra.mxu0 %v2920
        %3872 = vmatprep.subr.mxu0 %v2917
        %3873 = vmatpush1.msra.mxu0 %v2916
        %3874 = vmatprep.subr.mxu0 %v2913
        %3875 = vmatpush1.msra.mxu0 %v2912
        %3876 = vmatprep.subr.mxu0 %v3037
        %3877 = vmatpush2.msra.mxu0 %v3036
        %3878 = vmatprep.subr.mxu0 %v3033
        %3879 = vmatpush2.msra.mxu0 %v3032
        %3880 = vmatprep.subr.mxu0 %v3029
        %3881 = vmatpush2.msra.mxu0 %v3028
        %3882 = vmatprep.subr.mxu0 %v3025
        %3883 = vmatpush2.msra.mxu0 %v3024
        %3884 = vmatprep.subr.mxu0 %v3021
        %3885 = vmatpush2.msra.mxu0 %v3020
        %3886 = vmatprep.subr.mxu0 %v3017
        %3887 = vmatpush2.msra.mxu0 %v3016
        %3888 = vmatprep.subr.mxu0 %v3013
        %3889 = vmatpush2.msra.mxu0 %v3012
        %3890 = vmatprep.subr.mxu0 %v3009
        %3891 = vmatpush2.msra.mxu0 %v3008
        %3892 = vmatprep.subr.mxu0 %v3005
        %3893 = vmatpush2.msra.mxu0 %v3004
        %3894 = vmatprep.subr.mxu0 %v3001
        %3895 = vmatpush2.msra.mxu0 %v3000
        %3896 = vmatprep.subr.mxu0 %v2997
        %3897 = vmatpush2.msra.mxu0 %v2996
        %3898 = vmatprep.subr.mxu0 %v2993
        %3899 = vmatpush2.msra.mxu0 %v2992
        %3900 = vmatprep.subr.mxu0 %v2989
        %3901 = vmatpush2.msra.mxu0 %v2988
        %3902 = vmatprep.subr.mxu0 %v2985
        %3903 = vmatpush2.msra.mxu0 %v2984
        %3904 = vmatprep.subr.mxu0 %v2981
        %3905 = vmatpush2.msra.mxu0 %v2980
        %3906 = vmatprep.subr.mxu0 %v2977
        %3907 = vmatpush2.msra.mxu0 %v2976
        %3908 = vmatprep.mubr.f32.mxu0 %v2645
        %3909 = vmatmul.mubr.f32.gmra.mxu0 %v2644
        %v3910 = vpop.f32.mrf.mxu0
        %v3911 = vadd.f32 %v3840, %v3910
        %v3912 = vpop.f32.mrf.mxu0
        %v3913 = vadd.f32 %v3842, %v3912
        %3914 = vdwg.mxu0
        %3915 = vmatprep.subr.mxu0 %v3101
        %3916 = vmatpush1.msra.mxu0 %v3100
        %3917 = vmatprep.subr.mxu0 %v3097
        %3918 = vmatpush1.msra.mxu0 %v3096
        %3919 = vmatprep.subr.mxu0 %v3093
        %3920 = vmatpush1.msra.mxu0 %v3092
        %3921 = vmatprep.subr.mxu0 %v3089
        %3922 = vmatpush1.msra.mxu0 %v3088
        %3923 = vmatprep.subr.mxu0 %v3085
        %3924 = vmatpush1.msra.mxu0 %v3084
        %3925 = vmatprep.subr.mxu0 %v3081
        %3926 = vmatpush1.msra.mxu0 %v3080
        %3927 = vmatprep.subr.mxu0 %v3077
        %3928 = vmatpush1.msra.mxu0 %v3076
        %3929 = vmatprep.subr.mxu0 %v3073
        %3930 = vmatpush1.msra.mxu0 %v3072
        %3931 = vmatprep.subr.mxu0 %v3069
        %3932 = vmatpush1.msra.mxu0 %v3068
        %3933 = vmatprep.subr.mxu0 %v3065
        %3934 = vmatpush1.msra.mxu0 %v3064
        %3935 = vmatprep.subr.mxu0 %v3061
        %3936 = vmatpush1.msra.mxu0 %v3060
        %3937 = vmatprep.subr.mxu0 %v3057
        %3938 = vmatpush1.msra.mxu0 %v3056
        %3939 = vmatprep.subr.mxu0 %v3053
        %3940 = vmatpush1.msra.mxu0 %v3052
        %3941 = vmatprep.subr.mxu0 %v3049
        %3942 = vmatpush1.msra.mxu0 %v3048
        %3943 = vmatprep.subr.mxu0 %v3045
        %3944 = vmatpush1.msra.mxu0 %v3044
        %3945 = vmatprep.subr.mxu0 %v3041
        %3946 = vmatpush1.msra.mxu0 %v3040
        %3947 = vmatprep.subr.mxu0 %v3165
        %3948 = vmatpush2.msra.mxu0 %v3164
        %3949 = vmatprep.subr.mxu0 %v3161
        %3950 = vmatpush2.msra.mxu0 %v3160
        %3951 = vmatprep.subr.mxu0 %v3157
        %3952 = vmatpush2.msra.mxu0 %v3156
        %3953 = vmatprep.subr.mxu0 %v3153
        %3954 = vmatpush2.msra.mxu0 %v3152
        %3955 = vmatprep.subr.mxu0 %v3149
        %3956 = vmatpush2.msra.mxu0 %v3148
        %3957 = vmatprep.subr.mxu0 %v3145
        %3958 = vmatpush2.msra.mxu0 %v3144
        %3959 = vmatprep.subr.mxu0 %v3141
        %3960 = vmatpush2.msra.mxu0 %v3140
        %3961 = vmatprep.subr.mxu0 %v3137
        %3962 = vmatpush2.msra.mxu0 %v3136
        %3963 = vmatprep.subr.mxu0 %v3133
        %3964 = vmatpush2.msra.mxu0 %v3132
        %3965 = vmatprep.subr.mxu0 %v3129
        %3966 = vmatpush2.msra.mxu0 %v3128
        %3967 = vmatprep.subr.mxu0 %v3125
        %3968 = vmatpush2.msra.mxu0 %v3124
        %3969 = vmatprep.subr.mxu0 %v3121
        %3970 = vmatpush2.msra.mxu0 %v3120
        %3971 = vmatprep.subr.mxu0 %v3117
        %3972 = vmatpush2.msra.mxu0 %v3116
        %3973 = vmatprep.subr.mxu0 %v3113
        %3974 = vmatpush2.msra.mxu0 %v3112
        %3975 = vmatprep.subr.mxu0 %v3109
        %3976 = vmatpush2.msra.mxu0 %v3108
        %3977 = vmatprep.subr.mxu0 %v3105
        %3978 = vmatpush2.msra.mxu0 %v3104
        %3979 = vmatprep.mubr.f32.mxu0 %v2647
        %3980 = vmatmul.mubr.f32.gmra.mxu0 %v2646
        %v3981 = vpop.f32.mrf.mxu0
        %v3982 = vadd.f32 %v3911, %v3981
        %v3983 = vpop.f32.mrf.mxu0
        %v3984 = vadd.f32 %v3913, %v3983
        %3985 = vdwg.mxu0
        %3986 = vmatprep.subr.mxu0 %v3229
        %3987 = vmatpush1.msra.mxu0 %v3228
        %3988 = vmatprep.subr.mxu0 %v3225
        %3989 = vmatpush1.msra.mxu0 %v3224
        %3990 = vmatprep.subr.mxu0 %v3221
        %3991 = vmatpush1.msra.mxu0 %v3220
        %3992 = vmatprep.subr.mxu0 %v3217
        %3993 = vmatpush1.msra.mxu0 %v3216
        %3994 = vmatprep.subr.mxu0 %v3213
        %3995 = vmatpush1.msra.mxu0 %v3212
        %3996 = vmatprep.subr.mxu0 %v3209
        %3997 = vmatpush1.msra.mxu0 %v3208
        %3998 = vmatprep.subr.mxu0 %v3205
        %3999 = vmatpush1.msra.mxu0 %v3204
        %4000 = vmatprep.subr.mxu0 %v3201
        %4001 = vmatpush1.msra.mxu0 %v3200
        %4002 = vmatprep.subr.mxu0 %v3197
        %4003 = vmatpush1.msra.mxu0 %v3196
        %4004 = vmatprep.subr.mxu0 %v3193
        %4005 = vmatpush1.msra.mxu0 %v3192
        %4006 = vmatprep.subr.mxu0 %v3189
        %4007 = vmatpush1.msra.mxu0 %v3188
        %4008 = vmatprep.subr.mxu0 %v3185
        %4009 = vmatpush1.msra.mxu0 %v3184
        %4010 = vmatprep.subr.mxu0 %v3181
        %4011 = vmatpush1.msra.mxu0 %v3180
        %4012 = vmatprep.subr.mxu0 %v3177
        %4013 = vmatpush1.msra.mxu0 %v3176
        %4014 = vmatprep.subr.mxu0 %v3173
        %4015 = vmatpush1.msra.mxu0 %v3172
        %4016 = vmatprep.subr.mxu0 %v3169
        %4017 = vmatpush1.msra.mxu0 %v3168
        %4018 = vmatprep.subr.mxu0 %v3293
        %4019 = vmatpush2.msra.mxu0 %v3292
        %4020 = vmatprep.subr.mxu0 %v3289
        %4021 = vmatpush2.msra.mxu0 %v3288
        %4022 = vmatprep.subr.mxu0 %v3285
        %4023 = vmatpush2.msra.mxu0 %v3284
        %4024 = vmatprep.subr.mxu0 %v3281
        %4025 = vmatpush2.msra.mxu0 %v3280
        %4026 = vmatprep.subr.mxu0 %v3277
        %4027 = vmatpush2.msra.mxu0 %v3276
        %4028 = vmatprep.subr.mxu0 %v3273
        %4029 = vmatpush2.msra.mxu0 %v3272
        %4030 = vmatprep.subr.mxu0 %v3269
        %4031 = vmatpush2.msra.mxu0 %v3268
        %4032 = vmatprep.subr.mxu0 %v3265
        %4033 = vmatpush2.msra.mxu0 %v3264
        %4034 = vmatprep.subr.mxu0 %v3261
        %4035 = vmatpush2.msra.mxu0 %v3260
        %4036 = vmatprep.subr.mxu0 %v3257
        %4037 = vmatpush2.msra.mxu0 %v3256
        %4038 = vmatprep.subr.mxu0 %v3253
        %4039 = vmatpush2.msra.mxu0 %v3252
        %4040 = vmatprep.subr.mxu0 %v3249
        %4041 = vmatpush2.msra.mxu0 %v3248
        %4042 = vmatprep.subr.mxu0 %v3245
        %4043 = vmatpush2.msra.mxu0 %v3244
        %4044 = vmatprep.subr.mxu0 %v3241
        %4045 = vmatpush2.msra.mxu0 %v3240
        %4046 = vmatprep.subr.mxu0 %v3237
        %4047 = vmatpush2.msra.mxu0 %v3236
        %4048 = vmatprep.subr.mxu0 %v3233
        %4049 = vmatpush2.msra.mxu0 %v3232
        %4050 = vmatprep.mubr.f32.mxu0 %v2649
        %4051 = vmatmul.mubr.f32.gmra.mxu0 %v2648
        %v4052 = vpop.f32.mrf.mxu0
        %v4053 = vadd.f32 %v3982, %v4052
        %v4054 = vpop.f32.mrf.mxu0
        %v4055 = vadd.f32 %v3984, %v4054
        %4056 = vdwg.mxu0
        %4057 = vmatprep.subr.mxu0 %v3357
        %4058 = vmatpush1.msra.mxu0 %v3356
        %4059 = vmatprep.subr.mxu0 %v3353
        %4060 = vmatpush1.msra.mxu0 %v3352
        %4061 = vmatprep.subr.mxu0 %v3349
        %4062 = vmatpush1.msra.mxu0 %v3348
        %4063 = vmatprep.subr.mxu0 %v3345
        %4064 = vmatpush1.msra.mxu0 %v3344
        %4065 = vmatprep.subr.mxu0 %v3341
        %4066 = vmatpush1.msra.mxu0 %v3340
        %4067 = vmatprep.subr.mxu0 %v3337
        %4068 = vmatpush1.msra.mxu0 %v3336
        %4069 = vmatprep.subr.mxu0 %v3333
        %4070 = vmatpush1.msra.mxu0 %v3332
        %4071 = vmatprep.subr.mxu0 %v3329
        %4072 = vmatpush1.msra.mxu0 %v3328
        %4073 = vmatprep.subr.mxu0 %v3325
        %4074 = vmatpush1.msra.mxu0 %v3324
        %4075 = vmatprep.subr.mxu0 %v3321
        %4076 = vmatpush1.msra.mxu0 %v3320
        %4077 = vmatprep.subr.mxu0 %v3317
        %4078 = vmatpush1.msra.mxu0 %v3316
        %4079 = vmatprep.subr.mxu0 %v3313
        %4080 = vmatpush1.msra.mxu0 %v3312
        %4081 = vmatprep.subr.mxu0 %v3309
        %4082 = vmatpush1.msra.mxu0 %v3308
        %4083 = vmatprep.subr.mxu0 %v3305
        %4084 = vmatpush1.msra.mxu0 %v3304
        %4085 = vmatprep.subr.mxu0 %v3301
        %4086 = vmatpush1.msra.mxu0 %v3300
        %4087 = vmatprep.subr.mxu0 %v3297
        %4088 = vmatpush1.msra.mxu0 %v3296
        %4089 = vmatprep.subr.mxu0 %v3421
        %4090 = vmatpush2.msra.mxu0 %v3420
        %4091 = vmatprep.subr.mxu0 %v3417
        %4092 = vmatpush2.msra.mxu0 %v3416
        %4093 = vmatprep.subr.mxu0 %v3413
        %4094 = vmatpush2.msra.mxu0 %v3412
        %4095 = vmatprep.subr.mxu0 %v3409
        %4096 = vmatpush2.msra.mxu0 %v3408
        %4097 = vmatprep.subr.mxu0 %v3405
        %4098 = vmatpush2.msra.mxu0 %v3404
        %4099 = vmatprep.subr.mxu0 %v3401
        %4100 = vmatpush2.msra.mxu0 %v3400
        %4101 = vmatprep.subr.mxu0 %v3397
        %4102 = vmatpush2.msra.mxu0 %v3396
        %4103 = vmatprep.subr.mxu0 %v3393
        %4104 = vmatpush2.msra.mxu0 %v3392
        %4105 = vmatprep.subr.mxu0 %v3389
        %4106 = vmatpush2.msra.mxu0 %v3388
        %4107 = vmatprep.subr.mxu0 %v3385
        %4108 = vmatpush2.msra.mxu0 %v3384
        %4109 = vmatprep.subr.mxu0 %v3381
        %4110 = vmatpush2.msra.mxu0 %v3380
        %4111 = vmatprep.subr.mxu0 %v3377
        %4112 = vmatpush2.msra.mxu0 %v3376
        %4113 = vmatprep.subr.mxu0 %v3373
        %4114 = vmatpush2.msra.mxu0 %v3372
        %4115 = vmatprep.subr.mxu0 %v3369
        %4116 = vmatpush2.msra.mxu0 %v3368
        %4117 = vmatprep.subr.mxu0 %v3365
        %4118 = vmatpush2.msra.mxu0 %v3364
        %4119 = vmatprep.subr.mxu0 %v3361
        %4120 = vmatpush2.msra.mxu0 %v3360
        %4121 = vmatprep.mubr.f32.mxu0 %v2651
        %4122 = vmatmul.mubr.f32.gmra.mxu0 %v2650
        %v4123 = vpop.f32.mrf.mxu0
        %v4124 = vadd.f32 %v4053, %v4123
        %v4125 = vpop.f32.mrf.mxu0
        %v4126 = vadd.f32 %v4055, %v4125
        %4127 = vdwg.mxu0
        %4128 = vmatprep.subr.mxu0 %v3485
        %4129 = vmatpush1.msra.mxu0 %v3484
        %4130 = vmatprep.subr.mxu0 %v3481
        %4131 = vmatpush1.msra.mxu0 %v3480
        %4132 = vmatprep.subr.mxu0 %v3477
        %4133 = vmatpush1.msra.mxu0 %v3476
        %4134 = vmatprep.subr.mxu0 %v3473
        %4135 = vmatpush1.msra.mxu0 %v3472
        %4136 = vmatprep.subr.mxu0 %v3469
        %4137 = vmatpush1.msra.mxu0 %v3468
        %4138 = vmatprep.subr.mxu0 %v3465
        %4139 = vmatpush1.msra.mxu0 %v3464
        %4140 = vmatprep.subr.mxu0 %v3461
        %4141 = vmatpush1.msra.mxu0 %v3460
        %4142 = vmatprep.subr.mxu0 %v3457
        %4143 = vmatpush1.msra.mxu0 %v3456
        %4144 = vmatprep.subr.mxu0 %v3453
        %4145 = vmatpush1.msra.mxu0 %v3452
        %4146 = vmatprep.subr.mxu0 %v3449
        %4147 = vmatpush1.msra.mxu0 %v3448
        %4148 = vmatprep.subr.mxu0 %v3445
        %4149 = vmatpush1.msra.mxu0 %v3444
        %4150 = vmatprep.subr.mxu0 %v3441
        %4151 = vmatpush1.msra.mxu0 %v3440
        %4152 = vmatprep.subr.mxu0 %v3437
        %4153 = vmatpush1.msra.mxu0 %v3436
        %4154 = vmatprep.subr.mxu0 %v3433
        %4155 = vmatpush1.msra.mxu0 %v3432
        %4156 = vmatprep.subr.mxu0 %v3429
        %4157 = vmatpush1.msra.mxu0 %v3428
        %4158 = vmatprep.subr.mxu0 %v3425
        %4159 = vmatpush1.msra.mxu0 %v3424
        %4160 = vmatprep.subr.mxu0 %v3549
        %4161 = vmatpush2.msra.mxu0 %v3548
        %4162 = vmatprep.subr.mxu0 %v3545
        %4163 = vmatpush2.msra.mxu0 %v3544
        %4164 = vmatprep.subr.mxu0 %v3541
        %4165 = vmatpush2.msra.mxu0 %v3540
        %4166 = vmatprep.subr.mxu0 %v3537
        %4167 = vmatpush2.msra.mxu0 %v3536
        %4168 = vmatprep.subr.mxu0 %v3533
        %4169 = vmatpush2.msra.mxu0 %v3532
        %4170 = vmatprep.subr.mxu0 %v3529
        %4171 = vmatpush2.msra.mxu0 %v3528
        %4172 = vmatprep.subr.mxu0 %v3525
        %4173 = vmatpush2.msra.mxu0 %v3524
        %4174 = vmatprep.subr.mxu0 %v3521
        %4175 = vmatpush2.msra.mxu0 %v3520
        %4176 = vmatprep.subr.mxu0 %v3517
        %4177 = vmatpush2.msra.mxu0 %v3516
        %4178 = vmatprep.subr.mxu0 %v3513
        %4179 = vmatpush2.msra.mxu0 %v3512
        %4180 = vmatprep.subr.mxu0 %v3509
        %4181 = vmatpush2.msra.mxu0 %v3508
        %4182 = vmatprep.subr.mxu0 %v3505
        %4183 = vmatpush2.msra.mxu0 %v3504
        %4184 = vmatprep.subr.mxu0 %v3501
        %4185 = vmatpush2.msra.mxu0 %v3500
        %4186 = vmatprep.subr.mxu0 %v3497
        %4187 = vmatpush2.msra.mxu0 %v3496
        %4188 = vmatprep.subr.mxu0 %v3493
        %4189 = vmatpush2.msra.mxu0 %v3492
        %4190 = vmatprep.subr.mxu0 %v3489
        %4191 = vmatpush2.msra.mxu0 %v3488
        %4192 = vmatprep.mubr.f32.mxu0 %v2653
        %4193 = vmatmul.mubr.f32.gmra.mxu0 %v2652
        %v4194 = vpop.f32.mrf.mxu0
        %v4195 = vadd.f32 %v4124, %v4194
        %v4196 = vpop.f32.mrf.mxu0
        %v4197 = vadd.f32 %v4126, %v4196
        %4198 = vdwg.mxu0
        %4199 = vmatprep.subr.mxu0 %v3613
        %4200 = vmatpush1.msra.mxu0 %v3612
        %4201 = vmatprep.subr.mxu0 %v3609
        %4202 = vmatpush1.msra.mxu0 %v3608
        %4203 = vmatprep.subr.mxu0 %v3605
        %4204 = vmatpush1.msra.mxu0 %v3604
        %4205 = vmatprep.subr.mxu0 %v3601
        %4206 = vmatpush1.msra.mxu0 %v3600
        %4207 = vmatprep.subr.mxu0 %v3597
        %4208 = vmatpush1.msra.mxu0 %v3596
        %4209 = vmatprep.subr.mxu0 %v3593
        %4210 = vmatpush1.msra.mxu0 %v3592
        %4211 = vmatprep.subr.mxu0 %v3589
        %4212 = vmatpush1.msra.mxu0 %v3588
        %4213 = vmatprep.subr.mxu0 %v3585
        %4214 = vmatpush1.msra.mxu0 %v3584
        %4215 = vmatprep.subr.mxu0 %v3581
        %4216 = vmatpush1.msra.mxu0 %v3580
        %4217 = vmatprep.subr.mxu0 %v3577
        %4218 = vmatpush1.msra.mxu0 %v3576
        %4219 = vmatprep.subr.mxu0 %v3573
        %4220 = vmatpush1.msra.mxu0 %v3572
        %4221 = vmatprep.subr.mxu0 %v3569
        %4222 = vmatpush1.msra.mxu0 %v3568
        %4223 = vmatprep.subr.mxu0 %v3565
        %4224 = vmatpush1.msra.mxu0 %v3564
        %4225 = vmatprep.subr.mxu0 %v3561
        %4226 = vmatpush1.msra.mxu0 %v3560
        %4227 = vmatprep.subr.mxu0 %v3557
        %4228 = vmatpush1.msra.mxu0 %v3556
        %4229 = vmatprep.subr.mxu0 %v3553
        %4230 = vmatpush1.msra.mxu0 %v3552
        %4231 = vmatprep.subr.mxu0 %v3677
        %4232 = vmatpush2.msra.mxu0 %v3676
        %4233 = vmatprep.subr.mxu0 %v3673
        %4234 = vmatpush2.msra.mxu0 %v3672
        %4235 = vmatprep.subr.mxu0 %v3669
        %4236 = vmatpush2.msra.mxu0 %v3668
        %4237 = vmatprep.subr.mxu0 %v3665
        %4238 = vmatpush2.msra.mxu0 %v3664
        %4239 = vmatprep.subr.mxu0 %v3661
        %4240 = vmatpush2.msra.mxu0 %v3660
        %4241 = vmatprep.subr.mxu0 %v3657
        %4242 = vmatpush2.msra.mxu0 %v3656
        %4243 = vmatprep.subr.mxu0 %v3653
        %4244 = vmatpush2.msra.mxu0 %v3652
        %4245 = vmatprep.subr.mxu0 %v3649
        %4246 = vmatpush2.msra.mxu0 %v3648
        %4247 = vmatprep.subr.mxu0 %v3645
        %4248 = vmatpush2.msra.mxu0 %v3644
        %4249 = vmatprep.subr.mxu0 %v3641
        %4250 = vmatpush2.msra.mxu0 %v3640
        %4251 = vmatprep.subr.mxu0 %v3637
        %4252 = vmatpush2.msra.mxu0 %v3636
        %4253 = vmatprep.subr.mxu0 %v3633
        %4254 = vmatpush2.msra.mxu0 %v3632
        %4255 = vmatprep.subr.mxu0 %v3629
        %4256 = vmatpush2.msra.mxu0 %v3628
        %4257 = vmatprep.subr.mxu0 %v3625
        %4258 = vmatpush2.msra.mxu0 %v3624
        %4259 = vmatprep.subr.mxu0 %v3621
        %4260 = vmatpush2.msra.mxu0 %v3620
        %4261 = vmatprep.subr.mxu0 %v3617
        %4262 = vmatpush2.msra.mxu0 %v3616
        %4263 = vmatprep.mubr.f32.mxu0 %v2655
        %4264 = vmatmul.mubr.f32.gmra.mxu0 %v2654
        %v4265 = vpop.f32.mrf.mxu0
        %v4266 = vadd.f32 %v4195, %v4265
        %v4267 = vpop.f32.mrf.mxu0
        %v4268 = vadd.f32 %v4197, %v4267
        %4269 = vdwg.mxu0
        %4270 = vmatprep.subr.mxu0 %v2719
        %4271 = vmatpush1.msra.mxu0 %v2718
        %4272 = vmatprep.subr.mxu0 %v2715
        %4273 = vmatpush1.msra.mxu0 %v2714
        %4274 = vmatprep.subr.mxu0 %v2711
        %4275 = vmatpush1.msra.mxu0 %v2710
        %4276 = vmatprep.subr.mxu0 %v2707
        %4277 = vmatpush1.msra.mxu0 %v2706
        %4278 = vmatprep.subr.mxu0 %v2703
        %4279 = vmatpush1.msra.mxu0 %v2702
        %4280 = vmatprep.subr.mxu0 %v2699
        %4281 = vmatpush1.msra.mxu0 %v2698
        %4282 = vmatprep.subr.mxu0 %v2695
        %4283 = vmatpush1.msra.mxu0 %v2694
        %4284 = vmatprep.subr.mxu0 %v2691
        %4285 = vmatpush1.msra.mxu0 %v2690
        %4286 = vmatprep.subr.mxu0 %v2687
        %4287 = vmatpush1.msra.mxu0 %v2686
        %4288 = vmatprep.subr.mxu0 %v2683
        %4289 = vmatpush1.msra.mxu0 %v2682
        %4290 = vmatprep.subr.mxu0 %v2679
        %4291 = vmatpush1.msra.mxu0 %v2678
        %4292 = vmatprep.subr.mxu0 %v2675
        %4293 = vmatpush1.msra.mxu0 %v2674
        %4294 = vmatprep.subr.mxu0 %v2671
        %4295 = vmatpush1.msra.mxu0 %v2670
        %4296 = vmatprep.subr.mxu0 %v2667
        %4297 = vmatpush1.msra.mxu0 %v2666
        %4298 = vmatprep.subr.mxu0 %v2663
        %4299 = vmatpush1.msra.mxu0 %v2662
        %4300 = vmatprep.subr.mxu0 %v2659
        %4301 = vmatpush1.msra.mxu0 %v2658
        %4302 = vmatprep.subr.mxu0 %v2783
        %4303 = vmatpush2.msra.mxu0 %v2782
        %4304 = vmatprep.subr.mxu0 %v2779
        %4305 = vmatpush2.msra.mxu0 %v2778
        %4306 = vmatprep.subr.mxu0 %v2775
        %4307 = vmatpush2.msra.mxu0 %v2774
        %4308 = vmatprep.subr.mxu0 %v2771
        %4309 = vmatpush2.msra.mxu0 %v2770
        %4310 = vmatprep.subr.mxu0 %v2767
        %4311 = vmatpush2.msra.mxu0 %v2766
        %4312 = vmatprep.subr.mxu0 %v2763
        %4313 = vmatpush2.msra.mxu0 %v2762
        %4314 = vmatprep.subr.mxu0 %v2759
        %4315 = vmatpush2.msra.mxu0 %v2758
        %4316 = vmatprep.subr.mxu0 %v2755
        %4317 = vmatpush2.msra.mxu0 %v2754
        %4318 = vmatprep.subr.mxu0 %v2751
        %4319 = vmatpush2.msra.mxu0 %v2750
        %4320 = vmatprep.subr.mxu0 %v2747
        %4321 = vmatpush2.msra.mxu0 %v2746
        %4322 = vmatprep.subr.mxu0 %v2743
        %4323 = vmatpush2.msra.mxu0 %v2742
        %4324 = vmatprep.subr.mxu0 %v2739
        %4325 = vmatpush2.msra.mxu0 %v2738
        %4326 = vmatprep.subr.mxu0 %v2735
        %4327 = vmatpush2.msra.mxu0 %v2734
        %4328 = vmatprep.subr.mxu0 %v2731
        %4329 = vmatpush2.msra.mxu0 %v2730
        %4330 = vmatprep.subr.mxu0 %v2727
        %4331 = vmatpush2.msra.mxu0 %v2726
        %4332 = vmatprep.subr.mxu0 %v2723
        %4333 = vmatpush2.msra.mxu0 %v2722
        %4334 = vmatprep.mubr.f32.mxu0 %v2641
        %4335 = vmatmul.mubr.f32.gmra.mxu0 %v2640
        %v4336 = vpop.f32.mrf.mxu0
        %v4337 = vadd.f32 %v3693, %v4336
        %v4338 = vpop.f32.mrf.mxu0
        %v4339 = vadd.f32 %v3697, %v4338
        %4340 = vdwg.mxu0
        %4341 = vmatprep.subr.mxu0 %v2847
        %4342 = vmatpush1.msra.mxu0 %v2846
        %4343 = vmatprep.subr.mxu0 %v2843
        %4344 = vmatpush1.msra.mxu0 %v2842
        %4345 = vmatprep.subr.mxu0 %v2839
        %4346 = vmatpush1.msra.mxu0 %v2838
        %4347 = vmatprep.subr.mxu0 %v2835
        %4348 = vmatpush1.msra.mxu0 %v2834
        %4349 = vmatprep.subr.mxu0 %v2831
        %4350 = vmatpush1.msra.mxu0 %v2830
        %4351 = vmatprep.subr.mxu0 %v2827
        %4352 = vmatpush1.msra.mxu0 %v2826
        %4353 = vmatprep.subr.mxu0 %v2823
        %4354 = vmatpush1.msra.mxu0 %v2822
        %4355 = vmatprep.subr.mxu0 %v2819
        %4356 = vmatpush1.msra.mxu0 %v2818
        %4357 = vmatprep.subr.mxu0 %v2815
        %4358 = vmatpush1.msra.mxu0 %v2814
        %4359 = vmatprep.subr.mxu0 %v2811
        %4360 = vmatpush1.msra.mxu0 %v2810
        %4361 = vmatprep.subr.mxu0 %v2807
        %4362 = vmatpush1.msra.mxu0 %v2806
        %4363 = vmatprep.subr.mxu0 %v2803
        %4364 = vmatpush1.msra.mxu0 %v2802
        %4365 = vmatprep.subr.mxu0 %v2799
        %4366 = vmatpush1.msra.mxu0 %v2798
        %4367 = vmatprep.subr.mxu0 %v2795
        %4368 = vmatpush1.msra.mxu0 %v2794
        %4369 = vmatprep.subr.mxu0 %v2791
        %4370 = vmatpush1.msra.mxu0 %v2790
        %4371 = vmatprep.subr.mxu0 %v2787
        %4372 = vmatpush1.msra.mxu0 %v2786
        %4373 = vmatprep.subr.mxu0 %v2911
        %4374 = vmatpush2.msra.mxu0 %v2910
        %4375 = vmatprep.subr.mxu0 %v2907
        %4376 = vmatpush2.msra.mxu0 %v2906
        %4377 = vmatprep.subr.mxu0 %v2903
        %4378 = vmatpush2.msra.mxu0 %v2902
        %4379 = vmatprep.subr.mxu0 %v2899
        %4380 = vmatpush2.msra.mxu0 %v2898
        %4381 = vmatprep.subr.mxu0 %v2895
        %4382 = vmatpush2.msra.mxu0 %v2894
        %4383 = vmatprep.subr.mxu0 %v2891
        %4384 = vmatpush2.msra.mxu0 %v2890
        %4385 = vmatprep.subr.mxu0 %v2887
        %4386 = vmatpush2.msra.mxu0 %v2886
        %4387 = vmatprep.subr.mxu0 %v2883
        %4388 = vmatpush2.msra.mxu0 %v2882
        %4389 = vmatprep.subr.mxu0 %v2879
        %4390 = vmatpush2.msra.mxu0 %v2878
        %4391 = vmatprep.subr.mxu0 %v2875
        %4392 = vmatpush2.msra.mxu0 %v2874
        %4393 = vmatprep.subr.mxu0 %v2871
        %4394 = vmatpush2.msra.mxu0 %v2870
        %4395 = vmatprep.subr.mxu0 %v2867
        %4396 = vmatpush2.msra.mxu0 %v2866
        %4397 = vmatprep.subr.mxu0 %v2863
        %4398 = vmatpush2.msra.mxu0 %v2862
        %4399 = vmatprep.subr.mxu0 %v2859
        %4400 = vmatpush2.msra.mxu0 %v2858
        %4401 = vmatprep.subr.mxu0 %v2855
        %4402 = vmatpush2.msra.mxu0 %v2854
        %4403 = vmatprep.subr.mxu0 %v2851
        %4404 = vmatpush2.msra.mxu0 %v2850
        %4405 = vmatprep.mubr.f32.mxu0 %v2643
        %4406 = vmatmul.mubr.f32.gmra.mxu0 %v2642
        %v4407 = vpop.f32.mrf.mxu0
        %v4408 = vadd.f32 %v4337, %v4407
        %v4409 = vpop.f32.mrf.mxu0
        %v4410 = vadd.f32 %v4339, %v4409
        %4411 = vdwg.mxu0
        %4412 = vmatprep.subr.mxu0 %v2975
        %4413 = vmatpush1.msra.mxu0 %v2974
        %4414 = vmatprep.subr.mxu0 %v2971
        %4415 = vmatpush1.msra.mxu0 %v2970
        %4416 = vmatprep.subr.mxu0 %v2967
        %4417 = vmatpush1.msra.mxu0 %v2966
        %4418 = vmatprep.subr.mxu0 %v2963
        %4419 = vmatpush1.msra.mxu0 %v2962
        %4420 = vmatprep.subr.mxu0 %v2959
        %4421 = vmatpush1.msra.mxu0 %v2958
        %4422 = vmatprep.subr.mxu0 %v2955
        %4423 = vmatpush1.msra.mxu0 %v2954
        %4424 = vmatprep.subr.mxu0 %v2951
        %4425 = vmatpush1.msra.mxu0 %v2950
        %4426 = vmatprep.subr.mxu0 %v2947
        %4427 = vmatpush1.msra.mxu0 %v2946
        %4428 = vmatprep.subr.mxu0 %v2943
        %4429 = vmatpush1.msra.mxu0 %v2942
        %4430 = vmatprep.subr.mxu0 %v2939
        %4431 = vmatpush1.msra.mxu0 %v2938
        %4432 = vmatprep.subr.mxu0 %v2935
        %4433 = vmatpush1.msra.mxu0 %v2934
        %4434 = vmatprep.subr.mxu0 %v2931
        %4435 = vmatpush1.msra.mxu0 %v2930
        %4436 = vmatprep.subr.mxu0 %v2927
        %4437 = vmatpush1.msra.mxu0 %v2926
        %4438 = vmatprep.subr.mxu0 %v2923
        %4439 = vmatpush1.msra.mxu0 %v2922
        %4440 = vmatprep.subr.mxu0 %v2919
        %4441 = vmatpush1.msra.mxu0 %v2918
        %4442 = vmatprep.subr.mxu0 %v2915
        %4443 = vmatpush1.msra.mxu0 %v2914
        %4444 = vmatprep.subr.mxu0 %v3039
        %4445 = vmatpush2.msra.mxu0 %v3038
        %4446 = vmatprep.subr.mxu0 %v3035
        %4447 = vmatpush2.msra.mxu0 %v3034
        %4448 = vmatprep.subr.mxu0 %v3031
        %4449 = vmatpush2.msra.mxu0 %v3030
        %4450 = vmatprep.subr.mxu0 %v3027
        %4451 = vmatpush2.msra.mxu0 %v3026
        %4452 = vmatprep.subr.mxu0 %v3023
        %4453 = vmatpush2.msra.mxu0 %v3022
        %4454 = vmatprep.subr.mxu0 %v3019
        %4455 = vmatpush2.msra.mxu0 %v3018
        %4456 = vmatprep.subr.mxu0 %v3015
        %4457 = vmatpush2.msra.mxu0 %v3014
        %4458 = vmatprep.subr.mxu0 %v3011
        %4459 = vmatpush2.msra.mxu0 %v3010
        %4460 = vmatprep.subr.mxu0 %v3007
        %4461 = vmatpush2.msra.mxu0 %v3006
        %4462 = vmatprep.subr.mxu0 %v3003
        %4463 = vmatpush2.msra.mxu0 %v3002
        %4464 = vmatprep.subr.mxu0 %v2999
        %4465 = vmatpush2.msra.mxu0 %v2998
        %4466 = vmatprep.subr.mxu0 %v2995
        %4467 = vmatpush2.msra.mxu0 %v2994
        %4468 = vmatprep.subr.mxu0 %v2991
        %4469 = vmatpush2.msra.mxu0 %v2990
        %4470 = vmatprep.subr.mxu0 %v2987
        %4471 = vmatpush2.msra.mxu0 %v2986
        %4472 = vmatprep.subr.mxu0 %v2983
        %4473 = vmatpush2.msra.mxu0 %v2982
        %4474 = vmatprep.subr.mxu0 %v2979
        %4475 = vmatpush2.msra.mxu0 %v2978
        %4476 = vmatprep.mubr.f32.mxu0 %v2645
        %4477 = vmatmul.mubr.f32.gmra.mxu0 %v2644
        %v4478 = vpop.f32.mrf.mxu0
        %v4479 = vadd.f32 %v4408, %v4478
        %v4480 = vpop.f32.mrf.mxu0
        %v4481 = vadd.f32 %v4410, %v4480
        %4482 = vdwg.mxu0
        %4483 = vmatprep.subr.mxu0 %v3103
        %4484 = vmatpush1.msra.mxu0 %v3102
        %4485 = vmatprep.subr.mxu0 %v3099
        %4486 = vmatpush1.msra.mxu0 %v3098
        %4487 = vmatprep.subr.mxu0 %v3095
        %4488 = vmatpush1.msra.mxu0 %v3094
        %4489 = vmatprep.subr.mxu0 %v3091
        %4490 = vmatpush1.msra.mxu0 %v3090
        %4491 = vmatprep.subr.mxu0 %v3087
        %4492 = vmatpush1.msra.mxu0 %v3086
        %4493 = vmatprep.subr.mxu0 %v3083
        %4494 = vmatpush1.msra.mxu0 %v3082
        %4495 = vmatprep.subr.mxu0 %v3079
        %4496 = vmatpush1.msra.mxu0 %v3078
        %4497 = vmatprep.subr.mxu0 %v3075
        %4498 = vmatpush1.msra.mxu0 %v3074
        %4499 = vmatprep.subr.mxu0 %v3071
        %4500 = vmatpush1.msra.mxu0 %v3070
        %4501 = vmatprep.subr.mxu0 %v3067
        %4502 = vmatpush1.msra.mxu0 %v3066
        %4503 = vmatprep.subr.mxu0 %v3063
        %4504 = vmatpush1.msra.mxu0 %v3062
        %4505 = vmatprep.subr.mxu0 %v3059
        %4506 = vmatpush1.msra.mxu0 %v3058
        %4507 = vmatprep.subr.mxu0 %v3055
        %4508 = vmatpush1.msra.mxu0 %v3054
        %4509 = vmatprep.subr.mxu0 %v3051
        %4510 = vmatpush1.msra.mxu0 %v3050
        %4511 = vmatprep.subr.mxu0 %v3047
        %4512 = vmatpush1.msra.mxu0 %v3046
        %4513 = vmatprep.subr.mxu0 %v3043
        %4514 = vmatpush1.msra.mxu0 %v3042
        %4515 = vmatprep.subr.mxu0 %v3167
        %4516 = vmatpush2.msra.mxu0 %v3166
        %4517 = vmatprep.subr.mxu0 %v3163
        %4518 = vmatpush2.msra.mxu0 %v3162
        %4519 = vmatprep.subr.mxu0 %v3159
        %4520 = vmatpush2.msra.mxu0 %v3158
        %4521 = vmatprep.subr.mxu0 %v3155
        %4522 = vmatpush2.msra.mxu0 %v3154
        %4523 = vmatprep.subr.mxu0 %v3151
        %4524 = vmatpush2.msra.mxu0 %v3150
        %4525 = vmatprep.subr.mxu0 %v3147
        %4526 = vmatpush2.msra.mxu0 %v3146
        %4527 = vmatprep.subr.mxu0 %v3143
        %4528 = vmatpush2.msra.mxu0 %v3142
        %4529 = vmatprep.subr.mxu0 %v3139
        %4530 = vmatpush2.msra.mxu0 %v3138
        %4531 = vmatprep.subr.mxu0 %v3135
        %4532 = vmatpush2.msra.mxu0 %v3134
        %4533 = vmatprep.subr.mxu0 %v3131
        %4534 = vmatpush2.msra.mxu0 %v3130
        %4535 = vmatprep.subr.mxu0 %v3127
        %4536 = vmatpush2.msra.mxu0 %v3126
        %4537 = vmatprep.subr.mxu0 %v3123
        %4538 = vmatpush2.msra.mxu0 %v3122
        %4539 = vmatprep.subr.mxu0 %v3119
        %4540 = vmatpush2.msra.mxu0 %v3118
        %4541 = vmatprep.subr.mxu0 %v3115
        %4542 = vmatpush2.msra.mxu0 %v3114
        %4543 = vmatprep.subr.mxu0 %v3111
        %4544 = vmatpush2.msra.mxu0 %v3110
        %4545 = vmatprep.subr.mxu0 %v3107
        %4546 = vmatpush2.msra.mxu0 %v3106
        %4547 = vmatprep.mubr.f32.mxu0 %v2647
        %4548 = vmatmul.mubr.f32.gmra.mxu0 %v2646
        %v4549 = vpop.f32.mrf.mxu0
        %v4550 = vadd.f32 %v4479, %v4549
        %v4551 = vpop.f32.mrf.mxu0
        %v4552 = vadd.f32 %v4481, %v4551
        %4553 = vdwg.mxu0
        %4554 = vmatprep.subr.mxu0 %v3231
        %4555 = vmatpush1.msra.mxu0 %v3230
        %4556 = vmatprep.subr.mxu0 %v3227
        %4557 = vmatpush1.msra.mxu0 %v3226
        %4558 = vmatprep.subr.mxu0 %v3223
        %4559 = vmatpush1.msra.mxu0 %v3222
        %4560 = vmatprep.subr.mxu0 %v3219
        %4561 = vmatpush1.msra.mxu0 %v3218
        %4562 = vmatprep.subr.mxu0 %v3215
        %4563 = vmatpush1.msra.mxu0 %v3214
        %4564 = vmatprep.subr.mxu0 %v3211
        %4565 = vmatpush1.msra.mxu0 %v3210
        %4566 = vmatprep.subr.mxu0 %v3207
        %4567 = vmatpush1.msra.mxu0 %v3206
        %4568 = vmatprep.subr.mxu0 %v3203
        %4569 = vmatpush1.msra.mxu0 %v3202
        %4570 = vmatprep.subr.mxu0 %v3199
        %4571 = vmatpush1.msra.mxu0 %v3198
        %4572 = vmatprep.subr.mxu0 %v3195
        %4573 = vmatpush1.msra.mxu0 %v3194
        %4574 = vmatprep.subr.mxu0 %v3191
        %4575 = vmatpush1.msra.mxu0 %v3190
        %4576 = vmatprep.subr.mxu0 %v3187
        %4577 = vmatpush1.msra.mxu0 %v3186
        %4578 = vmatprep.subr.mxu0 %v3183
        %4579 = vmatpush1.msra.mxu0 %v3182
        %4580 = vmatprep.subr.mxu0 %v3179
        %4581 = vmatpush1.msra.mxu0 %v3178
        %4582 = vmatprep.subr.mxu0 %v3175
        %4583 = vmatpush1.msra.mxu0 %v3174
        %4584 = vmatprep.subr.mxu0 %v3171
        %4585 = vmatpush1.msra.mxu0 %v3170
        %4586 = vmatprep.subr.mxu0 %v3295
        %4587 = vmatpush2.msra.mxu0 %v3294
        %4588 = vmatprep.subr.mxu0 %v3291
        %4589 = vmatpush2.msra.mxu0 %v3290
        %4590 = vmatprep.subr.mxu0 %v3287
        %4591 = vmatpush2.msra.mxu0 %v3286
        %4592 = vmatprep.subr.mxu0 %v3283
        %4593 = vmatpush2.msra.mxu0 %v3282
        %4594 = vmatprep.subr.mxu0 %v3279
        %4595 = vmatpush2.msra.mxu0 %v3278
        %4596 = vmatprep.subr.mxu0 %v3275
        %4597 = vmatpush2.msra.mxu0 %v3274
        %4598 = vmatprep.subr.mxu0 %v3271
        %4599 = vmatpush2.msra.mxu0 %v3270
        %4600 = vmatprep.subr.mxu0 %v3267
        %4601 = vmatpush2.msra.mxu0 %v3266
        %4602 = vmatprep.subr.mxu0 %v3263
        %4603 = vmatpush2.msra.mxu0 %v3262
        %4604 = vmatprep.subr.mxu0 %v3259
        %4605 = vmatpush2.msra.mxu0 %v3258
        %4606 = vmatprep.subr.mxu0 %v3255
        %4607 = vmatpush2.msra.mxu0 %v3254
        %4608 = vmatprep.subr.mxu0 %v3251
        %4609 = vmatpush2.msra.mxu0 %v3250
        %4610 = vmatprep.subr.mxu0 %v3247
        %4611 = vmatpush2.msra.mxu0 %v3246
        %4612 = vmatprep.subr.mxu0 %v3243
        %4613 = vmatpush2.msra.mxu0 %v3242
        %4614 = vmatprep.subr.mxu0 %v3239
        %4615 = vmatpush2.msra.mxu0 %v3238
        %4616 = vmatprep.subr.mxu0 %v3235
        %4617 = vmatpush2.msra.mxu0 %v3234
        %4618 = vmatprep.mubr.f32.mxu0 %v2649
        %4619 = vmatmul.mubr.f32.gmra.mxu0 %v2648
        %v4620 = vpop.f32.mrf.mxu0
        %v4621 = vadd.f32 %v4550, %v4620
        %v4622 = vpop.f32.mrf.mxu0
        %v4623 = vadd.f32 %v4552, %v4622
        %4624 = vdwg.mxu0
        %4625 = vmatprep.subr.mxu0 %v3359
        %4626 = vmatpush1.msra.mxu0 %v3358
        %4627 = vmatprep.subr.mxu0 %v3355
        %4628 = vmatpush1.msra.mxu0 %v3354
        %4629 = vmatprep.subr.mxu0 %v3351
        %4630 = vmatpush1.msra.mxu0 %v3350
        %4631 = vmatprep.subr.mxu0 %v3347
        %4632 = vmatpush1.msra.mxu0 %v3346
        %4633 = vmatprep.subr.mxu0 %v3343
        %4634 = vmatpush1.msra.mxu0 %v3342
        %4635 = vmatprep.subr.mxu0 %v3339
        %4636 = vmatpush1.msra.mxu0 %v3338
        %4637 = vmatprep.subr.mxu0 %v3335
        %4638 = vmatpush1.msra.mxu0 %v3334
        %4639 = vmatprep.subr.mxu0 %v3331
        %4640 = vmatpush1.msra.mxu0 %v3330
        %4641 = vmatprep.subr.mxu0 %v3327
        %4642 = vmatpush1.msra.mxu0 %v3326
        %4643 = vmatprep.subr.mxu0 %v3323
        %4644 = vmatpush1.msra.mxu0 %v3322
        %4645 = vmatprep.subr.mxu0 %v3319
        %4646 = vmatpush1.msra.mxu0 %v3318
        %4647 = vmatprep.subr.mxu0 %v3315
        %4648 = vmatpush1.msra.mxu0 %v3314
        %4649 = vmatprep.subr.mxu0 %v3311
        %4650 = vmatpush1.msra.mxu0 %v3310
        %4651 = vmatprep.subr.mxu0 %v3307
        %4652 = vmatpush1.msra.mxu0 %v3306
        %4653 = vmatprep.subr.mxu0 %v3303
        %4654 = vmatpush1.msra.mxu0 %v3302
        %4655 = vmatprep.subr.mxu0 %v3299
        %4656 = vmatpush1.msra.mxu0 %v3298
        %4657 = vmatprep.subr.mxu0 %v3423
        %4658 = vmatpush2.msra.mxu0 %v3422
        %4659 = vmatprep.subr.mxu0 %v3419
        %4660 = vmatpush2.msra.mxu0 %v3418
        %4661 = vmatprep.subr.mxu0 %v3415
        %4662 = vmatpush2.msra.mxu0 %v3414
        %4663 = vmatprep.subr.mxu0 %v3411
        %4664 = vmatpush2.msra.mxu0 %v3410
        %4665 = vmatprep.subr.mxu0 %v3407
        %4666 = vmatpush2.msra.mxu0 %v3406
        %4667 = vmatprep.subr.mxu0 %v3403
        %4668 = vmatpush2.msra.mxu0 %v3402
        %4669 = vmatprep.subr.mxu0 %v3399
        %4670 = vmatpush2.msra.mxu0 %v3398
        %4671 = vmatprep.subr.mxu0 %v3395
        %4672 = vmatpush2.msra.mxu0 %v3394
        %4673 = vmatprep.subr.mxu0 %v3391
        %4674 = vmatpush2.msra.mxu0 %v3390
        %4675 = vmatprep.subr.mxu0 %v3387
        %4676 = vmatpush2.msra.mxu0 %v3386
        %4677 = vmatprep.subr.mxu0 %v3383
        %4678 = vmatpush2.msra.mxu0 %v3382
        %4679 = vmatprep.subr.mxu0 %v3379
        %4680 = vmatpush2.msra.mxu0 %v3378
        %4681 = vmatprep.subr.mxu0 %v3375
        %4682 = vmatpush2.msra.mxu0 %v3374
        %4683 = vmatprep.subr.mxu0 %v3371
        %4684 = vmatpush2.msra.mxu0 %v3370
        %4685 = vmatprep.subr.mxu0 %v3367
        %4686 = vmatpush2.msra.mxu0 %v3366
        %4687 = vmatprep.subr.mxu0 %v3363
        %4688 = vmatpush2.msra.mxu0 %v3362
        %4689 = vmatprep.mubr.f32.mxu0 %v2651
        %4690 = vmatmul.mubr.f32.gmra.mxu0 %v2650
        %v4691 = vpop.f32.mrf.mxu0
        %v4692 = vadd.f32 %v4621, %v4691
        %v4693 = vpop.f32.mrf.mxu0
        %v4694 = vadd.f32 %v4623, %v4693
        %4695 = vdwg.mxu0
        %4696 = vmatprep.subr.mxu0 %v3487
        %4697 = vmatpush1.msra.mxu0 %v3486
        %4698 = vmatprep.subr.mxu0 %v3483
        %4699 = vmatpush1.msra.mxu0 %v3482
        %4700 = vmatprep.subr.mxu0 %v3479
        %4701 = vmatpush1.msra.mxu0 %v3478
        %4702 = vmatprep.subr.mxu0 %v3475
        %4703 = vmatpush1.msra.mxu0 %v3474
        %4704 = vmatprep.subr.mxu0 %v3471
        %4705 = vmatpush1.msra.mxu0 %v3470
        %4706 = vmatprep.subr.mxu0 %v3467
        %4707 = vmatpush1.msra.mxu0 %v3466
        %4708 = vmatprep.subr.mxu0 %v3463
        %4709 = vmatpush1.msra.mxu0 %v3462
        %4710 = vmatprep.subr.mxu0 %v3459
        %4711 = vmatpush1.msra.mxu0 %v3458
        %4712 = vmatprep.subr.mxu0 %v3455
        %4713 = vmatpush1.msra.mxu0 %v3454
        %4714 = vmatprep.subr.mxu0 %v3451
        %4715 = vmatpush1.msra.mxu0 %v3450
        %4716 = vmatprep.subr.mxu0 %v3447
        %4717 = vmatpush1.msra.mxu0 %v3446
        %4718 = vmatprep.subr.mxu0 %v3443
        %4719 = vmatpush1.msra.mxu0 %v3442
        %4720 = vmatprep.subr.mxu0 %v3439
        %4721 = vmatpush1.msra.mxu0 %v3438
        %4722 = vmatprep.subr.mxu0 %v3435
        %4723 = vmatpush1.msra.mxu0 %v3434
        %4724 = vmatprep.subr.mxu0 %v3431
        %4725 = vmatpush1.msra.mxu0 %v3430
        %4726 = vmatprep.subr.mxu0 %v3427
        %4727 = vmatpush1.msra.mxu0 %v3426
        %4728 = vmatprep.subr.mxu0 %v3551
        %4729 = vmatpush2.msra.mxu0 %v3550
        %4730 = vmatprep.subr.mxu0 %v3547
        %4731 = vmatpush2.msra.mxu0 %v3546
        %4732 = vmatprep.subr.mxu0 %v3543
        %4733 = vmatpush2.msra.mxu0 %v3542
        %4734 = vmatprep.subr.mxu0 %v3539
        %4735 = vmatpush2.msra.mxu0 %v3538
        %4736 = vmatprep.subr.mxu0 %v3535
        %4737 = vmatpush2.msra.mxu0 %v3534
        %4738 = vmatprep.subr.mxu0 %v3531
        %4739 = vmatpush2.msra.mxu0 %v3530
        %4740 = vmatprep.subr.mxu0 %v3527
        %4741 = vmatpush2.msra.mxu0 %v3526
        %4742 = vmatprep.subr.mxu0 %v3523
        %4743 = vmatpush2.msra.mxu0 %v3522
        %4744 = vmatprep.subr.mxu0 %v3519
        %4745 = vmatpush2.msra.mxu0 %v3518
        %4746 = vmatprep.subr.mxu0 %v3515
        %4747 = vmatpush2.msra.mxu0 %v3514
        %4748 = vmatprep.subr.mxu0 %v3511
        %4749 = vmatpush2.msra.mxu0 %v3510
        %4750 = vmatprep.subr.mxu0 %v3507
        %4751 = vmatpush2.msra.mxu0 %v3506
        %4752 = vmatprep.subr.mxu0 %v3503
        %4753 = vmatpush2.msra.mxu0 %v3502
        %4754 = vmatprep.subr.mxu0 %v3499
        %4755 = vmatpush2.msra.mxu0 %v3498
        %4756 = vmatprep.subr.mxu0 %v3495
        %4757 = vmatpush2.msra.mxu0 %v3494
        %4758 = vmatprep.subr.mxu0 %v3491
        %4759 = vmatpush2.msra.mxu0 %v3490
        %4760 = vmatprep.mubr.f32.mxu0 %v2653
        %4761 = vmatmul.mubr.f32.gmra.mxu0 %v2652
        %v4762 = vpop.f32.mrf.mxu0
        %v4763 = vadd.f32 %v4692, %v4762
        %v4764 = vpop.f32.mrf.mxu0
        %v4765 = vadd.f32 %v4694, %v4764
        %4766 = vdwg.mxu0
        %4767 = vmatprep.subr.mxu0 %v3615
        %4768 = vmatpush1.msra.mxu0 %v3614
        %4769 = vmatprep.subr.mxu0 %v3611
        %4770 = vmatpush1.msra.mxu0 %v3610
        %4771 = vmatprep.subr.mxu0 %v3607
        %4772 = vmatpush1.msra.mxu0 %v3606
        %4773 = vmatprep.subr.mxu0 %v3603
        %4774 = vmatpush1.msra.mxu0 %v3602
        %4775 = vmatprep.subr.mxu0 %v3599
        %4776 = vmatpush1.msra.mxu0 %v3598
        %4777 = vmatprep.subr.mxu0 %v3595
        %4778 = vmatpush1.msra.mxu0 %v3594
        %4779 = vmatprep.subr.mxu0 %v3591
        %4780 = vmatpush1.msra.mxu0 %v3590
        %4781 = vmatprep.subr.mxu0 %v3587
        %4782 = vmatpush1.msra.mxu0 %v3586
        %4783 = vmatprep.subr.mxu0 %v3583
        %4784 = vmatpush1.msra.mxu0 %v3582
        %4785 = vmatprep.subr.mxu0 %v3579
        %4786 = vmatpush1.msra.mxu0 %v3578
        %4787 = vmatprep.subr.mxu0 %v3575
        %4788 = vmatpush1.msra.mxu0 %v3574
        %4789 = vmatprep.subr.mxu0 %v3571
        %4790 = vmatpush1.msra.mxu0 %v3570
        %4791 = vmatprep.subr.mxu0 %v3567
        %4792 = vmatpush1.msra.mxu0 %v3566
        %4793 = vmatprep.subr.mxu0 %v3563
        %4794 = vmatpush1.msra.mxu0 %v3562
        %4795 = vmatprep.subr.mxu0 %v3559
        %4796 = vmatpush1.msra.mxu0 %v3558
        %4797 = vmatprep.subr.mxu0 %v3555
        %4798 = vmatpush1.msra.mxu0 %v3554
        %4799 = vmatprep.subr.mxu0 %v3679
        %4800 = vmatpush2.msra.mxu0 %v3678
        %4801 = vmatprep.subr.mxu0 %v3675
        %4802 = vmatpush2.msra.mxu0 %v3674
        %4803 = vmatprep.subr.mxu0 %v3671
        %4804 = vmatpush2.msra.mxu0 %v3670
        %4805 = vmatprep.subr.mxu0 %v3667
        %4806 = vmatpush2.msra.mxu0 %v3666
        %4807 = vmatprep.subr.mxu0 %v3663
        %4808 = vmatpush2.msra.mxu0 %v3662
        %4809 = vmatprep.subr.mxu0 %v3659
        %4810 = vmatpush2.msra.mxu0 %v3658
        %4811 = vmatprep.subr.mxu0 %v3655
        %4812 = vmatpush2.msra.mxu0 %v3654
        %4813 = vmatprep.subr.mxu0 %v3651
        %4814 = vmatpush2.msra.mxu0 %v3650
        %4815 = vmatprep.subr.mxu0 %v3647
        %4816 = vmatpush2.msra.mxu0 %v3646
        %4817 = vmatprep.subr.mxu0 %v3643
        %4818 = vmatpush2.msra.mxu0 %v3642
        %4819 = vmatprep.subr.mxu0 %v3639
        %4820 = vmatpush2.msra.mxu0 %v3638
        %4821 = vmatprep.subr.mxu0 %v3635
        %4822 = vmatpush2.msra.mxu0 %v3634
        %4823 = vmatprep.subr.mxu0 %v3631
        %4824 = vmatpush2.msra.mxu0 %v3630
        %4825 = vmatprep.subr.mxu0 %v3627
        %4826 = vmatpush2.msra.mxu0 %v3626
        %4827 = vmatprep.subr.mxu0 %v3623
        %4828 = vmatpush2.msra.mxu0 %v3622
        %4829 = vmatprep.subr.mxu0 %v3619
        %4830 = vmatpush2.msra.mxu0 %v3618
        %4831 = vmatprep.mubr.f32.mxu0 %v2655
        %4832 = vmatmul.mubr.f32.gmra.mxu0 %v2654
        %v4833 = vpop.f32.mrf.mxu0
        %v4834 = vadd.f32 %v4763, %v4833
        %v4835 = vpop.f32.mrf.mxu0
        %v4836 = vadd.f32 %v4765, %v4835
        %4837 = vdwg.mxu0
        %p4838 = scmp.ne.s32.totalorder %s29, 5
        // Predicated region
        $region65: #{many_ff_forward.1} parent=39 // pred_check
          %p4839 = pneg %p4838
        $region66: #{many_ff_forward.1} parent=39 // pred_check_branch
          %4841 = sbr.rel (%p4839) target = $region68
        $region67: #{many_ff_forward.1} parent=39 // pred_region
          %4842 = vst [vmem:[#allocation2] sm:$0xff] %v4266
          %4843 = vst [vmem:[#allocation2 + $0x8] sm:$0xff] %v4268
          %4844 = vst [vmem:[#allocation2 + $0x10] sm:$0xff] %v4834
          %4845 = vst [vmem:[#allocation2 + $0x18] sm:$0xff] %v4836
        $region68: #{many_ff_forward.1} parent=39 // pred_fallthru
          _
        // Predicated region
        $region69: #{many_ff_forward.1} parent=39 // pred_check
          %p4846 = pneg %p379
        $region70: #{many_ff_forward.1} parent=39 // pred_check_branch
          %4848 = sbr.rel (%p4846) target = $region72
        $region71: #{many_ff_forward.1} parent=39 // pred_region
          %4849 = vst [vmem:[#allocation12] sm:$0xff] %v4266
          %4850 = vst [vmem:[#allocation12 + $0x8] sm:$0xff] %v4268
          %4851 = vst [vmem:[#allocation12 + $0x10] sm:$0xff] %v4834
          %4852 = vst [vmem:[#allocation12 + $0x18] sm:$0xff] %v4836
        $region72: #{many_ff_forward.1} parent=39 // pred_fallthru
          _
        // Predicated region
        $region73: #{many_ff_forward.1} parent=39 // pred_check
          %p4853 = pneg %p184
        $region74: #{many_ff_forward.1} parent=39 // pred_check_branch
          %4855 = sbr.rel (%p4853) target = $region76
        $region75: #{many_ff_forward.1} parent=39 // pred_region
          %s4857 = ssub.s32 512, 512
          %4858 = vsyncadd [#allocation5], %s4857
          %s4859 = smul.addr %s28, 4
          %s4860 = smul.addr %s4859, 128
          %s4861 = scalar_lea.hbm %s5, %s4860
          %s4863 = sshll.u32 [#allocation12], 4
          %s4864 = int_to_ptr.vmem [resolvable:$true] %s4863
          %4866 = dma.vmem_to_hbm [thread:$0]  %s4864, 512, %s4861, [#allocation5]
        $region76: #{many_ff_forward.1} parent=39 // pred_fallthru
          _
        // Predicated region
        $region77: #{many_ff_forward.1} parent=39 // pred_check
          %p4867 = pneg %p184
        $region78: #{many_ff_forward.1} parent=39 // pred_check_branch
          %4869 = sbr.rel (%p4867) target = $region80
        $region79: #{many_ff_forward.1} parent=39 // pred_region
          %4870 = dma.done [#allocation5], 512
        $region80: #{many_ff_forward.1} parent=39 // pred_fallthru
          _
      $region40: #{many_ff_forward.1} parent=5 // pred_fallthru
        _
      %p4871 = scmp.le.s32.totalorder 2, %s19
      // Predicated region
      $region81: #{many_ff_forward.1} parent=5 // pred_check
        %p4872 = pneg %p4871
      $region82: #{many_ff_forward.1} parent=5 // pred_check_branch
        %4874 = sbr.rel (%p4872) target = $region84
      $region83: #{many_ff_forward.1} parent=5 // pred_region
        %s4875 = ssub.s32 %s19, 2
      $region84: #{many_ff_forward.1} parent=5 // pred_fallthru
        _
    $region6: #{many_ff_forward.1} parent=1 // loop_footer
      %s23 = sadd.s32 1, %s19
    $region7: #{many_ff_forward.1} parent=1 // loop_footer_branch
      %18 = sbr.rel target = $region3
    $region8: #{many_ff_forward.1} parent=1 // loop_exit
      _
    %4876 = vsyncpa [#allocation4], 1
    %s4877 = scalar_lea.sflag [#allocation4], 1
    %4878 = vsyncpa %s4877, 1
    %4879 = vsyncpa [#allocation7], 1
    %s4880 = scalar_lea.sflag [#allocation7], 1
    %4881 = vsyncpa %s4880, 1
    %4882 = vsyncpa [#allocation10], 1
    %s4883 = scalar_lea.sflag [#allocation10], 1
    %4884 = vsyncpa %s4883, 1
    %4885 = vsyncpa [#allocation5], 1
    %s4886 = scalar_lea.sflag [#allocation5], 1
    %4887 = vsyncpa %s4886, 1

</llo_original>
